<compile_context>
chip_gen: v7x
topology: tpu7x:2x2x1
jax: 0.10.0
libtpu: 0.0.40
codegen_flags: <defaults>
</compile_context>

<pallas_src>
import functools
import math

import jax
import jax.numpy as jnp
from jax import lax
from jax.experimental import pallas as pl
from jax.experimental.pallas import tpu as pltpu


def _round_up(x, m):
    return ((x + m - 1) // m) * m


# ----------------------------------------------------------------------------- #
# Pallas kernels: fused  (patches @ W_eff + b_eff)  ->  ReLU  [+ downsample/res] ReLU
# BatchNorm (eval mode) is folded into W_eff / b_eff outside the kernel, so each
# kernel is 1-2 MXU matmuls plus a cheap VPU epilogue.
# ----------------------------------------------------------------------------- #
def _conv_mm_kernel(p_ref, w_ref, b_ref, o_ref, *, relu):
    acc = jnp.dot(p_ref[...], w_ref[...], preferred_element_type=jnp.float32)
    acc = acc + b_ref[...]
    if relu:
        acc = jnp.maximum(acc, 0.0)
    o_ref[...] = acc


def _conv_mm_res_kernel(p_ref, w_ref, b_ref, r_ref, o_ref):
    # out = relu(res + relu(p @ w + b))          (identity residual path)
    acc = jnp.dot(p_ref[...], w_ref[...], preferred_element_type=jnp.float32)
    acc = jnp.maximum(acc + b_ref[...], 0.0)
    o_ref[...] = jnp.maximum(acc + r_ref[...], 0.0)


def _conv_mm_ds_res_kernel(p_ref, w_ref, b_ref, pd_ref, wd_ref, bd_ref, o_ref):
    # out = relu((pd @ wd + bd) + relu(p @ w + b))   (strided downsample residual,
    # both matmuls fused in one kernel -> no HBM round-trip for the 1x1 branch)
    acc = jnp.dot(p_ref[...], w_ref[...], preferred_element_type=jnp.float32)
    acc = jnp.maximum(acc + b_ref[...], 0.0)
    res = jnp.dot(pd_ref[...], wd_ref[...], preferred_element_type=jnp.float32)
    res = res + bd_ref[...]
    o_ref[...] = jnp.maximum(acc + res, 0.0)


def _maybe_pad_k(patches, w):
    """Pad the contraction dim to a multiple of 128 (lane-dense operands)."""
    K = patches.shape[1]
    if K > 128 and K % 128 != 0:
        K_pad = _round_up(K, 128)
        patches = jnp.pad(patches, ((0, 0), (0, K_pad - K)))
        w = jnp.pad(w, ((0, K_pad - K), (0, 0)))
    return patches, w


def _pad_rows(a, r_pad):
    r = a.shape[0]
    if r_pad != r:
        a = jnp.pad(a, ((0, r_pad - r), (0, 0)))
    return a


def fused_conv_matmul(patches, w, b, *, relu=True, residual=None,
                      ds_patches=None, ds_w=None, ds_b=None, row_block=512):
    """patches:(R,K)  w:(K,Cout)  b:(Cout,).
    Optional: residual:(R,Cout) (identity path) or (ds_patches, ds_w, ds_b) for the
    fused strided 1x1-conv residual branch."""
    R = patches.shape[0]
    Cout = w.shape[1]
    patches, w = _maybe_pad_k(patches, w)
    K = patches.shape[1]

    rb = min(row_block, _round_up(R, 8))
    R_pad = _round_up(R, rb)
    patches = _pad_rows(patches, R_pad)

    in_specs = [
        pl.BlockSpec((rb, K), lambda i: (i, 0)),
        pl.BlockSpec((K, Cout), lambda i: (0, 0)),
        pl.BlockSpec((1, Cout), lambda i: (0, 0)),
    ]
    args = [patches, w, b.reshape(1, Cout)]

    if ds_patches is not None:
        ds_patches, ds_w = _maybe_pad_k(ds_patches, ds_w)
        Kd = ds_patches.shape[1]
        ds_patches = _pad_rows(ds_patches, R_pad)
        in_specs += [
            pl.BlockSpec((rb, Kd), lambda i: (i, 0)),
            pl.BlockSpec((Kd, Cout), lambda i: (0, 0)),
            pl.BlockSpec((1, Cout), lambda i: (0, 0)),
        ]
        args += [ds_patches, ds_w, ds_b.reshape(1, Cout)]
        kernel = _conv_mm_ds_res_kernel
    elif residual is not None:
        residual = _pad_rows(residual.reshape(-1, Cout), R_pad)
        in_specs.append(pl.BlockSpec((rb, Cout), lambda i: (i, 0)))
        args.append(residual)
        kernel = _conv_mm_res_kernel
    else:
        kernel = functools.partial(_conv_mm_kernel, relu=relu)

    out = pl.pallas_call(
        kernel,
        out_shape=jax.ShapeDtypeStruct((R_pad, Cout), jnp.float32),
        grid=(R_pad // rb,),
        in_specs=in_specs,
        out_specs=pl.BlockSpec((rb, Cout), lambda i: (i, 0)),
        compiler_params=pltpu.CompilerParams(dimension_semantics=("parallel",)),
    )(*args)
    if R_pad != R:
        out = out[:R]
    return out


# ----------------------------------------------------------------------------- #
# Glue: im2col patch extraction and BatchNorm folding (plain JAX, cheap at these
# sizes).  # TODO(synk): at large resolutions patch extraction should move into a
# halo-aware BlockSpec index_map instead of materializing patch slabs in HBM.
# ----------------------------------------------------------------------------- #
def im2col_nhwc(x, kh, kw, stride, pad):
    N, H, W, C = x.shape
    if pad > 0:
        x = jnp.pad(x, ((0, 0), (pad, pad), (pad, pad), (0, 0)))
    Hp, Wp = H + 2 * pad, W + 2 * pad
    Ho = (Hp - kh) // stride + 1
    Wo = (Wp - kw) // stride + 1
    idx_h = (jnp.arange(Ho)[:, None] * stride + jnp.arange(kh)[None, :]).reshape(-1)
    idx_w = (jnp.arange(Wo)[:, None] * stride + jnp.arange(kw)[None, :]).reshape(-1)
    p = x[:, idx_h, :, :][:, :, idx_w, :]                    # (N, Ho*kh, Wo*kw, C)
    p = p.reshape(N, Ho, kh, Wo, kw, C).transpose(0, 1, 3, 2, 4, 5)
    return p.reshape(N * Ho * Wo, kh * kw * C), Ho, Wo


def fold_conv_bn(conv_w, conv_b, bn, eps=1e-5):
    """Fold eval-mode BatchNorm into the conv weights/bias.
    conv_w: (Cout, Cin, kh, kw) torch layout -> (kh*kw*Cin, Cout)."""
    Cout, Cin, kh, kw = conv_w.shape
    scale = bn["gamma"] / jnp.sqrt(bn["var"] + eps)
    w2 = conv_w.transpose(2, 3, 1, 0).reshape(kh * kw * Cin, Cout)
    w_eff = w2 * scale[None, :]
    b_eff = (conv_b - bn["mean"]) * scale + bn["beta"]
    return w_eff, b_eff


def conv_bn_act(x_nhwc, conv_w, conv_b, bn_p, stride, pad, relu=True):
    N = x_nhwc.shape[0]
    kh, kw = conv_w.shape[2], conv_w.shape[3]
    patches, Ho, Wo = im2col_nhwc(x_nhwc, kh, kw, stride, pad)
    w_eff, b_eff = fold_conv_bn(conv_w, conv_b, bn_p)
    out = fused_conv_matmul(patches, w_eff, b_eff, relu=relu)
    return out.reshape(N, Ho, Wo, w_eff.shape[1])


# ----------------------------------------------------------------------------- #
# ResidualBlock / IPTHeadEncoder forward (norm_fn='batch', dropout=0.0, eval mode)
# ----------------------------------------------------------------------------- #
def residual_block(x, p, stride):
    N = x.shape[0]
    # y = relu(norm1(conv1(x)))
    y = conv_bn_act(x, p["conv1_w"], p["conv1_b"], p["norm1"],
                    stride=stride, pad=1, relu=True)
    # second conv + norm + relu + residual(+downsample) + relu, all in one kernel
    p2, Ho, Wo = im2col_nhwc(y, 3, 3, 1, 1)
    w2, b2 = fold_conv_bn(p["conv2_w"], p["conv2_b"], p["norm2"])
    Cout = w2.shape[1]
    if stride != 1:
        pd, _, _ = im2col_nhwc(x, 1, 1, stride, 0)           # 1x1 strided patches
        wd, bd = fold_conv_bn(p["down_w"], p["down_b"], p["norm3"])
        out = fused_conv_matmul(p2, w2, b2, ds_patches=pd, ds_w=wd, ds_b=bd)
    else:
        out = fused_conv_matmul(p2, w2, b2, residual=x.reshape(-1, Cout))
    return out.reshape(N, Ho, Wo, Cout)


def ipt_head_encoder(x, params):
    """Matches IPTHeadEncoder.forward (eval mode).  x: NCHW or tuple/list of NCHW."""
    is_list = isinstance(x, (tuple, list))
    if is_list:
        batch_dim = x[0].shape[0]
        x = jnp.concatenate(x, axis=0)
    x = jnp.transpose(x, (0, 2, 3, 1))                       # NCHW -> NHWC
    x = conv_bn_act(x, params["conv1_w"], params["conv1_b"], params["norm1"],
                    stride=2, pad=3, relu=True)
    x = residual_block(x, params["layer1"], stride=2)
    x = residual_block(x, params["layer2"], stride=2)
    # TODO(synk): Dropout2d omitted (p=0.0 / eval mode -> identity).
    x = jnp.transpose(x, (0, 3, 1, 2))                       # NHWC -> NCHW
    if is_list:
        return (x[:batch_dim], x[batch_dim:])
    return x


# ----------------------------------------------------------------------------- #
# Pure-JAX reference (lax.conv) for in-script correctness validation
# ----------------------------------------------------------------------------- #
def _ref_conv_bn(x_nhwc, w, b, bn, stride, pad, relu=True, eps=1e-5):
    out = lax.conv_general_dilated(
        x_nhwc, jnp.transpose(w, (2, 3, 1, 0)),
        window_strides=(stride, stride), padding=((pad, pad), (pad, pad)),
        dimension_numbers=("NHWC", "HWIO", "NHWC"))
    out = out + b.reshape(1, 1, 1, -1)
    scale = bn["gamma"] / jnp.sqrt(bn["var"] + eps)
    out = (out - bn["mean"]) * scale + bn["beta"]
    return jnp.maximum(out, 0.0) if relu else out


def ipt_head_encoder_ref(x, params):
    x = jnp.transpose(x, (0, 2, 3, 1))
    x = _ref_conv_bn(x, params["conv1_w"], params["conv1_b"], params["norm1"], 2, 3)
    for name in ("layer1", "layer2"):
        p = params[name]
        y = _ref_conv_bn(x, p["conv1_w"], p["conv1_b"], p["norm1"], 2, 1)
        y = _ref_conv_bn(y, p["conv2_w"], p["conv2_b"], p["norm2"], 1, 1)
        xd = _ref_conv_bn(x, p["down_w"], p["down_b"], p["norm3"], 2, 0, relu=False)
        x = jnp.maximum(xd + y, 0.0)
    return jnp.transpose(x, (0, 3, 1, 2))


# ----------------------------------------------------------------------------- #
# Deterministic synthetic parameter init
# TODO(synk): BatchNorm in eval mode with running stats; training-mode batch
#             statistics are not computed.
# ----------------------------------------------------------------------------- #
def init_params(key, output_dim=128):
    half = max(output_dim // 2, 64)

    def conv(k, cout, cin, kh, kw):
        fan_in = cin * kh * kw
        return jax.random.normal(k, (cout, cin, kh, kw), jnp.float32) * math.sqrt(2.0 / fan_in)

    def bias(k, cout):
        return jax.random.normal(k, (cout,), jnp.float32) * 0.01

    def bn(k, c):
        k1, k2, k3 = jax.random.split(k, 3)
        return {
            "gamma": 1.0 + 0.1 * jax.random.normal(k1, (c,), jnp.float32),
            "beta": 0.05 * jax.random.normal(k2, (c,), jnp.float32),
            "mean": 0.1 * jax.random.normal(k3, (c,), jnp.float32),
            "var": jnp.ones((c,), jnp.float32),
        }

    def res_block_params(k, cin, cout):
        ks = jax.random.split(k, 9)
        return {
            "conv1_w": conv(ks[0], cout, cin, 3, 3),
            "conv1_b": bias(ks[1], cout),
            "norm1": bn(ks[2], cout),
            "conv2_w": conv(ks[3], cout, cout, 3, 3),
            "conv2_b": bias(ks[4], cout),
            "norm2": bn(ks[5], cout),
            "down_w": conv(ks[6], cout, cin, 1, 1),
            "down_b": bias(ks[7], cout),
            "norm3": bn(ks[8], cout),
        }

    k0, k1, k2, k3, k4 = jax.random.split(key, 5)
    return {
        "conv1_w": conv(k0, 64, 5, 7, 7),
        "conv1_b": bias(k1, 64),
        "norm1": bn(k2, 64),
        "layer1": res_block_params(k3, 64, half),
        "layer2": res_block_params(k4, half, output_dim),
    }


if __name__ == "__main__":
    output_dim = 128
    key = jax.random.PRNGKey(0)
    kx, kp = jax.random.split(key)
    # IPTHeadEncoder.conv1 expects 5 input channels; 32x32 -> /2 /2 /2 -> 4x4 features.
    x = jax.random.normal(kx, (2, 5, 32, 32), jnp.float32)
    params = init_params(kp, output_dim=output_dim)

    out = jax.jit(ipt_head_encoder)(x, params)
    out = jax.block_until_ready(out)
    assert out.shape == (2, output_dim, 4, 4), out.shape
    assert bool(jnp.all(jnp.isfinite(out)))

    ref = jax.block_until_ready(jax.jit(ipt_head_encoder_ref)(x, params))
    assert bool(jnp.allclose(out, ref, atol=2e-3, rtol=2e-3)), float(
        jnp.max(jnp.abs(out - ref)))
    print("KERNEL_OK")
</pallas_src>

<mosaic_0001>
module attributes {stable_mosaic.version = 11 : i64} {
  func.func @_conv_mm_kernel(%arg0: i32, %arg1: memref<512x256xf32, #tpu.memory_space<vmem>>, %arg2: memref<256x64xf32, #tpu.memory_space<vmem>>, %arg3: memref<1x64xf32, #tpu.memory_space<vmem>>, %arg4: memref<512x64xf32, #tpu.memory_space<vmem>>) attributes {dimension_semantics = [#tpu.dimension_semantics<parallel>], iteration_bounds = array<i64: 1>, scalar_prefetch = 0 : i64, scratch_operands = 0 : i64, tpu.core_type = #tpu.core_type<tc>, window_params = [{transform_indices = @transform_0, window_bounds = array<i64: 512, 256>}, {pipeline_mode = #tpu.pipeline_mode<synchronous>, transform_indices = @transform_1, window_bounds = array<i64: 256, 64>}, {pipeline_mode = #tpu.pipeline_mode<synchronous>, transform_indices = @transform_2, window_bounds = array<i64: 1, 64>}, {transform_indices = @transform_3, window_bounds = array<i64: 512, 64>}]} {
    %c0 = arith.constant 0 : index
    %c0_0 = arith.constant 0 : index
    %0 = vector.load %arg1[%c0, %c0_0] : memref<512x256xf32, #tpu.memory_space<vmem>>, vector<512x256xf32>
    %c0_1 = arith.constant 0 : index
    %c0_2 = arith.constant 0 : index
    %1 = vector.load %arg2[%c0_1, %c0_2] : memref<256x64xf32, #tpu.memory_space<vmem>>, vector<256x64xf32>
    %cst = arith.constant dense<0.000000e+00> : vector<512x64xf32>
    %2 = tpu.matmul %0, %1, %cst {dimension_numbers = #tpu.dot_dimension_numbers<[1], [0], [0], [1], [0, 0, 1, 1], [], []>} : vector<512x256xf32>, vector<256x64xf32>, vector<512x64xf32> -> vector<512x64xf32>
    %c0_3 = arith.constant 0 : index
    %c0_4 = arith.constant 0 : index
    %3 = vector.load %arg3[%c0_3, %c0_4] : memref<1x64xf32, #tpu.memory_space<vmem>>, vector<1x64xf32>
    %4 = vector.broadcast %3 : vector<1x64xf32> to vector<512x64xf32>
    %5 = arith.addf %2, %4 : vector<512x64xf32>
    %cst_5 = arith.constant 0.000000e+00 : f32
    %6 = vector.broadcast %cst_5 : f32 to vector<512x64xf32>
    %7 = arith.maximumf %5, %6 : vector<512x64xf32>
    %c0_6 = arith.constant 0 : index
    %c0_7 = arith.constant 0 : index
    %8 = vector.load %arg4[%c0_6, %c0_7] : memref<512x64xf32, #tpu.memory_space<vmem>>, vector<512x64xf32>
    tpu.vector_store %arg4[%c0_6, %c0_7], %7 {strides = array<i32>} : memref<512x64xf32, #tpu.memory_space<vmem>>, vector<512x64xf32>,
    return
  }
  func.func @transform_0(%arg0: i32) -> (i32, i32) {
    %c0_i32 = arith.constant 0 : i32
    %c0_i32_0 = arith.constant 0 : i32
    return %arg0, %c0_i32 : i32, i32
  }
  func.func @transform_1(%arg0: i32) -> (i32, i32) {
    %c0_i32 = arith.constant 0 : i32
    %c0_i32_0 = arith.constant 0 : i32
    %c0_i32_1 = arith.constant 0 : i32
    return %c0_i32, %c0_i32_0 : i32, i32
  }
  func.func @transform_2(%arg0: i32) -> (i32, i32) {
    %c0_i32 = arith.constant 0 : i32
    %c0_i32_0 = arith.constant 0 : i32
    %c0_i32_1 = arith.constant 0 : i32
    return %c0_i32, %c0_i32_0 : i32, i32
  }
  func.func @transform_3(%arg0: i32) -> (i32, i32) {
    %c0_i32 = arith.constant 0 : i32
    %c0_i32_0 = arith.constant 0 : i32
    return %arg0, %c0_i32 : i32, i32
  }
}

module attributes {stable_mosaic.version = 11 : i64} {
  func.func @_conv_mm_kernel(%arg0: i32, %arg1: memref<128x640xf32, #tpu.memory_space<vmem>>, %arg2: memref<640x64xf32, #tpu.memory_space<vmem>>, %arg3: memref<1x64xf32, #tpu.memory_space<vmem>>, %arg4: memref<128x64xf32, #tpu.memory_space<vmem>>) attributes {dimension_semantics = [#tpu.dimension_semantics<parallel>], iteration_bounds = array<i64: 1>, scalar_prefetch = 0 : i64, scratch_operands = 0 : i64, tpu.core_type = #tpu.core_type<tc>, window_params = [{transform_indices = @transform_0, window_bounds = array<i64: 128, 640>}, {pipeline_mode = #tpu.pipeline_mode<synchronous>, transform_indices = @transform_1, window_bounds = array<i64: 640, 64>}, {pipeline_mode = #tpu.pipeline_mode<synchronous>, transform_indices = @transform_2, window_bounds = array<i64: 1, 64>}, {transform_indices = @transform_3, window_bounds = array<i64: 128, 64>}]} {
    %c0 = arith.constant 0 : index
    %c0_0 = arith.constant 0 : index
    %0 = vector.load %arg1[%c0, %c0_0] : memref<128x640xf32, #tpu.memory_space<vmem>>, vector<128x640xf32>
    %c0_1 = arith.constant 0 : index
    %c0_2 = arith.constant 0 : index
    %1 = vector.load %arg2[%c0_1, %c0_2] : memref<640x64xf32, #tpu.memory_space<vmem>>, vector<640x64xf32>
    %cst = arith.constant dense<0.000000e+00> : vector<128x64xf32>
    %2 = tpu.matmul %0, %1, %cst {dimension_numbers = #tpu.dot_dimension_numbers<[1], [0], [0], [1], [0, 0, 1, 1], [], []>} : vector<128x640xf32>, vector<640x64xf32>, vector<128x64xf32> -> vector<128x64xf32>
    %c0_3 = arith.constant 0 : index
    %c0_4 = arith.constant 0 : index
    %3 = vector.load %arg3[%c0_3, %c0_4] : memref<1x64xf32, #tpu.memory_space<vmem>>, vector<1x64xf32>
    %4 = vector.broadcast %3 : vector<1x64xf32> to vector<128x64xf32>
    %5 = arith.addf %2, %4 : vector<128x64xf32>
    %cst_5 = arith.constant 0.000000e+00 : f32
    %6 = vector.broadcast %cst_5 : f32 to vector<128x64xf32>
    %7 = arith.maximumf %5, %6 : vector<128x64xf32>
    %c0_6 = arith.constant 0 : index
    %c0_7 = arith.constant 0 : index
    %8 = vector.load %arg4[%c0_6, %c0_7] : memref<128x64xf32, #tpu.memory_space<vmem>>, vector<128x64xf32>
    tpu.vector_store %arg4[%c0_6, %c0_7], %7 {strides = array<i32>} : memref<128x64xf32, #tpu.memory_space<vmem>>, vector<128x64xf32>,
    return
  }
  func.func @transform_0(%arg0: i32) -> (i32, i32) {
    %c0_i32 = arith.constant 0 : i32
    %c0_i32_0 = arith.constant 0 : i32
    return %arg0, %c0_i32 : i32, i32
  }
  func.func @transform_1(%arg0: i32) -> (i32, i32) {
    %c0_i32 = arith.constant 0 : i32
    %c0_i32_0 = arith.constant 0 : i32
    %c0_i32_1 = arith.constant 0 : i32
    return %c0_i32, %c0_i32_0 : i32, i32
  }
  func.func @transform_2(%arg0: i32) -> (i32, i32) {
    %c0_i32 = arith.constant 0 : i32
    %c0_i32_0 = arith.constant 0 : i32
    %c0_i32_1 = arith.constant 0 : i32
    return %c0_i32, %c0_i32_0 : i32, i32
  }
  func.func @transform_3(%arg0: i32) -> (i32, i32) {
    %c0_i32 = arith.constant 0 : i32
    %c0_i32_0 = arith.constant 0 : i32
    return %arg0, %c0_i32 : i32, i32
  }
}

module attributes {stable_mosaic.version = 11 : i64} {
  func.func @_conv_mm_ds_res_kernel(%arg0: i32, %arg1: memref<128x640xf32, #tpu.memory_space<vmem>>, %arg2: memref<640x64xf32, #tpu.memory_space<vmem>>, %arg3: memref<1x64xf32, #tpu.memory_space<vmem>>, %arg4: memref<128x64xf32, #tpu.memory_space<vmem>>, %arg5: memref<64x64xf32, #tpu.memory_space<vmem>>, %arg6: memref<1x64xf32, #tpu.memory_space<vmem>>, %arg7: memref<128x64xf32, #tpu.memory_space<vmem>>) attributes {dimension_semantics = [#tpu.dimension_semantics<parallel>], iteration_bounds = array<i64: 1>, scalar_prefetch = 0 : i64, scratch_operands = 0 : i64, tpu.core_type = #tpu.core_type<tc>, window_params = [{transform_indices = @transform_0, window_bounds = array<i64: 128, 640>}, {pipeline_mode = #tpu.pipeline_mode<synchronous>, transform_indices = @transform_1, window_bounds = array<i64: 640, 64>}, {pipeline_mode = #tpu.pipeline_mode<synchronous>, transform_indices = @transform_2, window_bounds = array<i64: 1, 64>}, {transform_indices = @transform_3, window_bounds = array<i64: 128, 64>}, {pipeline_mode = #tpu.pipeline_mode<synchronous>, transform_indices = @transform_4, window_bounds = array<i64: 64, 64>}, {pipeline_mode = #tpu.pipeline_mode<synchronous>, transform_indices = @transform_5, window_bounds = array<i64: 1, 64>}, {transform_indices = @transform_6, window_bounds = array<i64: 128, 64>}]} {
    %c0 = arith.constant 0 : index
    %c0_0 = arith.constant 0 : index
    %0 = vector.load %arg1[%c0, %c0_0] : memref<128x640xf32, #tpu.memory_space<vmem>>, vector<128x640xf32>
    %c0_1 = arith.constant 0 : index
    %c0_2 = arith.constant 0 : index
    %1 = vector.load %arg2[%c0_1, %c0_2] : memref<640x64xf32, #tpu.memory_space<vmem>>, vector<640x64xf32>
    %cst = arith.constant dense<0.000000e+00> : vector<128x64xf32>
    %2 = tpu.matmul %0, %1, %cst {dimension_numbers = #tpu.dot_dimension_numbers<[1], [0], [0], [1], [0, 0, 1, 1], [], []>} : vector<128x640xf32>, vector<640x64xf32>, vector<128x64xf32> -> vector<128x64xf32>
    %c0_3 = arith.constant 0 : index
    %c0_4 = arith.constant 0 : index
    %3 = vector.load %arg3[%c0_3, %c0_4] : memref<1x64xf32, #tpu.memory_space<vmem>>, vector<1x64xf32>
    %4 = vector.broadcast %3 : vector<1x64xf32> to vector<128x64xf32>
    %5 = arith.addf %2, %4 : vector<128x64xf32>
    %cst_5 = arith.constant 0.000000e+00 : f32
    %6 = vector.broadcast %cst_5 : f32 to vector<128x64xf32>
    %7 = arith.maximumf %5, %6 : vector<128x64xf32>
    %c0_6 = arith.constant 0 : index
    %c0_7 = arith.constant 0 : index
    %8 = vector.load %arg4[%c0_6, %c0_7] : memref<128x64xf32, #tpu.memory_space<vmem>>, vector<128x64xf32>
    %c0_8 = arith.constant 0 : index
    %c0_9 = arith.constant 0 : index
    %9 = vector.load %arg5[%c0_8, %c0_9] : memref<64x64xf32, #tpu.memory_space<vmem>>, vector<64x64xf32>
    %cst_10 = arith.constant dense<0.000000e+00> : vector<128x64xf32>
    %10 = tpu.matmul %8, %9, %cst_10 {dimension_numbers = #tpu.dot_dimension_numbers<[1], [0], [0], [1], [0, 0, 1, 1], [], []>} : vector<128x64xf32>, vector<64x64xf32>, vector<128x64xf32> -> vector<128x64xf32>
    %c0_11 = arith.constant 0 : index
    %c0_12 = arith.constant 0 : index
    %11 = vector.load %arg6[%c0_11, %c0_12] : memref<1x64xf32, #tpu.memory_space<vmem>>, vector<1x64xf32>
    %12 = vector.broadcast %11 : vector<1x64xf32> to vector<128x64xf32>
    %13 = arith.addf %10, %12 : vector<128x64xf32>
    %14 = arith.addf %7, %13 : vector<128x64xf32>
    %cst_13 = arith.constant 0.000000e+00 : f32
    %15 = vector.broadcast %cst_13 : f32 to vector<128x64xf32>
    %16 = arith.maximumf %14, %15 : vector<128x64xf32>
    %c0_14 = arith.constant 0 : index
    %c0_15 = arith.constant 0 : index
    %17 = vector.load %arg7[%c0_14, %c0_15] : memref<128x64xf32, #tpu.memory_space<vmem>>, vector<128x64xf32>
    tpu.vector_store %arg7[%c0_14, %c0_15], %16 {strides = array<i32>} : memref<128x64xf32, #tpu.memory_space<vmem>>, vector<128x64xf32>,
    return
  }
  func.func @transform_0(%arg0: i32) -> (i32, i32) {
    %c0_i32 = arith.constant 0 : i32
    %c0_i32_0 = arith.constant 0 : i32
    return %arg0, %c0_i32 : i32, i32
  }
  func.func @transform_1(%arg0: i32) -> (i32, i32) {
    %c0_i32 = arith.constant 0 : i32
    %c0_i32_0 = arith.constant 0 : i32
    %c0_i32_1 = arith.constant 0 : i32
    return %c0_i32, %c0_i32_0 : i32, i32
  }
  func.func @transform_2(%arg0: i32) -> (i32, i32) {
    %c0_i32 = arith.constant 0 : i32
    %c0_i32_0 = arith.constant 0 : i32
    %c0_i32_1 = arith.constant 0 : i32
    return %c0_i32, %c0_i32_0 : i32, i32
  }
  func.func @transform_3(%arg0: i32) -> (i32, i32) {
    %c0_i32 = arith.constant 0 : i32
    %c0_i32_0 = arith.constant 0 : i32
    return %arg0, %c0_i32 : i32, i32
  }
  func.func @transform_4(%arg0: i32) -> (i32, i32) {
    %c0_i32 = arith.constant 0 : i32
    %c0_i32_0 = arith.constant 0 : i32
    %c0_i32_1 = arith.constant 0 : i32
    return %c0_i32, %c0_i32_0 : i32, i32
  }
  func.func @transform_5(%arg0: i32) -> (i32, i32) {
    %c0_i32 = arith.constant 0 : i32
    %c0_i32_0 = arith.constant 0 : i32
    %c0_i32_1 = arith.constant 0 : i32
    return %c0_i32, %c0_i32_0 : i32, i32
  }
  func.func @transform_6(%arg0: i32) -> (i32, i32) {
    %c0_i32 = arith.constant 0 : i32
    %c0_i32_0 = arith.constant 0 : i32
    return %arg0, %c0_i32 : i32, i32
  }
}

module attributes {stable_mosaic.version = 11 : i64} {
  func.func @_conv_mm_kernel(%arg0: i32, %arg1: memref<32x640xf32, #tpu.memory_space<vmem>>, %arg2: memref<640x128xf32, #tpu.memory_space<vmem>>, %arg3: memref<1x128xf32, #tpu.memory_space<vmem>>, %arg4: memref<32x128xf32, #tpu.memory_space<vmem>>) attributes {dimension_semantics = [#tpu.dimension_semantics<parallel>], iteration_bounds = array<i64: 1>, scalar_prefetch = 0 : i64, scratch_operands = 0 : i64, tpu.core_type = #tpu.core_type<tc>, window_params = [{transform_indices = @transform_0, window_bounds = array<i64: 32, 640>}, {pipeline_mode = #tpu.pipeline_mode<synchronous>, transform_indices = @transform_1, window_bounds = array<i64: 640, 128>}, {pipeline_mode = #tpu.pipeline_mode<synchronous>, transform_indices = @transform_2, window_bounds = array<i64: 1, 128>}, {transform_indices = @transform_3, window_bounds = array<i64: 32, 128>}]} {
    %c0 = arith.constant 0 : index
    %c0_0 = arith.constant 0 : index
    %0 = vector.load %arg1[%c0, %c0_0] : memref<32x640xf32, #tpu.memory_space<vmem>>, vector<32x640xf32>
    %c0_1 = arith.constant 0 : index
    %c0_2 = arith.constant 0 : index
    %1 = vector.load %arg2[%c0_1, %c0_2] : memref<640x128xf32, #tpu.memory_space<vmem>>, vector<640x128xf32>
    %cst = arith.constant dense<0.000000e+00> : vector<32x128xf32>
    %2 = tpu.matmul %0, %1, %cst {dimension_numbers = #tpu.dot_dimension_numbers<[1], [0], [0], [1], [0, 0, 1, 1], [], []>} : vector<32x640xf32>, vector<640x128xf32>, vector<32x128xf32> -> vector<32x128xf32>
    %c0_3 = arith.constant 0 : index
    %c0_4 = arith.constant 0 : index
    %3 = vector.load %arg3[%c0_3, %c0_4] : memref<1x128xf32, #tpu.memory_space<vmem>>, vector<1x128xf32>
    %4 = vector.broadcast %3 : vector<1x128xf32> to vector<32x128xf32>
    %5 = arith.addf %2, %4 : vector<32x128xf32>
    %cst_5 = arith.constant 0.000000e+00 : f32
    %6 = vector.broadcast %cst_5 : f32 to vector<32x128xf32>
    %7 = arith.maximumf %5, %6 : vector<32x128xf32>
    %c0_6 = arith.constant 0 : index
    %c0_7 = arith.constant 0 : index
    %8 = vector.load %arg4[%c0_6, %c0_7] : memref<32x128xf32, #tpu.memory_space<vmem>>, vector<32x128xf32>
    tpu.vector_store %arg4[%c0_6, %c0_7], %7 {strides = array<i32>} : memref<32x128xf32, #tpu.memory_space<vmem>>, vector<32x128xf32>,
    return
  }
  func.func @transform_0(%arg0: i32) -> (i32, i32) {
    %c0_i32 = arith.constant 0 : i32
    %c0_i32_0 = arith.constant 0 : i32
    return %arg0, %c0_i32 : i32, i32
  }
  func.func @transform_1(%arg0: i32) -> (i32, i32) {
    %c0_i32 = arith.constant 0 : i32
    %c0_i32_0 = arith.constant 0 : i32
    %c0_i32_1 = arith.constant 0 : i32
    return %c0_i32, %c0_i32_0 : i32, i32
  }
  func.func @transform_2(%arg0: i32) -> (i32, i32) {
    %c0_i32 = arith.constant 0 : i32
    %c0_i32_0 = arith.constant 0 : i32
    %c0_i32_1 = arith.constant 0 : i32
    return %c0_i32, %c0_i32_0 : i32, i32
  }
  func.func @transform_3(%arg0: i32) -> (i32, i32) {
    %c0_i32 = arith.constant 0 : i32
    %c0_i32_0 = arith.constant 0 : i32
    return %arg0, %c0_i32 : i32, i32
  }
}

module attributes {stable_mosaic.version = 11 : i64} {
  func.func @_conv_mm_ds_res_kernel(%arg0: i32, %arg1: memref<32x1152xf32, #tpu.memory_space<vmem>>, %arg2: memref<1152x128xf32, #tpu.memory_space<vmem>>, %arg3: memref<1x128xf32, #tpu.memory_space<vmem>>, %arg4: memref<32x64xf32, #tpu.memory_space<vmem>>, %arg5: memref<64x128xf32, #tpu.memory_space<vmem>>, %arg6: memref<1x128xf32, #tpu.memory_space<vmem>>, %arg7: memref<32x128xf32, #tpu.memory_space<vmem>>) attributes {dimension_semantics = [#tpu.dimension_semantics<parallel>], iteration_bounds = array<i64: 1>, scalar_prefetch = 0 : i64, scratch_operands = 0 : i64, tpu.core_type = #tpu.core_type<tc>, window_params = [{transform_indices = @transform_0, window_bounds = array<i64: 32, 1152>}, {pipeline_mode = #tpu.pipeline_mode<synchronous>, transform_indices = @transform_1, window_bounds = array<i64: 1152, 128>}, {pipeline_mode = #tpu.pipeline_mode<synchronous>, transform_indices = @transform_2, window_bounds = array<i64: 1, 128>}, {transform_indices = @transform_3, window_bounds = array<i64: 32, 64>}, {pipeline_mode = #tpu.pipeline_mode<synchronous>, transform_indices = @transform_4, window_bounds = array<i64: 64, 128>}, {pipeline_mode = #tpu.pipeline_mode<synchronous>, transform_indices = @transform_5, window_bounds = array<i64: 1, 128>}, {transform_indices = @transform_6, window_bounds = array<i64: 32, 128>}]} {
    %c0 = arith.constant 0 : index
    %c0_0 = arith.constant 0 : index
    %0 = vector.load %arg1[%c0, %c0_0] : memref<32x1152xf32, #tpu.memory_space<vmem>>, vector<32x1152xf32>
    %c0_1 = arith.constant 0 : index
    %c0_2 = arith.constant 0 : index
    %1 = vector.load %arg2[%c0_1, %c0_2] : memref<1152x128xf32, #tpu.memory_space<vmem>>, vector<1152x128xf32>
    %cst = arith.constant dense<0.000000e+00> : vector<32x128xf32>
    %2 = tpu.matmul %0, %1, %cst {dimension_numbers = #tpu.dot_dimension_numbers<[1], [0], [0], [1], [0, 0, 1, 1], [], []>} : vector<32x1152xf32>, vector<1152x128xf32>, vector<32x128xf32> -> vector<32x128xf32>
    %c0_3 = arith.constant 0 : index
    %c0_4 = arith.constant 0 : index
    %3 = vector.load %arg3[%c0_3, %c0_4] : memref<1x128xf32, #tpu.memory_space<vmem>>, vector<1x128xf32>
    %4 = vector.broadcast %3 : vector<1x128xf32> to vector<32x128xf32>
    %5 = arith.addf %2, %4 : vector<32x128xf32>
    %cst_5 = arith.constant 0.000000e+00 : f32
    %6 = vector.broadcast %cst_5 : f32 to vector<32x128xf32>
    %7 = arith.maximumf %5, %6 : vector<32x128xf32>
    %c0_6 = arith.constant 0 : index
    %c0_7 = arith.constant 0 : index
    %8 = vector.load %arg4[%c0_6, %c0_7] : memref<32x64xf32, #tpu.memory_space<vmem>>, vector<32x64xf32>
    %c0_8 = arith.constant 0 : index
    %c0_9 = arith.constant 0 : index
    %9 = vector.load %arg5[%c0_8, %c0_9] : memref<64x128xf32, #tpu.memory_space<vmem>>, vector<64x128xf32>
    %cst_10 = arith.constant dense<0.000000e+00> : vector<32x128xf32>
    %10 = tpu.matmul %8, %9, %cst_10 {dimension_numbers = #tpu.dot_dimension_numbers<[1], [0], [0], [1], [0, 0, 1, 1], [], []>} : vector<32x64xf32>, vector<64x128xf32>, vector<32x128xf32> -> vector<32x128xf32>
    %c0_11 = arith.constant 0 : index
    %c0_12 = arith.constant 0 : index
    %11 = vector.load %arg6[%c0_11, %c0_12] : memref<1x128xf32, #tpu.memory_space<vmem>>, vector<1x128xf32>
    %12 = vector.broadcast %11 : vector<1x128xf32> to vector<32x128xf32>
    %13 = arith.addf %10, %12 : vector<32x128xf32>
    %14 = arith.addf %7, %13 : vector<32x128xf32>
    %cst_13 = arith.constant 0.000000e+00 : f32
    %15 = vector.broadcast %cst_13 : f32 to vector<32x128xf32>
    %16 = arith.maximumf %14, %15 : vector<32x128xf32>
    %c0_14 = arith.constant 0 : index
    %c0_15 = arith.constant 0 : index
    %17 = vector.load %arg7[%c0_14, %c0_15] : memref<32x128xf32, #tpu.memory_space<vmem>>, vector<32x128xf32>
    tpu.vector_store %arg7[%c0_14, %c0_15], %16 {strides = array<i32>} : memref<32x128xf32, #tpu.memory_space<vmem>>, vector<32x128xf32>,
    return
  }
  func.func @transform_0(%arg0: i32) -> (i32, i32) {
    %c0_i32 = arith.constant 0 : i32
    %c0_i32_0 = arith.constant 0 : i32
    return %arg0, %c0_i32 : i32, i32
  }
  func.func @transform_1(%arg0: i32) -> (i32, i32) {
    %c0_i32 = arith.constant 0 : i32
    %c0_i32_0 = arith.constant 0 : i32
    %c0_i32_1 = arith.constant 0 : i32
    return %c0_i32, %c0_i32_0 : i32, i32
  }
  func.func @transform_2(%arg0: i32) -> (i32, i32) {
    %c0_i32 = arith.constant 0 : i32
    %c0_i32_0 = arith.constant 0 : i32
    %c0_i32_1 = arith.constant 0 : i32
    return %c0_i32, %c0_i32_0 : i32, i32
  }
  func.func @transform_3(%arg0: i32) -> (i32, i32) {
    %c0_i32 = arith.constant 0 : i32
    %c0_i32_0 = arith.constant 0 : i32
    return %arg0, %c0_i32 : i32, i32
  }
  func.func @transform_4(%arg0: i32) -> (i32, i32) {
    %c0_i32 = arith.constant 0 : i32
    %c0_i32_0 = arith.constant 0 : i32
    %c0_i32_1 = arith.constant 0 : i32
    return %c0_i32, %c0_i32_0 : i32, i32
  }
  func.func @transform_5(%arg0: i32) -> (i32, i32) {
    %c0_i32 = arith.constant 0 : i32
    %c0_i32_0 = arith.constant 0 : i32
    %c0_i32_1 = arith.constant 0 : i32
    return %c0_i32, %c0_i32_0 : i32, i32
  }
  func.func @transform_6(%arg0: i32) -> (i32, i32) {
    %c0_i32 = arith.constant 0 : i32
    %c0_i32_0 = arith.constant 0 : i32
    return %arg0, %c0_i32 : i32, i32
  }
}

</mosaic_0001>

<llo_original>
// kernel: ipt_head_encoder.5
$region0: #{ipt_head_encoder.5}
  #allocation0 [shape = 'u32[]', space=smem, size = 0x4, offset = 0x4, fixed_abs, tag = 'smem constant byte address 0x4 - core index']
  #allocation1 [shape = 'u32[144,128]{1,0:T(1,128)}', space=vmem, size = 0x12000, scoped, tag = 'internal scratch']
  %s0 = inlined_call_operand.vmem [shape: f32[512,256], index: 0, kind: input, shape index: {}]
  %s1 = inlined_call_operand.vmem [shape: f32[256,64], index: 1, kind: input, shape index: {}]
  %s2 = inlined_call_operand.vmem [shape: f32[1,64], index: 2, kind: input, shape index: {}]
  %s3 = inlined_call_operand.vmem [shape: f32[512,64], index: 3, kind: output, shape index: {}]
  %s4 = sld [smem:[#allocation0]]
  $region22: #{ipt_head_encoder.5} parent=0
    _
  %s6 = ssub.s32 1, %s4
  %s7 = scalar_select 0, %s6, %s4
  // Predicated region
  $region2: #{ipt_head_encoder.5} parent=0 // pred_check
    _
  $region3: #{ipt_head_encoder.5} parent=0 // pred_check_branch
    %9 = sbr.rel (0) target = $region5
  $region4: #{ipt_head_encoder.5} parent=0 // pred_region
    _
  $region5: #{ipt_head_encoder.5} parent=0 // pred_fallthru
    _
  // Predicated region
  $region6: #{ipt_head_encoder.5} parent=0 // pred_check
    _
  $region7: #{ipt_head_encoder.5} parent=0 // pred_check_branch
    %11 = sbr.rel (0) target = $region9
  $region8: #{ipt_head_encoder.5} parent=0 // pred_region
    _
  $region9: #{ipt_head_encoder.5} parent=0 // pred_fallthru
    _
  // Predicated region
  $region10: #{ipt_head_encoder.5} parent=0 // pred_check
    _
  $region11: #{ipt_head_encoder.5} parent=0 // pred_check_branch
    %13 = sbr.rel (0) target = $region13
  $region12: #{ipt_head_encoder.5} parent=0 // pred_region
    _
  $region13: #{ipt_head_encoder.5} parent=0 // pred_fallthru
    _
  %v14 = vld [vmem:[%s0] sm:$0xff]
  %v15 = vld [vmem:[%s0 + $0x8] sm:$0xff]
  %v16 = vld [vmem:[%s0 + $0x10] sm:$0xff]
  %v17 = vld [vmem:[%s0 + $0x18] sm:$0xff]
  %v18 = vld [vmem:[%s0 + $0x20] sm:$0xff]
  %v19 = vld [vmem:[%s0 + $0x28] sm:$0xff]
  %v20 = vld [vmem:[%s0 + $0x30] sm:$0xff]
  %v21 = vld [vmem:[%s0 + $0x38] sm:$0xff]
  %v22 = vld [vmem:[%s0 + $0x40] sm:$0xff]
  %v23 = vld [vmem:[%s0 + $0x48] sm:$0xff]
  %v24 = vld [vmem:[%s0 + $0x50] sm:$0xff]
  %v25 = vld [vmem:[%s0 + $0x58] sm:$0xff]
  %v26 = vld [vmem:[%s0 + $0x60] sm:$0xff]
  %v27 = vld [vmem:[%s0 + $0x68] sm:$0xff]
  %v28 = vld [vmem:[%s0 + $0x70] sm:$0xff]
  %v29 = vld [vmem:[%s0 + $0x78] sm:$0xff]
  %v30 = vld [vmem:[%s0 + $0x80] sm:$0xff]
  %v31 = vld [vmem:[%s0 + $0x88] sm:$0xff]
  %v32 = vld [vmem:[%s0 + $0x90] sm:$0xff]
  %v33 = vld [vmem:[%s0 + $0x98] sm:$0xff]
  %v34 = vld [vmem:[%s0 + $0xa0] sm:$0xff]
  %v35 = vld [vmem:[%s0 + $0xa8] sm:$0xff]
  %v36 = vld [vmem:[%s0 + $0xb0] sm:$0xff]
  %v37 = vld [vmem:[%s0 + $0xb8] sm:$0xff]
  %v38 = vld [vmem:[%s0 + $0xc0] sm:$0xff]
  %v39 = vld [vmem:[%s0 + $0xc8] sm:$0xff]
  %v40 = vld [vmem:[%s0 + $0xd0] sm:$0xff]
  %v41 = vld [vmem:[%s0 + $0xd8] sm:$0xff]
  %v42 = vld [vmem:[%s0 + $0xe0] sm:$0xff]
  %v43 = vld [vmem:[%s0 + $0xe8] sm:$0xff]
  %v44 = vld [vmem:[%s0 + $0xf0] sm:$0xff]
  %v45 = vld [vmem:[%s0 + $0xf8] sm:$0xff]
  %v46 = vld [vmem:[%s0 + $0x100] sm:$0xff]
  %v47 = vld [vmem:[%s0 + $0x108] sm:$0xff]
  %v48 = vld [vmem:[%s0 + $0x110] sm:$0xff]
  %v49 = vld [vmem:[%s0 + $0x118] sm:$0xff]
  %v50 = vld [vmem:[%s0 + $0x120] sm:$0xff]
  %v51 = vld [vmem:[%s0 + $0x128] sm:$0xff]
  %v52 = vld [vmem:[%s0 + $0x130] sm:$0xff]
  %v53 = vld [vmem:[%s0 + $0x138] sm:$0xff]
  %v54 = vld [vmem:[%s0 + $0x140] sm:$0xff]
  %v55 = vld [vmem:[%s0 + $0x148] sm:$0xff]
  %v56 = vld [vmem:[%s0 + $0x150] sm:$0xff]
  %v57 = vld [vmem:[%s0 + $0x158] sm:$0xff]
  %v58 = vld [vmem:[%s0 + $0x160] sm:$0xff]
  %v59 = vld [vmem:[%s0 + $0x168] sm:$0xff]
  %v60 = vld [vmem:[%s0 + $0x170] sm:$0xff]
  %v61 = vld [vmem:[%s0 + $0x178] sm:$0xff]
  %v62 = vld [vmem:[%s0 + $0x180] sm:$0xff]
  %v63 = vld [vmem:[%s0 + $0x188] sm:$0xff]
  %v64 = vld [vmem:[%s0 + $0x190] sm:$0xff]
  %v65 = vld [vmem:[%s0 + $0x198] sm:$0xff]
  %v66 = vld [vmem:[%s0 + $0x1a0] sm:$0xff]
  %v67 = vld [vmem:[%s0 + $0x1a8] sm:$0xff]
  %v68 = vld [vmem:[%s0 + $0x1b0] sm:$0xff]
  %v69 = vld [vmem:[%s0 + $0x1b8] sm:$0xff]
  %v70 = vld [vmem:[%s0 + $0x1c0] sm:$0xff]
  %v71 = vld [vmem:[%s0 + $0x1c8] sm:$0xff]
  %v72 = vld [vmem:[%s0 + $0x1d0] sm:$0xff]
  %v73 = vld [vmem:[%s0 + $0x1d8] sm:$0xff]
  %v74 = vld [vmem:[%s0 + $0x1e0] sm:$0xff]
  %v75 = vld [vmem:[%s0 + $0x1e8] sm:$0xff]
  %v76 = vld [vmem:[%s0 + $0x1f0] sm:$0xff]
  %v77 = vld [vmem:[%s0 + $0x1f8] sm:$0xff]
  %v78 = vld [vmem:[%s0 + $0x200] sm:$0xff]
  %v79 = vld [vmem:[%s0 + $0x208] sm:$0xff]
  %v80 = vld [vmem:[%s0 + $0x210] sm:$0xff]
  %v81 = vld [vmem:[%s0 + $0x218] sm:$0xff]
  %v82 = vld [vmem:[%s0 + $0x220] sm:$0xff]
  %v83 = vld [vmem:[%s0 + $0x228] sm:$0xff]
  %v84 = vld [vmem:[%s0 + $0x230] sm:$0xff]
  %v85 = vld [vmem:[%s0 + $0x238] sm:$0xff]
  %v86 = vld [vmem:[%s0 + $0x240] sm:$0xff]
  %v87 = vld [vmem:[%s0 + $0x248] sm:$0xff]
  %v88 = vld [vmem:[%s0 + $0x250] sm:$0xff]
  %v89 = vld [vmem:[%s0 + $0x258] sm:$0xff]
  %v90 = vld [vmem:[%s0 + $0x260] sm:$0xff]
  %v91 = vld [vmem:[%s0 + $0x268] sm:$0xff]
  %v92 = vld [vmem:[%s0 + $0x270] sm:$0xff]
  %v93 = vld [vmem:[%s0 + $0x278] sm:$0xff]
  %v94 = vld [vmem:[%s0 + $0x280] sm:$0xff]
  %v95 = vld [vmem:[%s0 + $0x288] sm:$0xff]
  %v96 = vld [vmem:[%s0 + $0x290] sm:$0xff]
  %v97 = vld [vmem:[%s0 + $0x298] sm:$0xff]
  %v98 = vld [vmem:[%s0 + $0x2a0] sm:$0xff]
  %v99 = vld [vmem:[%s0 + $0x2a8] sm:$0xff]
  %v100 = vld [vmem:[%s0 + $0x2b0] sm:$0xff]
  %v101 = vld [vmem:[%s0 + $0x2b8] sm:$0xff]
  %v102 = vld [vmem:[%s0 + $0x2c0] sm:$0xff]
  %v103 = vld [vmem:[%s0 + $0x2c8] sm:$0xff]
  %v104 = vld [vmem:[%s0 + $0x2d0] sm:$0xff]
  %v105 = vld [vmem:[%s0 + $0x2d8] sm:$0xff]
  %v106 = vld [vmem:[%s0 + $0x2e0] sm:$0xff]
  %v107 = vld [vmem:[%s0 + $0x2e8] sm:$0xff]
  %v108 = vld [vmem:[%s0 + $0x2f0] sm:$0xff]
  %v109 = vld [vmem:[%s0 + $0x2f8] sm:$0xff]
  %v110 = vld [vmem:[%s0 + $0x300] sm:$0xff]
  %v111 = vld [vmem:[%s0 + $0x308] sm:$0xff]
  %v112 = vld [vmem:[%s0 + $0x310] sm:$0xff]
  %v113 = vld [vmem:[%s0 + $0x318] sm:$0xff]
  %v114 = vld [vmem:[%s0 + $0x320] sm:$0xff]
  %v115 = vld [vmem:[%s0 + $0x328] sm:$0xff]
  %v116 = vld [vmem:[%s0 + $0x330] sm:$0xff]
  %v117 = vld [vmem:[%s0 + $0x338] sm:$0xff]
  %v118 = vld [vmem:[%s0 + $0x340] sm:$0xff]
  %v119 = vld [vmem:[%s0 + $0x348] sm:$0xff]
  %v120 = vld [vmem:[%s0 + $0x350] sm:$0xff]
  %v121 = vld [vmem:[%s0 + $0x358] sm:$0xff]
  %v122 = vld [vmem:[%s0 + $0x360] sm:$0xff]
  %v123 = vld [vmem:[%s0 + $0x368] sm:$0xff]
  %v124 = vld [vmem:[%s0 + $0x370] sm:$0xff]
  %v125 = vld [vmem:[%s0 + $0x378] sm:$0xff]
  %v126 = vld [vmem:[%s0 + $0x380] sm:$0xff]
  %v127 = vld [vmem:[%s0 + $0x388] sm:$0xff]
  %v128 = vld [vmem:[%s0 + $0x390] sm:$0xff]
  %v129 = vld [vmem:[%s0 + $0x398] sm:$0xff]
  %v130 = vld [vmem:[%s0 + $0x3a0] sm:$0xff]
  %v131 = vld [vmem:[%s0 + $0x3a8] sm:$0xff]
  %v132 = vld [vmem:[%s0 + $0x3b0] sm:$0xff]
  %v133 = vld [vmem:[%s0 + $0x3b8] sm:$0xff]
  %v134 = vld [vmem:[%s0 + $0x3c0] sm:$0xff]
  %v135 = vld [vmem:[%s0 + $0x3c8] sm:$0xff]
  %v136 = vld [vmem:[%s0 + $0x3d0] sm:$0xff]
  %v137 = vld [vmem:[%s0 + $0x3d8] sm:$0xff]
  %v138 = vld [vmem:[%s0 + $0x3e0] sm:$0xff]
  %v139 = vld [vmem:[%s0 + $0x3e8] sm:$0xff]
  %v140 = vld [vmem:[%s0 + $0x3f0] sm:$0xff]
  %v141 = vld [vmem:[%s0 + $0x3f8] sm:$0xff]
  %v142 = vld [vmem:[%s1] sm:$0xff]
  %v143 = vld [vmem:[%s1 + $0x8] sm:$0xff]
  %v144 = vld [vmem:[%s1 + $0x10] sm:$0xff]
  %v145 = vld [vmem:[%s1 + $0x18] sm:$0xff]
  %v146 = vld [vmem:[%s1 + $0x20] sm:$0xff]
  %v147 = vld [vmem:[%s1 + $0x28] sm:$0xff]
  %v148 = vld [vmem:[%s1 + $0x30] sm:$0xff]
  %v149 = vld [vmem:[%s1 + $0x38] sm:$0xff]
  %v150 = vld [vmem:[%s1 + $0x40] sm:$0xff]
  %v151 = vld [vmem:[%s1 + $0x48] sm:$0xff]
  %v152 = vld [vmem:[%s1 + $0x50] sm:$0xff]
  %v153 = vld [vmem:[%s1 + $0x58] sm:$0xff]
  %v154 = vld [vmem:[%s1 + $0x60] sm:$0xff]
  %v155 = vld [vmem:[%s1 + $0x68] sm:$0xff]
  %v156 = vld [vmem:[%s1 + $0x70] sm:$0xff]
  %v157 = vld [vmem:[%s1 + $0x78] sm:$0xff]
  %v158 = vld [vmem:[%s1 + $0x80] sm:$0xff]
  %v159 = vld [vmem:[%s1 + $0x88] sm:$0xff]
  %v160 = vld [vmem:[%s1 + $0x90] sm:$0xff]
  %v161 = vld [vmem:[%s1 + $0x98] sm:$0xff]
  %v162 = vld [vmem:[%s1 + $0xa0] sm:$0xff]
  %v163 = vld [vmem:[%s1 + $0xa8] sm:$0xff]
  %v164 = vld [vmem:[%s1 + $0xb0] sm:$0xff]
  %v165 = vld [vmem:[%s1 + $0xb8] sm:$0xff]
  %v166 = vld [vmem:[%s1 + $0xc0] sm:$0xff]
  %v167 = vld [vmem:[%s1 + $0xc8] sm:$0xff]
  %v168 = vld [vmem:[%s1 + $0xd0] sm:$0xff]
  %v169 = vld [vmem:[%s1 + $0xd8] sm:$0xff]
  %v170 = vld [vmem:[%s1 + $0xe0] sm:$0xff]
  %v171 = vld [vmem:[%s1 + $0xe8] sm:$0xff]
  %v172 = vld [vmem:[%s1 + $0xf0] sm:$0xff]
  %v173 = vld [vmem:[%s1 + $0xf8] sm:$0xff]
  %v174 = vld [vmem:[%s2] sm:$0x1]
  %v176 = vlaneseq
  %v177 = vshrl.u32 %v176, 7
  %v178 = vsub.s32 0, %v177
  %v179 = vrot.slane %v174, %v178
  %181 = vmatprep.subr.mxu0 0.0
  %182 = vmatpush1.msra.mxu0 %v142
  %183 = vmatprep.subr.mxu0 0.0
  %184 = vmatpush1.msra.mxu0 %v143
  %185 = vmatprep.subr.mxu0 0.0
  %186 = vmatpush1.msra.mxu0 %v144
  %187 = vmatprep.subr.mxu0 0.0
  %188 = vmatpush1.msra.mxu0 %v145
  %189 = vmatprep.subr.mxu0 0.0
  %190 = vmatpush1.msra.mxu0 %v146
  %191 = vmatprep.subr.mxu0 0.0
  %192 = vmatpush1.msra.mxu0 %v147
  %193 = vmatprep.subr.mxu0 0.0
  %194 = vmatpush1.msra.mxu0 %v148
  %195 = vmatprep.subr.mxu0 0.0
  %196 = vmatpush1.msra.mxu0 %v149
  %197 = vmatprep.subr.mxu0 0.0
  %198 = vmatpush1.msra.mxu0 %v150
  %199 = vmatprep.subr.mxu0 0.0
  %200 = vmatpush1.msra.mxu0 %v151
  %201 = vmatprep.subr.mxu0 0.0
  %202 = vmatpush1.msra.mxu0 %v152
  %203 = vmatprep.subr.mxu0 0.0
  %204 = vmatpush1.msra.mxu0 %v153
  %205 = vmatprep.subr.mxu0 0.0
  %206 = vmatpush1.msra.mxu0 %v154
  %207 = vmatprep.subr.mxu0 0.0
  %208 = vmatpush1.msra.mxu0 %v155
  %209 = vmatprep.subr.mxu0 0.0
  %210 = vmatpush1.msra.mxu0 %v156
  %211 = vmatprep.subr.mxu0 0.0
  %212 = vmatpush1.msra.mxu0 %v157
  %213 = vmatprep.subr.mxu0 0.0
  %214 = vmatpush1.msra.mxu0 %v158
  %215 = vmatprep.subr.mxu0 0.0
  %216 = vmatpush1.msra.mxu0 %v159
  %217 = vmatprep.subr.mxu0 0.0
  %218 = vmatpush1.msra.mxu0 %v160
  %219 = vmatprep.subr.mxu0 0.0
  %220 = vmatpush1.msra.mxu0 %v161
  %221 = vmatprep.subr.mxu0 0.0
  %222 = vmatpush1.msra.mxu0 %v162
  %223 = vmatprep.subr.mxu0 0.0
  %224 = vmatpush1.msra.mxu0 %v163
  %225 = vmatprep.subr.mxu0 0.0
  %226 = vmatpush1.msra.mxu0 %v164
  %227 = vmatprep.subr.mxu0 0.0
  %228 = vmatpush1.msra.mxu0 %v165
  %229 = vmatprep.subr.mxu0 0.0
  %230 = vmatpush1.msra.mxu0 %v166
  %231 = vmatprep.subr.mxu0 0.0
  %232 = vmatpush1.msra.mxu0 %v167
  %233 = vmatprep.subr.mxu0 0.0
  %234 = vmatpush1.msra.mxu0 %v168
  %235 = vmatprep.subr.mxu0 0.0
  %236 = vmatpush1.msra.mxu0 %v169
  %237 = vmatprep.subr.mxu0 0.0
  %238 = vmatpush1.msra.mxu0 %v170
  %239 = vmatprep.subr.mxu0 0.0
  %240 = vmatpush1.msra.mxu0 %v171
  %241 = vmatprep.subr.mxu0 0.0
  %242 = vmatpush1.msra.mxu0 %v172
  %243 = vmatprep.subr.mxu0 0.0
  %244 = vmatpush1.msra.mxu0 %v173
  %245 = vmatprep.mubr.f32.mxu0 %v15
  %246 = vmatmul.mubr.f32.gmra.mrb[0].mxu0 %v14
  %v247 = vpop.f32.mrb[0].mxu0
  %v248 = vadd.f32 %v179, %v247
  %v249 = vpop.f32.mrb[0].mxu0
  %250 = vmatprep.mubr.f32.mxu0 %v17
  %251 = vmatmul.mubr.f32.gmra.mrb[0].mxu0 %v16
  %v252 = vpop.f32.mrb[0].mxu0
  %v253 = vadd.f32 %v179, %v252
  %v254 = vpop.f32.mrb[0].mxu0
  %255 = vmatprep.mubr.f32.mxu0 %v19
  %256 = vmatmul.mubr.f32.gmra.mrb[0].mxu0 %v18
  %v257 = vpop.f32.mrb[0].mxu0
  %v258 = vadd.f32 %v179, %v257
  %v259 = vpop.f32.mrb[0].mxu0
  %260 = vmatprep.mubr.f32.mxu0 %v21
  %261 = vmatmul.mubr.f32.gmra.mrb[0].mxu0 %v20
  %v262 = vpop.f32.mrb[0].mxu0
  %v263 = vadd.f32 %v179, %v262
  %v264 = vpop.f32.mrb[0].mxu0
  %265 = vmatprep.mubr.f32.mxu0 %v23
  %266 = vmatmul.mubr.f32.gmra.mrb[0].mxu0 %v22
  %v267 = vpop.f32.mrb[0].mxu0
  %v268 = vadd.f32 %v179, %v267
  %v269 = vpop.f32.mrb[0].mxu0
  %270 = vmatprep.mubr.f32.mxu0 %v25
  %271 = vmatmul.mubr.f32.gmra.mrb[0].mxu0 %v24
  %v272 = vpop.f32.mrb[0].mxu0
  %v273 = vadd.f32 %v179, %v272
  %v274 = vpop.f32.mrb[0].mxu0
  %275 = vmatprep.mubr.f32.mxu0 %v27
  %276 = vmatmul.mubr.f32.gmra.mrb[0].mxu0 %v26
  %v277 = vpop.f32.mrb[0].mxu0
  %v278 = vadd.f32 %v179, %v277
  %v279 = vpop.f32.mrb[0].mxu0
  %280 = vmatprep.mubr.f32.mxu0 %v29
  %281 = vmatmul.mubr.f32.gmra.mrb[0].mxu0 %v28
  %v282 = vpop.f32.mrb[0].mxu0
  %v283 = vadd.f32 %v179, %v282
  %v284 = vpop.f32.mrb[0].mxu0
  %285 = vmatprep.mubr.f32.mxu0 %v31
  %286 = vmatmul.mubr.f32.gmra.mrb[0].mxu0 %v30
  %v287 = vpop.f32.mrb[0].mxu0
  %v288 = vadd.f32 %v179, %v287
  %v289 = vpop.f32.mrb[0].mxu0
  %290 = vmatprep.mubr.f32.mxu0 %v33
  %291 = vmatmul.mubr.f32.gmra.mrb[0].mxu0 %v32
  %v292 = vpop.f32.mrb[0].mxu0
  %v293 = vadd.f32 %v179, %v292
  %v294 = vpop.f32.mrb[0].mxu0
  %295 = vmatprep.mubr.f32.mxu0 %v35
  %296 = vmatmul.mubr.f32.gmra.mrb[0].mxu0 %v34
  %v297 = vpop.f32.mrb[0].mxu0
  %v298 = vadd.f32 %v179, %v297
  %v299 = vpop.f32.mrb[0].mxu0
  %300 = vmatprep.mubr.f32.mxu0 %v37
  %301 = vmatmul.mubr.f32.gmra.mrb[0].mxu0 %v36
  %v302 = vpop.f32.mrb[0].mxu0
  %v303 = vadd.f32 %v179, %v302
  %v304 = vpop.f32.mrb[0].mxu0
  %305 = vmatprep.mubr.f32.mxu0 %v39
  %306 = vmatmul.mubr.f32.gmra.mrb[0].mxu0 %v38
  %v307 = vpop.f32.mrb[0].mxu0
  %v308 = vadd.f32 %v179, %v307
  %v309 = vpop.f32.mrb[0].mxu0
  %310 = vmatprep.mubr.f32.mxu0 %v41
  %311 = vmatmul.mubr.f32.gmra.mrb[0].mxu0 %v40
  %v312 = vpop.f32.mrb[0].mxu0
  %v313 = vadd.f32 %v179, %v312
  %v314 = vpop.f32.mrb[0].mxu0
  %315 = vmatprep.mubr.f32.mxu0 %v43
  %316 = vmatmul.mubr.f32.gmra.mrb[0].mxu0 %v42
  %v317 = vpop.f32.mrb[0].mxu0
  %v318 = vadd.f32 %v179, %v317
  %v319 = vpop.f32.mrb[0].mxu0
  %320 = vmatprep.mubr.f32.mxu0 %v45
  %321 = vmatmul.mubr.f32.gmra.mrb[0].mxu0 %v44
  %v322 = vpop.f32.mrb[0].mxu0
  %v323 = vadd.f32 %v179, %v322
  %v324 = vpop.f32.mrb[0].mxu0
  %325 = vmatprep.mubr.f32.mxu0 %v47
  %326 = vmatmul.mubr.f32.gmra.mrb[0].mxu0 %v46
  %v327 = vpop.f32.mrb[0].mxu0
  %v328 = vadd.f32 %v179, %v327
  %v329 = vpop.f32.mrb[0].mxu0
  %330 = vmatprep.mubr.f32.mxu0 %v49
  %331 = vmatmul.mubr.f32.gmra.mrb[0].mxu0 %v48
  %v332 = vpop.f32.mrb[0].mxu0
  %v333 = vadd.f32 %v179, %v332
  %v334 = vpop.f32.mrb[0].mxu0
  %335 = vmatprep.mubr.f32.mxu0 %v51
  %336 = vmatmul.mubr.f32.gmra.mrb[0].mxu0 %v50
  %v337 = vpop.f32.mrb[0].mxu0
  %v338 = vadd.f32 %v179, %v337
  %v339 = vpop.f32.mrb[0].mxu0
  %340 = vmatprep.mubr.f32.mxu0 %v53
  %341 = vmatmul.mubr.f32.gmra.mrb[0].mxu0 %v52
  %v342 = vpop.f32.mrb[0].mxu0
  %v343 = vadd.f32 %v179, %v342
  %v344 = vpop.f32.mrb[0].mxu0
  %345 = vmatprep.mubr.f32.mxu0 %v55
  %346 = vmatmul.mubr.f32.gmra.mrb[0].mxu0 %v54
  %v347 = vpop.f32.mrb[0].mxu0
  %v348 = vadd.f32 %v179, %v347
  %v349 = vpop.f32.mrb[0].mxu0
  %350 = vmatprep.mubr.f32.mxu0 %v57
  %351 = vmatmul.mubr.f32.gmra.mrb[0].mxu0 %v56
  %v352 = vpop.f32.mrb[0].mxu0
  %v353 = vadd.f32 %v179, %v352
  %v354 = vpop.f32.mrb[0].mxu0
  %355 = vmatprep.mubr.f32.mxu0 %v59
  %356 = vmatmul.mubr.f32.gmra.mrb[0].mxu0 %v58
  %v357 = vpop.f32.mrb[0].mxu0
  %v358 = vadd.f32 %v179, %v357
  %v359 = vpop.f32.mrb[0].mxu0
  %360 = vmatprep.mubr.f32.mxu0 %v61
  %361 = vmatmul.mubr.f32.gmra.mrb[0].mxu0 %v60
  %v362 = vpop.f32.mrb[0].mxu0
  %v363 = vadd.f32 %v179, %v362
  %v364 = vpop.f32.mrb[0].mxu0
  %365 = vmatprep.mubr.f32.mxu0 %v63
  %366 = vmatmul.mubr.f32.gmra.mrb[0].mxu0 %v62
  %v367 = vpop.f32.mrb[0].mxu0
  %v368 = vadd.f32 %v179, %v367
  %v369 = vpop.f32.mrb[0].mxu0
  %370 = vmatprep.mubr.f32.mxu0 %v65
  %371 = vmatmul.mubr.f32.gmra.mrb[0].mxu0 %v64
  %v372 = vpop.f32.mrb[0].mxu0
  %v373 = vadd.f32 %v179, %v372
  %v374 = vpop.f32.mrb[0].mxu0
  %375 = vmatprep.mubr.f32.mxu0 %v67
  %376 = vmatmul.mubr.f32.gmra.mrb[0].mxu0 %v66
  %v377 = vpop.f32.mrb[0].mxu0
  %v378 = vadd.f32 %v179, %v377
  %v379 = vpop.f32.mrb[0].mxu0
  %380 = vmatprep.mubr.f32.mxu0 %v69
  %381 = vmatmul.mubr.f32.gmra.mrb[0].mxu0 %v68
  %v382 = vpop.f32.mrb[0].mxu0
  %v383 = vadd.f32 %v179, %v382
  %v384 = vpop.f32.mrb[0].mxu0
  %385 = vmatprep.mubr.f32.mxu0 %v71
  %386 = vmatmul.mubr.f32.gmra.mrb[0].mxu0 %v70
  %v387 = vpop.f32.mrb[0].mxu0
  %v388 = vadd.f32 %v179, %v387
  %v389 = vpop.f32.mrb[0].mxu0
  %390 = vmatprep.mubr.f32.mxu0 %v73
  %391 = vmatmul.mubr.f32.gmra.mrb[0].mxu0 %v72
  %v392 = vpop.f32.mrb[0].mxu0
  %v393 = vadd.f32 %v179, %v392
  %v394 = vpop.f32.mrb[0].mxu0
  %395 = vmatprep.mubr.f32.mxu0 %v75
  %396 = vmatmul.mubr.f32.gmra.mrb[0].mxu0 %v74
  %v397 = vpop.f32.mrb[0].mxu0
  %v398 = vadd.f32 %v179, %v397
  %v399 = vpop.f32.mrb[0].mxu0
  %400 = vmatprep.mubr.f32.mxu0 %v77
  %401 = vmatmul.mubr.f32.gmra.mrb[0].mxu0 %v76
  %v402 = vpop.f32.mrb[0].mxu0
  %v403 = vadd.f32 %v179, %v402
  %v404 = vpop.f32.mrb[0].mxu0
  %405 = vmatprep.mubr.f32.mxu0 %v79
  %406 = vmatmul.mubr.f32.gmra.mrb[0].mxu0 %v78
  %v407 = vpop.f32.mrb[0].mxu0
  %v408 = vadd.f32 %v179, %v407
  %v409 = vpop.f32.mrb[0].mxu0
  %410 = vmatprep.mubr.f32.mxu0 %v81
  %411 = vmatmul.mubr.f32.gmra.mrb[0].mxu0 %v80
  %v412 = vpop.f32.mrb[0].mxu0
  %v413 = vadd.f32 %v179, %v412
  %v414 = vpop.f32.mrb[0].mxu0
  %415 = vmatprep.mubr.f32.mxu0 %v83
  %416 = vmatmul.mubr.f32.gmra.mrb[0].mxu0 %v82
  %v417 = vpop.f32.mrb[0].mxu0
  %v418 = vadd.f32 %v179, %v417
  %v419 = vpop.f32.mrb[0].mxu0
  %420 = vmatprep.mubr.f32.mxu0 %v85
  %421 = vmatmul.mubr.f32.gmra.mrb[0].mxu0 %v84
  %v422 = vpop.f32.mrb[0].mxu0
  %v423 = vadd.f32 %v179, %v422
  %v424 = vpop.f32.mrb[0].mxu0
  %425 = vmatprep.mubr.f32.mxu0 %v87
  %426 = vmatmul.mubr.f32.gmra.mrb[0].mxu0 %v86
  %v427 = vpop.f32.mrb[0].mxu0
  %v428 = vadd.f32 %v179, %v427
  %v429 = vpop.f32.mrb[0].mxu0
  %430 = vmatprep.mubr.f32.mxu0 %v89
  %431 = vmatmul.mubr.f32.gmra.mrb[0].mxu0 %v88
  %v432 = vpop.f32.mrb[0].mxu0
  %v433 = vadd.f32 %v179, %v432
  %v434 = vpop.f32.mrb[0].mxu0
  %435 = vmatprep.mubr.f32.mxu0 %v91
  %436 = vmatmul.mubr.f32.gmra.mrb[0].mxu0 %v90
  %v437 = vpop.f32.mrb[0].mxu0
  %v438 = vadd.f32 %v179, %v437
  %v439 = vpop.f32.mrb[0].mxu0
  %440 = vmatprep.mubr.f32.mxu0 %v93
  %441 = vmatmul.mubr.f32.gmra.mrb[0].mxu0 %v92
  %v442 = vpop.f32.mrb[0].mxu0
  %v443 = vadd.f32 %v179, %v442
  %v444 = vpop.f32.mrb[0].mxu0
  %445 = vmatprep.mubr.f32.mxu0 %v95
  %446 = vmatmul.mubr.f32.gmra.mrb[0].mxu0 %v94
  %v447 = vpop.f32.mrb[0].mxu0
  %v448 = vadd.f32 %v179, %v447
  %v449 = vpop.f32.mrb[0].mxu0
  %450 = vmatprep.mubr.f32.mxu0 %v97
  %451 = vmatmul.mubr.f32.gmra.mrb[0].mxu0 %v96
  %v452 = vpop.f32.mrb[0].mxu0
  %v453 = vadd.f32 %v179, %v452
  %v454 = vpop.f32.mrb[0].mxu0
  %455 = vmatprep.mubr.f32.mxu0 %v99
  %456 = vmatmul.mubr.f32.gmra.mrb[0].mxu0 %v98
  %v457 = vpop.f32.mrb[0].mxu0
  %v458 = vadd.f32 %v179, %v457
  %v459 = vpop.f32.mrb[0].mxu0
  %460 = vmatprep.mubr.f32.mxu0 %v101
  %461 = vmatmul.mubr.f32.gmra.mrb[0].mxu0 %v100
  %v462 = vpop.f32.mrb[0].mxu0
  %v463 = vadd.f32 %v179, %v462
  %v464 = vpop.f32.mrb[0].mxu0
  %465 = vmatprep.mubr.f32.mxu0 %v103
  %466 = vmatmul.mubr.f32.gmra.mrb[0].mxu0 %v102
  %v467 = vpop.f32.mrb[0].mxu0
  %v468 = vadd.f32 %v179, %v467
  %v469 = vpop.f32.mrb[0].mxu0
  %470 = vmatprep.mubr.f32.mxu0 %v105
  %471 = vmatmul.mubr.f32.gmra.mrb[0].mxu0 %v104
  %v472 = vpop.f32.mrb[0].mxu0
  %v473 = vadd.f32 %v179, %v472
  %v474 = vpop.f32.mrb[0].mxu0
  %475 = vmatprep.mubr.f32.mxu0 %v107
  %476 = vmatmul.mubr.f32.gmra.mrb[0].mxu0 %v106
  %v477 = vpop.f32.mrb[0].mxu0
  %v478 = vadd.f32 %v179, %v477
  %v479 = vpop.f32.mrb[0].mxu0
  %480 = vmatprep.mubr.f32.mxu0 %v109
  %481 = vmatmul.mubr.f32.gmra.mrb[0].mxu0 %v108
  %v482 = vpop.f32.mrb[0].mxu0
  %v483 = vadd.f32 %v179, %v482
  %v484 = vpop.f32.mrb[0].mxu0
  %485 = vmatprep.mubr.f32.mxu0 %v111
  %486 = vmatmul.mubr.f32.gmra.mrb[0].mxu0 %v110
  %v487 = vpop.f32.mrb[0].mxu0
  %v488 = vadd.f32 %v179, %v487
  %v489 = vpop.f32.mrb[0].mxu0
  %490 = vmatprep.mubr.f32.mxu0 %v113
  %491 = vmatmul.mubr.f32.gmra.mrb[0].mxu0 %v112
  %v492 = vpop.f32.mrb[0].mxu0
  %v493 = vadd.f32 %v179, %v492
  %v494 = vpop.f32.mrb[0].mxu0
  %495 = vmatprep.mubr.f32.mxu0 %v115
  %496 = vmatmul.mubr.f32.gmra.mrb[0].mxu0 %v114
  %v497 = vpop.f32.mrb[0].mxu0
  %v498 = vadd.f32 %v179, %v497
  %v499 = vpop.f32.mrb[0].mxu0
  %500 = vmatprep.mubr.f32.mxu0 %v117
  %501 = vmatmul.mubr.f32.gmra.mrb[0].mxu0 %v116
  %v502 = vpop.f32.mrb[0].mxu0
  %v503 = vadd.f32 %v179, %v502
  %v504 = vpop.f32.mrb[0].mxu0
  %505 = vmatprep.mubr.f32.mxu0 %v119
  %506 = vmatmul.mubr.f32.gmra.mrb[0].mxu0 %v118
  %v507 = vpop.f32.mrb[0].mxu0
  %v508 = vadd.f32 %v179, %v507
  %v509 = vpop.f32.mrb[0].mxu0
  %510 = vmatprep.mubr.f32.mxu0 %v121
  %511 = vmatmul.mubr.f32.gmra.mrb[0].mxu0 %v120
  %v512 = vpop.f32.mrb[0].mxu0
  %v513 = vadd.f32 %v179, %v512
  %v514 = vpop.f32.mrb[0].mxu0
  %515 = vmatprep.mubr.f32.mxu0 %v123
  %516 = vmatmul.mubr.f32.gmra.mrb[0].mxu0 %v122
  %v517 = vpop.f32.mrb[0].mxu0
  %v518 = vadd.f32 %v179, %v517
  %v519 = vpop.f32.mrb[0].mxu0
  %520 = vmatprep.mubr.f32.mxu0 %v125
  %521 = vmatmul.mubr.f32.gmra.mrb[0].mxu0 %v124
  %v522 = vpop.f32.mrb[0].mxu0
  %v523 = vadd.f32 %v179, %v522
  %v524 = vpop.f32.mrb[0].mxu0
  %525 = vmatprep.mubr.f32.mxu0 %v127
  %526 = vmatmul.mubr.f32.gmra.mrb[0].mxu0 %v126
  %v527 = vpop.f32.mrb[0].mxu0
  %v528 = vadd.f32 %v179, %v527
  %v529 = vpop.f32.mrb[0].mxu0
  %530 = vmatprep.mubr.f32.mxu0 %v129
  %531 = vmatmul.mubr.f32.gmra.mrb[0].mxu0 %v128
  %v532 = vpop.f32.mrb[0].mxu0
  %v533 = vadd.f32 %v179, %v532
  %v534 = vpop.f32.mrb[0].mxu0
  %535 = vmatprep.mubr.f32.mxu0 %v131
  %536 = vmatmul.mubr.f32.gmra.mrb[0].mxu0 %v130
  %v537 = vpop.f32.mrb[0].mxu0
  %v538 = vadd.f32 %v179, %v537
  %v539 = vpop.f32.mrb[0].mxu0
  %540 = vmatprep.mubr.f32.mxu0 %v133
  %541 = vmatmul.mubr.f32.gmra.mrb[0].mxu0 %v132
  %v542 = vpop.f32.mrb[0].mxu0
  %v543 = vadd.f32 %v179, %v542
  %v544 = vpop.f32.mrb[0].mxu0
  %545 = vmatprep.mubr.f32.mxu0 %v135
  %546 = vmatmul.mubr.f32.gmra.mrb[0].mxu0 %v134
  %v547 = vpop.f32.mrb[0].mxu0
  %v548 = vadd.f32 %v179, %v547
  %v549 = vpop.f32.mrb[0].mxu0
  %550 = vmatprep.mubr.f32.mxu0 %v137
  %551 = vmatmul.mubr.f32.gmra.mrb[0].mxu0 %v136
  %v552 = vpop.f32.mrb[0].mxu0
  %v553 = vadd.f32 %v179, %v552
  %v554 = vpop.f32.mrb[0].mxu0
  %555 = vmatprep.mubr.f32.mxu0 %v139
  %556 = vmatmul.mubr.f32.gmra.mrb[0].mxu0 %v138
  %v557 = vpop.f32.mrb[0].mxu0
  %v558 = vadd.f32 %v179, %v557
  %v559 = vpop.f32.mrb[0].mxu0
  %560 = vmatprep.mubr.f32.mxu0 %v141
  %561 = vmatmul.mubr.f32.gmra.mrb[0].mxu0 %v140
  %v562 = vpop.f32.mrb[0].mxu0
  %v563 = vadd.f32 %v179, %v562
  %v564 = vpop.f32.mrb[0].mxu0
  %565 = vdwg.mxu0
  %v566 = vmax.f32 %v248, 0.0
  %v567 = vmax.f32 %v253, 0.0
  %v568 = vmax.f32 %v258, 0.0
  %v569 = vmax.f32 %v263, 0.0
  %v570 = vmax.f32 %v268, 0.0
  %v571 = vmax.f32 %v273, 0.0
  %v572 = vmax.f32 %v278, 0.0
  %v573 = vmax.f32 %v283, 0.0
  %v574 = vmax.f32 %v288, 0.0
  %v575 = vmax.f32 %v293, 0.0
  %v576 = vmax.f32 %v298, 0.0
  %v577 = vmax.f32 %v303, 0.0
  %v578 = vmax.f32 %v308, 0.0
  %v579 = vmax.f32 %v313, 0.0
  %v580 = vmax.f32 %v318, 0.0
  %v581 = vmax.f32 %v323, 0.0
  %v582 = vmax.f32 %v328, 0.0
  %v583 = vmax.f32 %v333, 0.0
  %v584 = vmax.f32 %v338, 0.0
  %v585 = vmax.f32 %v343, 0.0
  %v586 = vmax.f32 %v348, 0.0
  %v587 = vmax.f32 %v353, 0.0
  %v588 = vmax.f32 %v358, 0.0
  %v589 = vmax.f32 %v363, 0.0
  %v590 = vmax.f32 %v368, 0.0
  %v591 = vmax.f32 %v373, 0.0
  %v592 = vmax.f32 %v378, 0.0
  %v593 = vmax.f32 %v383, 0.0
  %v594 = vmax.f32 %v388, 0.0
  %v595 = vmax.f32 %v393, 0.0
  %v596 = vmax.f32 %v398, 0.0
  %v597 = vmax.f32 %v403, 0.0
  %v598 = vmax.f32 %v408, 0.0
  %v599 = vmax.f32 %v413, 0.0
  %v600 = vmax.f32 %v418, 0.0
  %v601 = vmax.f32 %v423, 0.0
  %v602 = vmax.f32 %v428, 0.0
  %v603 = vmax.f32 %v433, 0.0
  %v604 = vmax.f32 %v438, 0.0
  %v605 = vmax.f32 %v443, 0.0
  %v606 = vmax.f32 %v448, 0.0
  %v607 = vmax.f32 %v453, 0.0
  %v608 = vmax.f32 %v458, 0.0
  %v609 = vmax.f32 %v463, 0.0
  %v610 = vmax.f32 %v468, 0.0
  %v611 = vmax.f32 %v473, 0.0
  %v612 = vmax.f32 %v478, 0.0
  %v613 = vmax.f32 %v483, 0.0
  %v614 = vmax.f32 %v488, 0.0
  %v615 = vmax.f32 %v493, 0.0
  %v616 = vmax.f32 %v498, 0.0
  %v617 = vmax.f32 %v503, 0.0
  %v618 = vmax.f32 %v508, 0.0
  %v619 = vmax.f32 %v513, 0.0
  %v620 = vmax.f32 %v518, 0.0
  %v621 = vmax.f32 %v523, 0.0
  %v622 = vmax.f32 %v528, 0.0
  %v623 = vmax.f32 %v533, 0.0
  %v624 = vmax.f32 %v538, 0.0
  %v625 = vmax.f32 %v543, 0.0
  %v626 = vmax.f32 %v548, 0.0
  %v627 = vmax.f32 %v553, 0.0
  %v628 = vmax.f32 %v558, 0.0
  %v629 = vmax.f32 %v563, 0.0
  %vm630 = vcmask 523264
  %631 = vst.msk [vmem:[%s3] sm:$0xff] %vm630, %v566
  %632 = vst.msk [vmem:[%s3 + $0x8] sm:$0xff] %vm630, %v567
  %633 = vst.msk [vmem:[%s3 + $0x10] sm:$0xff] %vm630, %v568
  %634 = vst.msk [vmem:[%s3 + $0x18] sm:$0xff] %vm630, %v569
  %635 = vst.msk [vmem:[%s3 + $0x20] sm:$0xff] %vm630, %v570
  %636 = vst.msk [vmem:[%s3 + $0x28] sm:$0xff] %vm630, %v571
  %637 = vst.msk [vmem:[%s3 + $0x30] sm:$0xff] %vm630, %v572
  %638 = vst.msk [vmem:[%s3 + $0x38] sm:$0xff] %vm630, %v573
  %639 = vst.msk [vmem:[%s3 + $0x40] sm:$0xff] %vm630, %v574
  %640 = vst.msk [vmem:[%s3 + $0x48] sm:$0xff] %vm630, %v575
  %641 = vst.msk [vmem:[%s3 + $0x50] sm:$0xff] %vm630, %v576
  %642 = vst.msk [vmem:[%s3 + $0x58] sm:$0xff] %vm630, %v577
  %643 = vst.msk [vmem:[%s3 + $0x60] sm:$0xff] %vm630, %v578
  %644 = vst.msk [vmem:[%s3 + $0x68] sm:$0xff] %vm630, %v579
  %645 = vst.msk [vmem:[%s3 + $0x70] sm:$0xff] %vm630, %v580
  %646 = vst.msk [vmem:[%s3 + $0x78] sm:$0xff] %vm630, %v581
  %647 = vst.msk [vmem:[%s3 + $0x80] sm:$0xff] %vm630, %v582
  %648 = vst.msk [vmem:[%s3 + $0x88] sm:$0xff] %vm630, %v583
  %649 = vst.msk [vmem:[%s3 + $0x90] sm:$0xff] %vm630, %v584
  %650 = vst.msk [vmem:[%s3 + $0x98] sm:$0xff] %vm630, %v585
  %651 = vst.msk [vmem:[%s3 + $0xa0] sm:$0xff] %vm630, %v586
  %652 = vst.msk [vmem:[%s3 + $0xa8] sm:$0xff] %vm630, %v587
  %653 = vst.msk [vmem:[%s3 + $0xb0] sm:$0xff] %vm630, %v588
  %654 = vst.msk [vmem:[%s3 + $0xb8] sm:$0xff] %vm630, %v589
  %655 = vst.msk [vmem:[%s3 + $0xc0] sm:$0xff] %vm630, %v590
  %656 = vst.msk [vmem:[%s3 + $0xc8] sm:$0xff] %vm630, %v591
  %657 = vst.msk [vmem:[%s3 + $0xd0] sm:$0xff] %vm630, %v592
  %658 = vst.msk [vmem:[%s3 + $0xd8] sm:$0xff] %vm630, %v593
  %659 = vst.msk [vmem:[%s3 + $0xe0] sm:$0xff] %vm630, %v594
  %660 = vst.msk [vmem:[%s3 + $0xe8] sm:$0xff] %vm630, %v595
  %661 = vst.msk [vmem:[%s3 + $0xf0] sm:$0xff] %vm630, %v596
  %662 = vst.msk [vmem:[%s3 + $0xf8] sm:$0xff] %vm630, %v597
  %663 = vst.msk [vmem:[%s3 + $0x100] sm:$0xff] %vm630, %v598
  %664 = vst.msk [vmem:[%s3 + $0x108] sm:$0xff] %vm630, %v599
  %665 = vst.msk [vmem:[%s3 + $0x110] sm:$0xff] %vm630, %v600
  %666 = vst.msk [vmem:[%s3 + $0x118] sm:$0xff] %vm630, %v601
  %667 = vst.msk [vmem:[%s3 + $0x120] sm:$0xff] %vm630, %v602
  %668 = vst.msk [vmem:[%s3 + $0x128] sm:$0xff] %vm630, %v603
  %669 = vst.msk [vmem:[%s3 + $0x130] sm:$0xff] %vm630, %v604
  %670 = vst.msk [vmem:[%s3 + $0x138] sm:$0xff] %vm630, %v605
  %671 = vst.msk [vmem:[%s3 + $0x140] sm:$0xff] %vm630, %v606
  %672 = vst.msk [vmem:[%s3 + $0x148] sm:$0xff] %vm630, %v607
  %673 = vst.msk [vmem:[%s3 + $0x150] sm:$0xff] %vm630, %v608
  %674 = vst.msk [vmem:[%s3 + $0x158] sm:$0xff] %vm630, %v609
  %675 = vst.msk [vmem:[%s3 + $0x160] sm:$0xff] %vm630, %v610
  %676 = vst.msk [vmem:[%s3 + $0x168] sm:$0xff] %vm630, %v611
  %677 = vst.msk [vmem:[%s3 + $0x170] sm:$0xff] %vm630, %v612
  %678 = vst.msk [vmem:[%s3 + $0x178] sm:$0xff] %vm630, %v613
  %679 = vst.msk [vmem:[%s3 + $0x180] sm:$0xff] %vm630, %v614
  %680 = vst.msk [vmem:[%s3 + $0x188] sm:$0xff] %vm630, %v615
  %681 = vst.msk [vmem:[%s3 + $0x190] sm:$0xff] %vm630, %v616
  %682 = vst.msk [vmem:[%s3 + $0x198] sm:$0xff] %vm630, %v617
  %683 = vst.msk [vmem:[%s3 + $0x1a0] sm:$0xff] %vm630, %v618
  %684 = vst.msk [vmem:[%s3 + $0x1a8] sm:$0xff] %vm630, %v619
  %685 = vst.msk [vmem:[%s3 + $0x1b0] sm:$0xff] %vm630, %v620
  %686 = vst.msk [vmem:[%s3 + $0x1b8] sm:$0xff] %vm630, %v621
  %687 = vst.msk [vmem:[%s3 + $0x1c0] sm:$0xff] %vm630, %v622
  %688 = vst.msk [vmem:[%s3 + $0x1c8] sm:$0xff] %vm630, %v623
  %689 = vst.msk [vmem:[%s3 + $0x1d0] sm:$0xff] %vm630, %v624
  %690 = vst.msk [vmem:[%s3 + $0x1d8] sm:$0xff] %vm630, %v625
  %691 = vst.msk [vmem:[%s3 + $0x1e0] sm:$0xff] %vm630, %v626
  %692 = vst.msk [vmem:[%s3 + $0x1e8] sm:$0xff] %vm630, %v627
  %693 = vst.msk [vmem:[%s3 + $0x1f0] sm:$0xff] %vm630, %v628
  %694 = vst.msk [vmem:[%s3 + $0x1f8] sm:$0xff] %vm630, %v629
  // Predicated region
  $region14: #{ipt_head_encoder.5} parent=0 // pred_check
    _
  $region15: #{ipt_head_encoder.5} parent=0 // pred_check_branch
    %696 = sbr.rel (0) target = $region17
  $region16: #{ipt_head_encoder.5} parent=0 // pred_region
    _
  $region17: #{ipt_head_encoder.5} parent=0 // pred_fallthru
    _
  // Predicated region
  $region18: #{ipt_head_encoder.5} parent=0 // pred_check
    _
  $region19: #{ipt_head_encoder.5} parent=0 // pred_check_branch
    %698 = sbr.rel (0) target = $region21
  $region20: #{ipt_head_encoder.5} parent=0 // pred_region
    _
  $region21: #{ipt_head_encoder.5} parent=0 // pred_fallthru
    _

// kernel: ipt_head_encoder.6
$region0: #{ipt_head_encoder.6}
  #allocation0 [shape = 'u32[]', space=smem, size = 0x4, offset = 0x4, fixed_abs, tag = 'smem constant byte address 0x4 - core index']
  #allocation1 [shape = 'u32[144,128]{1,0:T(1,128)}', space=vmem, size = 0x12000, scoped, tag = 'internal scratch']
  %s0 = inlined_call_operand.vmem [shape: f32[128,640], index: 0, kind: input, shape index: {}]
  %s1 = inlined_call_operand.vmem [shape: f32[640,64], index: 1, kind: input, shape index: {}]
  %s2 = inlined_call_operand.vmem [shape: f32[1,64], index: 2, kind: input, shape index: {}]
  %s3 = inlined_call_operand.vmem [shape: f32[128,64], index: 3, kind: output, shape index: {}]
  %s4 = sld [smem:[#allocation0]]
  $region22: #{ipt_head_encoder.6} parent=0
    _
  %s6 = ssub.s32 1, %s4
  %s7 = scalar_select 0, %s6, %s4
  // Predicated region
  $region2: #{ipt_head_encoder.6} parent=0 // pred_check
    _
  $region3: #{ipt_head_encoder.6} parent=0 // pred_check_branch
    %9 = sbr.rel (0) target = $region5
  $region4: #{ipt_head_encoder.6} parent=0 // pred_region
    _
  $region5: #{ipt_head_encoder.6} parent=0 // pred_fallthru
    _
  // Predicated region
  $region6: #{ipt_head_encoder.6} parent=0 // pred_check
    _
  $region7: #{ipt_head_encoder.6} parent=0 // pred_check_branch
    %11 = sbr.rel (0) target = $region9
  $region8: #{ipt_head_encoder.6} parent=0 // pred_region
    _
  $region9: #{ipt_head_encoder.6} parent=0 // pred_fallthru
    _
  // Predicated region
  $region10: #{ipt_head_encoder.6} parent=0 // pred_check
    _
  $region11: #{ipt_head_encoder.6} parent=0 // pred_check_branch
    %13 = sbr.rel (0) target = $region13
  $region12: #{ipt_head_encoder.6} parent=0 // pred_region
    _
  $region13: #{ipt_head_encoder.6} parent=0 // pred_fallthru
    _
  %v14 = vld [vmem:[%s0] sm:$0xff]
  %v15 = vld [vmem:[%s0 + $0x8] sm:$0xff]
  %v16 = vld [vmem:[%s0 + $0x10] sm:$0xff]
  %v17 = vld [vmem:[%s0 + $0x18] sm:$0xff]
  %v18 = vld [vmem:[%s0 + $0x20] sm:$0xff]
  %v19 = vld [vmem:[%s0 + $0x28] sm:$0xff]
  %v20 = vld [vmem:[%s0 + $0x30] sm:$0xff]
  %v21 = vld [vmem:[%s0 + $0x38] sm:$0xff]
  %v22 = vld [vmem:[%s0 + $0x40] sm:$0xff]
  %v23 = vld [vmem:[%s0 + $0x48] sm:$0xff]
  %v24 = vld [vmem:[%s0 + $0x50] sm:$0xff]
  %v25 = vld [vmem:[%s0 + $0x58] sm:$0xff]
  %v26 = vld [vmem:[%s0 + $0x60] sm:$0xff]
  %v27 = vld [vmem:[%s0 + $0x68] sm:$0xff]
  %v28 = vld [vmem:[%s0 + $0x70] sm:$0xff]
  %v29 = vld [vmem:[%s0 + $0x78] sm:$0xff]
  %v30 = vld [vmem:[%s0 + $0x80] sm:$0xff]
  %v31 = vld [vmem:[%s0 + $0x88] sm:$0xff]
  %v32 = vld [vmem:[%s0 + $0x90] sm:$0xff]
  %v33 = vld [vmem:[%s0 + $0x98] sm:$0xff]
  %v34 = vld [vmem:[%s0 + $0xa0] sm:$0xff]
  %v35 = vld [vmem:[%s0 + $0xa8] sm:$0xff]
  %v36 = vld [vmem:[%s0 + $0xb0] sm:$0xff]
  %v37 = vld [vmem:[%s0 + $0xb8] sm:$0xff]
  %v38 = vld [vmem:[%s0 + $0xc0] sm:$0xff]
  %v39 = vld [vmem:[%s0 + $0xc8] sm:$0xff]
  %v40 = vld [vmem:[%s0 + $0xd0] sm:$0xff]
  %v41 = vld [vmem:[%s0 + $0xd8] sm:$0xff]
  %v42 = vld [vmem:[%s0 + $0xe0] sm:$0xff]
  %v43 = vld [vmem:[%s0 + $0xe8] sm:$0xff]
  %v44 = vld [vmem:[%s0 + $0xf0] sm:$0xff]
  %v45 = vld [vmem:[%s0 + $0xf8] sm:$0xff]
  %v46 = vld [vmem:[%s0 + $0x100] sm:$0xff]
  %v47 = vld [vmem:[%s0 + $0x108] sm:$0xff]
  %v48 = vld [vmem:[%s0 + $0x110] sm:$0xff]
  %v49 = vld [vmem:[%s0 + $0x118] sm:$0xff]
  %v50 = vld [vmem:[%s0 + $0x120] sm:$0xff]
  %v51 = vld [vmem:[%s0 + $0x128] sm:$0xff]
  %v52 = vld [vmem:[%s0 + $0x130] sm:$0xff]
  %v53 = vld [vmem:[%s0 + $0x138] sm:$0xff]
  %v54 = vld [vmem:[%s0 + $0x140] sm:$0xff]
  %v55 = vld [vmem:[%s0 + $0x148] sm:$0xff]
  %v56 = vld [vmem:[%s0 + $0x150] sm:$0xff]
  %v57 = vld [vmem:[%s0 + $0x158] sm:$0xff]
  %v58 = vld [vmem:[%s0 + $0x160] sm:$0xff]
  %v59 = vld [vmem:[%s0 + $0x168] sm:$0xff]
  %v60 = vld [vmem:[%s0 + $0x170] sm:$0xff]
  %v61 = vld [vmem:[%s0 + $0x178] sm:$0xff]
  %v62 = vld [vmem:[%s0 + $0x180] sm:$0xff]
  %v63 = vld [vmem:[%s0 + $0x188] sm:$0xff]
  %v64 = vld [vmem:[%s0 + $0x190] sm:$0xff]
  %v65 = vld [vmem:[%s0 + $0x198] sm:$0xff]
  %v66 = vld [vmem:[%s0 + $0x1a0] sm:$0xff]
  %v67 = vld [vmem:[%s0 + $0x1a8] sm:$0xff]
  %v68 = vld [vmem:[%s0 + $0x1b0] sm:$0xff]
  %v69 = vld [vmem:[%s0 + $0x1b8] sm:$0xff]
  %v70 = vld [vmem:[%s0 + $0x1c0] sm:$0xff]
  %v71 = vld [vmem:[%s0 + $0x1c8] sm:$0xff]
  %v72 = vld [vmem:[%s0 + $0x1d0] sm:$0xff]
  %v73 = vld [vmem:[%s0 + $0x1d8] sm:$0xff]
  %v74 = vld [vmem:[%s0 + $0x1e0] sm:$0xff]
  %v75 = vld [vmem:[%s0 + $0x1e8] sm:$0xff]
  %v76 = vld [vmem:[%s0 + $0x1f0] sm:$0xff]
  %v77 = vld [vmem:[%s0 + $0x1f8] sm:$0xff]
  %v78 = vld [vmem:[%s0 + $0x200] sm:$0xff]
  %v79 = vld [vmem:[%s0 + $0x208] sm:$0xff]
  %v80 = vld [vmem:[%s0 + $0x210] sm:$0xff]
  %v81 = vld [vmem:[%s0 + $0x218] sm:$0xff]
  %v82 = vld [vmem:[%s0 + $0x220] sm:$0xff]
  %v83 = vld [vmem:[%s0 + $0x228] sm:$0xff]
  %v84 = vld [vmem:[%s0 + $0x230] sm:$0xff]
  %v85 = vld [vmem:[%s0 + $0x238] sm:$0xff]
  %v86 = vld [vmem:[%s0 + $0x240] sm:$0xff]
  %v87 = vld [vmem:[%s0 + $0x248] sm:$0xff]
  %v88 = vld [vmem:[%s0 + $0x250] sm:$0xff]
  %v89 = vld [vmem:[%s0 + $0x258] sm:$0xff]
  %v90 = vld [vmem:[%s0 + $0x260] sm:$0xff]
  %v91 = vld [vmem:[%s0 + $0x268] sm:$0xff]
  %v92 = vld [vmem:[%s0 + $0x270] sm:$0xff]
  %v93 = vld [vmem:[%s0 + $0x278] sm:$0xff]
  %v94 = vld [vmem:[%s1] sm:$0xff]
  %v95 = vld [vmem:[%s1 + $0x8] sm:$0xff]
  %v96 = vld [vmem:[%s1 + $0x10] sm:$0xff]
  %v97 = vld [vmem:[%s1 + $0x18] sm:$0xff]
  %v98 = vld [vmem:[%s1 + $0x20] sm:$0xff]
  %v99 = vld [vmem:[%s1 + $0x28] sm:$0xff]
  %v100 = vld [vmem:[%s1 + $0x30] sm:$0xff]
  %v101 = vld [vmem:[%s1 + $0x38] sm:$0xff]
  %v102 = vld [vmem:[%s1 + $0x40] sm:$0xff]
  %v103 = vld [vmem:[%s1 + $0x48] sm:$0xff]
  %v104 = vld [vmem:[%s1 + $0x50] sm:$0xff]
  %v105 = vld [vmem:[%s1 + $0x58] sm:$0xff]
  %v106 = vld [vmem:[%s1 + $0x60] sm:$0xff]
  %v107 = vld [vmem:[%s1 + $0x68] sm:$0xff]
  %v108 = vld [vmem:[%s1 + $0x70] sm:$0xff]
  %v109 = vld [vmem:[%s1 + $0x78] sm:$0xff]
  %v110 = vld [vmem:[%s1 + $0x80] sm:$0xff]
  %v111 = vld [vmem:[%s1 + $0x88] sm:$0xff]
  %v112 = vld [vmem:[%s1 + $0x90] sm:$0xff]
  %v113 = vld [vmem:[%s1 + $0x98] sm:$0xff]
  %v114 = vld [vmem:[%s1 + $0xa0] sm:$0xff]
  %v115 = vld [vmem:[%s1 + $0xa8] sm:$0xff]
  %v116 = vld [vmem:[%s1 + $0xb0] sm:$0xff]
  %v117 = vld [vmem:[%s1 + $0xb8] sm:$0xff]
  %v118 = vld [vmem:[%s1 + $0xc0] sm:$0xff]
  %v119 = vld [vmem:[%s1 + $0xc8] sm:$0xff]
  %v120 = vld [vmem:[%s1 + $0xd0] sm:$0xff]
  %v121 = vld [vmem:[%s1 + $0xd8] sm:$0xff]
  %v122 = vld [vmem:[%s1 + $0xe0] sm:$0xff]
  %v123 = vld [vmem:[%s1 + $0xe8] sm:$0xff]
  %v124 = vld [vmem:[%s1 + $0xf0] sm:$0xff]
  %v125 = vld [vmem:[%s1 + $0xf8] sm:$0xff]
  %v126 = vld [vmem:[%s1 + $0x100] sm:$0xff]
  %v127 = vld [vmem:[%s1 + $0x108] sm:$0xff]
  %v128 = vld [vmem:[%s1 + $0x110] sm:$0xff]
  %v129 = vld [vmem:[%s1 + $0x118] sm:$0xff]
  %v130 = vld [vmem:[%s1 + $0x120] sm:$0xff]
  %v131 = vld [vmem:[%s1 + $0x128] sm:$0xff]
  %v132 = vld [vmem:[%s1 + $0x130] sm:$0xff]
  %v133 = vld [vmem:[%s1 + $0x138] sm:$0xff]
  %v134 = vld [vmem:[%s1 + $0x140] sm:$0xff]
  %v135 = vld [vmem:[%s1 + $0x148] sm:$0xff]
  %v136 = vld [vmem:[%s1 + $0x150] sm:$0xff]
  %v137 = vld [vmem:[%s1 + $0x158] sm:$0xff]
  %v138 = vld [vmem:[%s1 + $0x160] sm:$0xff]
  %v139 = vld [vmem:[%s1 + $0x168] sm:$0xff]
  %v140 = vld [vmem:[%s1 + $0x170] sm:$0xff]
  %v141 = vld [vmem:[%s1 + $0x178] sm:$0xff]
  %v142 = vld [vmem:[%s1 + $0x180] sm:$0xff]
  %v143 = vld [vmem:[%s1 + $0x188] sm:$0xff]
  %v144 = vld [vmem:[%s1 + $0x190] sm:$0xff]
  %v145 = vld [vmem:[%s1 + $0x198] sm:$0xff]
  %v146 = vld [vmem:[%s1 + $0x1a0] sm:$0xff]
  %v147 = vld [vmem:[%s1 + $0x1a8] sm:$0xff]
  %v148 = vld [vmem:[%s1 + $0x1b0] sm:$0xff]
  %v149 = vld [vmem:[%s1 + $0x1b8] sm:$0xff]
  %v150 = vld [vmem:[%s1 + $0x1c0] sm:$0xff]
  %v151 = vld [vmem:[%s1 + $0x1c8] sm:$0xff]
  %v152 = vld [vmem:[%s1 + $0x1d0] sm:$0xff]
  %v153 = vld [vmem:[%s1 + $0x1d8] sm:$0xff]
  %v154 = vld [vmem:[%s1 + $0x1e0] sm:$0xff]
  %v155 = vld [vmem:[%s1 + $0x1e8] sm:$0xff]
  %v156 = vld [vmem:[%s1 + $0x1f0] sm:$0xff]
  %v157 = vld [vmem:[%s1 + $0x1f8] sm:$0xff]
  %v158 = vld [vmem:[%s1 + $0x200] sm:$0xff]
  %v159 = vld [vmem:[%s1 + $0x208] sm:$0xff]
  %v160 = vld [vmem:[%s1 + $0x210] sm:$0xff]
  %v161 = vld [vmem:[%s1 + $0x218] sm:$0xff]
  %v162 = vld [vmem:[%s1 + $0x220] sm:$0xff]
  %v163 = vld [vmem:[%s1 + $0x228] sm:$0xff]
  %v164 = vld [vmem:[%s1 + $0x230] sm:$0xff]
  %v165 = vld [vmem:[%s1 + $0x238] sm:$0xff]
  %v166 = vld [vmem:[%s1 + $0x240] sm:$0xff]
  %v167 = vld [vmem:[%s1 + $0x248] sm:$0xff]
  %v168 = vld [vmem:[%s1 + $0x250] sm:$0xff]
  %v169 = vld [vmem:[%s1 + $0x258] sm:$0xff]
  %v170 = vld [vmem:[%s1 + $0x260] sm:$0xff]
  %v171 = vld [vmem:[%s1 + $0x268] sm:$0xff]
  %v172 = vld [vmem:[%s1 + $0x270] sm:$0xff]
  %v173 = vld [vmem:[%s1 + $0x278] sm:$0xff]
  %v174 = vld [vmem:[%s2] sm:$0x1]
  %v176 = vlaneseq
  %v177 = vshrl.u32 %v176, 7
  %v178 = vsub.s32 0, %v177
  %v179 = vrot.slane %v174, %v178
  %181 = vmatprep.subr.mxu0 0.0
  %182 = vmatpush1.msra.mxu0 %v94
  %183 = vmatprep.subr.mxu0 0.0
  %184 = vmatpush1.msra.mxu0 %v95
  %185 = vmatprep.subr.mxu0 0.0
  %186 = vmatpush1.msra.mxu0 %v96
  %187 = vmatprep.subr.mxu0 0.0
  %188 = vmatpush1.msra.mxu0 %v97
  %189 = vmatprep.subr.mxu0 0.0
  %190 = vmatpush1.msra.mxu0 %v98
  %191 = vmatprep.subr.mxu0 0.0
  %192 = vmatpush1.msra.mxu0 %v99
  %193 = vmatprep.subr.mxu0 0.0
  %194 = vmatpush1.msra.mxu0 %v100
  %195 = vmatprep.subr.mxu0 0.0
  %196 = vmatpush1.msra.mxu0 %v101
  %197 = vmatprep.subr.mxu0 0.0
  %198 = vmatpush1.msra.mxu0 %v102
  %199 = vmatprep.subr.mxu0 0.0
  %200 = vmatpush1.msra.mxu0 %v103
  %201 = vmatprep.subr.mxu0 0.0
  %202 = vmatpush1.msra.mxu0 %v104
  %203 = vmatprep.subr.mxu0 0.0
  %204 = vmatpush1.msra.mxu0 %v105
  %205 = vmatprep.subr.mxu0 0.0
  %206 = vmatpush1.msra.mxu0 %v106
  %207 = vmatprep.subr.mxu0 0.0
  %208 = vmatpush1.msra.mxu0 %v107
  %209 = vmatprep.subr.mxu0 0.0
  %210 = vmatpush1.msra.mxu0 %v108
  %211 = vmatprep.subr.mxu0 0.0
  %212 = vmatpush1.msra.mxu0 %v109
  %213 = vmatprep.subr.mxu0 0.0
  %214 = vmatpush1.msra.mxu0 %v110
  %215 = vmatprep.subr.mxu0 0.0
  %216 = vmatpush1.msra.mxu0 %v111
  %217 = vmatprep.subr.mxu0 0.0
  %218 = vmatpush1.msra.mxu0 %v112
  %219 = vmatprep.subr.mxu0 0.0
  %220 = vmatpush1.msra.mxu0 %v113
  %221 = vmatprep.subr.mxu0 0.0
  %222 = vmatpush1.msra.mxu0 %v114
  %223 = vmatprep.subr.mxu0 0.0
  %224 = vmatpush1.msra.mxu0 %v115
  %225 = vmatprep.subr.mxu0 0.0
  %226 = vmatpush1.msra.mxu0 %v116
  %227 = vmatprep.subr.mxu0 0.0
  %228 = vmatpush1.msra.mxu0 %v117
  %229 = vmatprep.subr.mxu0 0.0
  %230 = vmatpush1.msra.mxu0 %v118
  %231 = vmatprep.subr.mxu0 0.0
  %232 = vmatpush1.msra.mxu0 %v119
  %233 = vmatprep.subr.mxu0 0.0
  %234 = vmatpush1.msra.mxu0 %v120
  %235 = vmatprep.subr.mxu0 0.0
  %236 = vmatpush1.msra.mxu0 %v121
  %237 = vmatprep.subr.mxu0 0.0
  %238 = vmatpush1.msra.mxu0 %v122
  %239 = vmatprep.subr.mxu0 0.0
  %240 = vmatpush1.msra.mxu0 %v123
  %241 = vmatprep.subr.mxu0 0.0
  %242 = vmatpush1.msra.mxu0 %v124
  %243 = vmatprep.subr.mxu0 0.0
  %244 = vmatpush1.msra.mxu0 %v125
  %245 = vmatprep.mubr.f32.mxu0 %v15
  %246 = vmatmul.mubr.f32.gmra.mrb[0].mxu0 %v14
  %v247 = vpop.f32.mrb[0].mxu0
  %v248 = vadd.f32 %v179, %v247
  %v249 = vpop.f32.mrb[0].mxu0
  %250 = vmatprep.mubr.f32.mxu0 %v20
  %251 = vmatmul.mubr.f32.gmra.mrb[0].mxu0 %v19
  %v252 = vpop.f32.mrb[0].mxu0
  %v253 = vadd.f32 %v179, %v252
  %v254 = vpop.f32.mrb[0].mxu0
  %255 = vmatprep.mubr.f32.mxu0 %v25
  %256 = vmatmul.mubr.f32.gmra.mrb[0].mxu0 %v24
  %v257 = vpop.f32.mrb[0].mxu0
  %v258 = vadd.f32 %v179, %v257
  %v259 = vpop.f32.mrb[0].mxu0
  %260 = vmatprep.mubr.f32.mxu0 %v30
  %261 = vmatmul.mubr.f32.gmra.mrb[0].mxu0 %v29
  %v262 = vpop.f32.mrb[0].mxu0
  %v263 = vadd.f32 %v179, %v262
  %v264 = vpop.f32.mrb[0].mxu0
  %265 = vmatprep.mubr.f32.mxu0 %v35
  %266 = vmatmul.mubr.f32.gmra.mrb[0].mxu0 %v34
  %v267 = vpop.f32.mrb[0].mxu0
  %v268 = vadd.f32 %v179, %v267
  %v269 = vpop.f32.mrb[0].mxu0
  %270 = vmatprep.mubr.f32.mxu0 %v40
  %271 = vmatmul.mubr.f32.gmra.mrb[0].mxu0 %v39
  %v272 = vpop.f32.mrb[0].mxu0
  %v273 = vadd.f32 %v179, %v272
  %v274 = vpop.f32.mrb[0].mxu0
  %275 = vmatprep.mubr.f32.mxu0 %v45
  %276 = vmatmul.mubr.f32.gmra.mrb[0].mxu0 %v44
  %v277 = vpop.f32.mrb[0].mxu0
  %v278 = vadd.f32 %v179, %v277
  %v279 = vpop.f32.mrb[0].mxu0
  %280 = vmatprep.mubr.f32.mxu0 %v50
  %281 = vmatmul.mubr.f32.gmra.mrb[0].mxu0 %v49
  %v282 = vpop.f32.mrb[0].mxu0
  %v283 = vadd.f32 %v179, %v282
  %v284 = vpop.f32.mrb[0].mxu0
  %285 = vmatprep.mubr.f32.mxu0 %v55
  %286 = vmatmul.mubr.f32.gmra.mrb[0].mxu0 %v54
  %v287 = vpop.f32.mrb[0].mxu0
  %v288 = vadd.f32 %v179, %v287
  %v289 = vpop.f32.mrb[0].mxu0
  %290 = vmatprep.mubr.f32.mxu0 %v60
  %291 = vmatmul.mubr.f32.gmra.mrb[0].mxu0 %v59
  %v292 = vpop.f32.mrb[0].mxu0
  %v293 = vadd.f32 %v179, %v292
  %v294 = vpop.f32.mrb[0].mxu0
  %295 = vmatprep.mubr.f32.mxu0 %v65
  %296 = vmatmul.mubr.f32.gmra.mrb[0].mxu0 %v64
  %v297 = vpop.f32.mrb[0].mxu0
  %v298 = vadd.f32 %v179, %v297
  %v299 = vpop.f32.mrb[0].mxu0
  %300 = vmatprep.mubr.f32.mxu0 %v70
  %301 = vmatmul.mubr.f32.gmra.mrb[0].mxu0 %v69
  %v302 = vpop.f32.mrb[0].mxu0
  %v303 = vadd.f32 %v179, %v302
  %v304 = vpop.f32.mrb[0].mxu0
  %305 = vmatprep.mubr.f32.mxu0 %v75
  %306 = vmatmul.mubr.f32.gmra.mrb[0].mxu0 %v74
  %v307 = vpop.f32.mrb[0].mxu0
  %v308 = vadd.f32 %v179, %v307
  %v309 = vpop.f32.mrb[0].mxu0
  %310 = vmatprep.mubr.f32.mxu0 %v80
  %311 = vmatmul.mubr.f32.gmra.mrb[0].mxu0 %v79
  %v312 = vpop.f32.mrb[0].mxu0
  %v313 = vadd.f32 %v179, %v312
  %v314 = vpop.f32.mrb[0].mxu0
  %315 = vmatprep.mubr.f32.mxu0 %v85
  %316 = vmatmul.mubr.f32.gmra.mrb[0].mxu0 %v84
  %v317 = vpop.f32.mrb[0].mxu0
  %v318 = vadd.f32 %v179, %v317
  %v319 = vpop.f32.mrb[0].mxu0
  %320 = vmatprep.mubr.f32.mxu0 %v90
  %321 = vmatmul.mubr.f32.gmra.mrb[0].mxu0 %v89
  %v322 = vpop.f32.mrb[0].mxu0
  %v323 = vadd.f32 %v179, %v322
  %v324 = vpop.f32.mrb[0].mxu0
  %325 = vdwg.mxu0
  %326 = vmatprep.subr.mxu0 0.0
  %327 = vmatpush1.msra.mxu0 %v126
  %328 = vmatprep.subr.mxu0 0.0
  %329 = vmatpush1.msra.mxu0 %v127
  %330 = vmatprep.subr.mxu0 0.0
  %331 = vmatpush1.msra.mxu0 %v128
  %332 = vmatprep.subr.mxu0 0.0
  %333 = vmatpush1.msra.mxu0 %v129
  %334 = vmatprep.subr.mxu0 0.0
  %335 = vmatpush1.msra.mxu0 %v130
  %336 = vmatprep.subr.mxu0 0.0
  %337 = vmatpush1.msra.mxu0 %v131
  %338 = vmatprep.subr.mxu0 0.0
  %339 = vmatpush1.msra.mxu0 %v132
  %340 = vmatprep.subr.mxu0 0.0
  %341 = vmatpush1.msra.mxu0 %v133
  %342 = vmatprep.subr.mxu0 0.0
  %343 = vmatpush1.msra.mxu0 %v134
  %344 = vmatprep.subr.mxu0 0.0
  %345 = vmatpush1.msra.mxu0 %v135
  %346 = vmatprep.subr.mxu0 0.0
  %347 = vmatpush1.msra.mxu0 %v136
  %348 = vmatprep.subr.mxu0 0.0
  %349 = vmatpush1.msra.mxu0 %v137
  %350 = vmatprep.subr.mxu0 0.0
  %351 = vmatpush1.msra.mxu0 %v138
  %352 = vmatprep.subr.mxu0 0.0
  %353 = vmatpush1.msra.mxu0 %v139
  %354 = vmatprep.subr.mxu0 0.0
  %355 = vmatpush1.msra.mxu0 %v140
  %356 = vmatprep.subr.mxu0 0.0
  %357 = vmatpush1.msra.mxu0 %v141
  %358 = vmatprep.subr.mxu0 0.0
  %359 = vmatpush1.msra.mxu0 %v142
  %360 = vmatprep.subr.mxu0 0.0
  %361 = vmatpush1.msra.mxu0 %v143
  %362 = vmatprep.subr.mxu0 0.0
  %363 = vmatpush1.msra.mxu0 %v144
  %364 = vmatprep.subr.mxu0 0.0
  %365 = vmatpush1.msra.mxu0 %v145
  %366 = vmatprep.subr.mxu0 0.0
  %367 = vmatpush1.msra.mxu0 %v146
  %368 = vmatprep.subr.mxu0 0.0
  %369 = vmatpush1.msra.mxu0 %v147
  %370 = vmatprep.subr.mxu0 0.0
  %371 = vmatpush1.msra.mxu0 %v148
  %372 = vmatprep.subr.mxu0 0.0
  %373 = vmatpush1.msra.mxu0 %v149
  %374 = vmatprep.subr.mxu0 0.0
  %375 = vmatpush1.msra.mxu0 %v150
  %376 = vmatprep.subr.mxu0 0.0
  %377 = vmatpush1.msra.mxu0 %v151
  %378 = vmatprep.subr.mxu0 0.0
  %379 = vmatpush1.msra.mxu0 %v152
  %380 = vmatprep.subr.mxu0 0.0
  %381 = vmatpush1.msra.mxu0 %v153
  %382 = vmatprep.subr.mxu0 0.0
  %383 = vmatpush1.msra.mxu0 %v154
  %384 = vmatprep.subr.mxu0 0.0
  %385 = vmatpush1.msra.mxu0 %v155
  %386 = vmatprep.subr.mxu0 0.0
  %387 = vmatpush1.msra.mxu0 %v156
  %388 = vmatprep.subr.mxu0 0.0
  %389 = vmatpush1.msra.mxu0 %v157
  %390 = vmatprep.mubr.f32.mxu0 %v17
  %391 = vmatmul.mubr.f32.gmra.mrb[0].mxu0 %v16
  %v392 = vpop.f32.mrb[0].mxu0
  %v393 = vadd.f32 %v248, %v392
  %v394 = vpop.f32.mrb[0].mxu0
  %395 = vmatprep.mubr.f32.mxu0 %v22
  %396 = vmatmul.mubr.f32.gmra.mrb[0].mxu0 %v21
  %v397 = vpop.f32.mrb[0].mxu0
  %v398 = vadd.f32 %v253, %v397
  %v399 = vpop.f32.mrb[0].mxu0
  %400 = vmatprep.mubr.f32.mxu0 %v27
  %401 = vmatmul.mubr.f32.gmra.mrb[0].mxu0 %v26
  %v402 = vpop.f32.mrb[0].mxu0
  %v403 = vadd.f32 %v258, %v402
  %v404 = vpop.f32.mrb[0].mxu0
  %405 = vmatprep.mubr.f32.mxu0 %v32
  %406 = vmatmul.mubr.f32.gmra.mrb[0].mxu0 %v31
  %v407 = vpop.f32.mrb[0].mxu0
  %v408 = vadd.f32 %v263, %v407
  %v409 = vpop.f32.mrb[0].mxu0
  %410 = vmatprep.mubr.f32.mxu0 %v37
  %411 = vmatmul.mubr.f32.gmra.mrb[0].mxu0 %v36
  %v412 = vpop.f32.mrb[0].mxu0
  %v413 = vadd.f32 %v268, %v412
  %v414 = vpop.f32.mrb[0].mxu0
  %415 = vmatprep.mubr.f32.mxu0 %v42
  %416 = vmatmul.mubr.f32.gmra.mrb[0].mxu0 %v41
  %v417 = vpop.f32.mrb[0].mxu0
  %v418 = vadd.f32 %v273, %v417
  %v419 = vpop.f32.mrb[0].mxu0
  %420 = vmatprep.mubr.f32.mxu0 %v47
  %421 = vmatmul.mubr.f32.gmra.mrb[0].mxu0 %v46
  %v422 = vpop.f32.mrb[0].mxu0
  %v423 = vadd.f32 %v278, %v422
  %v424 = vpop.f32.mrb[0].mxu0
  %425 = vmatprep.mubr.f32.mxu0 %v52
  %426 = vmatmul.mubr.f32.gmra.mrb[0].mxu0 %v51
  %v427 = vpop.f32.mrb[0].mxu0
  %v428 = vadd.f32 %v283, %v427
  %v429 = vpop.f32.mrb[0].mxu0
  %430 = vmatprep.mubr.f32.mxu0 %v57
  %431 = vmatmul.mubr.f32.gmra.mrb[0].mxu0 %v56
  %v432 = vpop.f32.mrb[0].mxu0
  %v433 = vadd.f32 %v288, %v432
  %v434 = vpop.f32.mrb[0].mxu0
  %435 = vmatprep.mubr.f32.mxu0 %v62
  %436 = vmatmul.mubr.f32.gmra.mrb[0].mxu0 %v61
  %v437 = vpop.f32.mrb[0].mxu0
  %v438 = vadd.f32 %v293, %v437
  %v439 = vpop.f32.mrb[0].mxu0
  %440 = vmatprep.mubr.f32.mxu0 %v67
  %441 = vmatmul.mubr.f32.gmra.mrb[0].mxu0 %v66
  %v442 = vpop.f32.mrb[0].mxu0
  %v443 = vadd.f32 %v298, %v442
  %v444 = vpop.f32.mrb[0].mxu0
  %445 = vmatprep.mubr.f32.mxu0 %v72
  %446 = vmatmul.mubr.f32.gmra.mrb[0].mxu0 %v71
  %v447 = vpop.f32.mrb[0].mxu0
  %v448 = vadd.f32 %v303, %v447
  %v449 = vpop.f32.mrb[0].mxu0
  %450 = vmatprep.mubr.f32.mxu0 %v77
  %451 = vmatmul.mubr.f32.gmra.mrb[0].mxu0 %v76
  %v452 = vpop.f32.mrb[0].mxu0
  %v453 = vadd.f32 %v308, %v452
  %v454 = vpop.f32.mrb[0].mxu0
  %455 = vmatprep.mubr.f32.mxu0 %v82
  %456 = vmatmul.mubr.f32.gmra.mrb[0].mxu0 %v81
  %v457 = vpop.f32.mrb[0].mxu0
  %v458 = vadd.f32 %v313, %v457
  %v459 = vpop.f32.mrb[0].mxu0
  %460 = vmatprep.mubr.f32.mxu0 %v87
  %461 = vmatmul.mubr.f32.gmra.mrb[0].mxu0 %v86
  %v462 = vpop.f32.mrb[0].mxu0
  %v463 = vadd.f32 %v318, %v462
  %v464 = vpop.f32.mrb[0].mxu0
  %465 = vmatprep.mubr.f32.mxu0 %v92
  %466 = vmatmul.mubr.f32.gmra.mrb[0].mxu0 %v91
  %v467 = vpop.f32.mrb[0].mxu0
  %v468 = vadd.f32 %v323, %v467
  %v469 = vpop.f32.mrb[0].mxu0
  %470 = vdwg.mxu0
  %471 = vmatprep.subr.mxu0 0.0
  %472 = vmatpush1.msra.mxu0 %v158
  %473 = vmatprep.subr.mxu0 0.0
  %474 = vmatpush1.msra.mxu0 %v159
  %475 = vmatprep.subr.mxu0 0.0
  %476 = vmatpush1.msra.mxu0 %v160
  %477 = vmatprep.subr.mxu0 0.0
  %478 = vmatpush1.msra.mxu0 %v161
  %479 = vmatprep.subr.mxu0 0.0
  %480 = vmatpush1.msra.mxu0 %v162
  %481 = vmatprep.subr.mxu0 0.0
  %482 = vmatpush1.msra.mxu0 %v163
  %483 = vmatprep.subr.mxu0 0.0
  %484 = vmatpush1.msra.mxu0 %v164
  %485 = vmatprep.subr.mxu0 0.0
  %486 = vmatpush1.msra.mxu0 %v165
  %487 = vmatprep.subr.mxu0 0.0
  %488 = vmatpush1.msra.mxu0 %v166
  %489 = vmatprep.subr.mxu0 0.0
  %490 = vmatpush1.msra.mxu0 %v167
  %491 = vmatprep.subr.mxu0 0.0
  %492 = vmatpush1.msra.mxu0 %v168
  %493 = vmatprep.subr.mxu0 0.0
  %494 = vmatpush1.msra.mxu0 %v169
  %495 = vmatprep.subr.mxu0 0.0
  %496 = vmatpush1.msra.mxu0 %v170
  %497 = vmatprep.subr.mxu0 0.0
  %498 = vmatpush1.msra.mxu0 %v171
  %499 = vmatprep.subr.mxu0 0.0
  %500 = vmatpush1.msra.mxu0 %v172
  %501 = vmatprep.subr.mxu0 0.0
  %502 = vmatpush1.msra.mxu0 %v173
  %503 = vmatprep.subr.mxu0 0.0
  %504 = vmatpush1.msra.mxu0 0.0
  %505 = vmatprep.subr.mxu0 0.0
  %506 = vmatpush1.msra.mxu0 0.0
  %507 = vmatprep.subr.mxu0 0.0
  %508 = vmatpush1.msra.mxu0 0.0
  %509 = vmatprep.subr.mxu0 0.0
  %510 = vmatpush1.msra.mxu0 0.0
  %511 = vmatprep.subr.mxu0 0.0
  %512 = vmatpush1.msra.mxu0 0.0
  %513 = vmatprep.subr.mxu0 0.0
  %514 = vmatpush1.msra.mxu0 0.0
  %515 = vmatprep.subr.mxu0 0.0
  %516 = vmatpush1.msra.mxu0 0.0
  %517 = vmatprep.subr.mxu0 0.0
  %518 = vmatpush1.msra.mxu0 0.0
  %519 = vmatprep.subr.mxu0 0.0
  %520 = vmatpush1.msra.mxu0 0.0
  %521 = vmatprep.subr.mxu0 0.0
  %522 = vmatpush1.msra.mxu0 0.0
  %523 = vmatprep.subr.mxu0 0.0
  %524 = vmatpush1.msra.mxu0 0.0
  %525 = vmatprep.subr.mxu0 0.0
  %526 = vmatpush1.msra.mxu0 0.0
  %527 = vmatprep.subr.mxu0 0.0
  %528 = vmatpush1.msra.mxu0 0.0
  %529 = vmatprep.subr.mxu0 0.0
  %530 = vmatpush1.msra.mxu0 0.0
  %531 = vmatprep.subr.mxu0 0.0
  %532 = vmatpush1.msra.mxu0 0.0
  %533 = vmatprep.subr.mxu0 0.0
  %534 = vmatpush1.msra.mxu0 0.0
  %535 = vmatprep.mubr.f32.mxu0 0.0
  %536 = vmatmul.mubr.f32.gmra.mrb[0].mxu0 %v18
  %v537 = vpop.f32.mrb[0].mxu0
  %v538 = vadd.f32 %v393, %v537
  %v539 = vpop.f32.mrb[0].mxu0
  %540 = vmatprep.mubr.f32.mxu0 0.0
  %541 = vmatmul.mubr.f32.gmra.mrb[0].mxu0 %v23
  %v542 = vpop.f32.mrb[0].mxu0
  %v543 = vadd.f32 %v398, %v542
  %v544 = vpop.f32.mrb[0].mxu0
  %545 = vmatprep.mubr.f32.mxu0 0.0
  %546 = vmatmul.mubr.f32.gmra.mrb[0].mxu0 %v28
  %v547 = vpop.f32.mrb[0].mxu0
  %v548 = vadd.f32 %v403, %v547
  %v549 = vpop.f32.mrb[0].mxu0
  %550 = vmatprep.mubr.f32.mxu0 0.0
  %551 = vmatmul.mubr.f32.gmra.mrb[0].mxu0 %v33
  %v552 = vpop.f32.mrb[0].mxu0
  %v553 = vadd.f32 %v408, %v552
  %v554 = vpop.f32.mrb[0].mxu0
  %555 = vmatprep.mubr.f32.mxu0 0.0
  %556 = vmatmul.mubr.f32.gmra.mrb[0].mxu0 %v38
  %v557 = vpop.f32.mrb[0].mxu0
  %v558 = vadd.f32 %v413, %v557
  %v559 = vpop.f32.mrb[0].mxu0
  %560 = vmatprep.mubr.f32.mxu0 0.0
  %561 = vmatmul.mubr.f32.gmra.mrb[0].mxu0 %v43
  %v562 = vpop.f32.mrb[0].mxu0
  %v563 = vadd.f32 %v418, %v562
  %v564 = vpop.f32.mrb[0].mxu0
  %565 = vmatprep.mubr.f32.mxu0 0.0
  %566 = vmatmul.mubr.f32.gmra.mrb[0].mxu0 %v48
  %v567 = vpop.f32.mrb[0].mxu0
  %v568 = vadd.f32 %v423, %v567
  %v569 = vpop.f32.mrb[0].mxu0
  %570 = vmatprep.mubr.f32.mxu0 0.0
  %571 = vmatmul.mubr.f32.gmra.mrb[0].mxu0 %v53
  %v572 = vpop.f32.mrb[0].mxu0
  %v573 = vadd.f32 %v428, %v572
  %v574 = vpop.f32.mrb[0].mxu0
  %575 = vmatprep.mubr.f32.mxu0 0.0
  %576 = vmatmul.mubr.f32.gmra.mrb[0].mxu0 %v58
  %v577 = vpop.f32.mrb[0].mxu0
  %v578 = vadd.f32 %v433, %v577
  %v579 = vpop.f32.mrb[0].mxu0
  %580 = vmatprep.mubr.f32.mxu0 0.0
  %581 = vmatmul.mubr.f32.gmra.mrb[0].mxu0 %v63
  %v582 = vpop.f32.mrb[0].mxu0
  %v583 = vadd.f32 %v438, %v582
  %v584 = vpop.f32.mrb[0].mxu0
  %585 = vmatprep.mubr.f32.mxu0 0.0
  %586 = vmatmul.mubr.f32.gmra.mrb[0].mxu0 %v68
  %v587 = vpop.f32.mrb[0].mxu0
  %v588 = vadd.f32 %v443, %v587
  %v589 = vpop.f32.mrb[0].mxu0
  %590 = vmatprep.mubr.f32.mxu0 0.0
  %591 = vmatmul.mubr.f32.gmra.mrb[0].mxu0 %v73
  %v592 = vpop.f32.mrb[0].mxu0
  %v593 = vadd.f32 %v448, %v592
  %v594 = vpop.f32.mrb[0].mxu0
  %595 = vmatprep.mubr.f32.mxu0 0.0
  %596 = vmatmul.mubr.f32.gmra.mrb[0].mxu0 %v78
  %v597 = vpop.f32.mrb[0].mxu0
  %v598 = vadd.f32 %v453, %v597
  %v599 = vpop.f32.mrb[0].mxu0
  %600 = vmatprep.mubr.f32.mxu0 0.0
  %601 = vmatmul.mubr.f32.gmra.mrb[0].mxu0 %v83
  %v602 = vpop.f32.mrb[0].mxu0
  %v603 = vadd.f32 %v458, %v602
  %v604 = vpop.f32.mrb[0].mxu0
  %605 = vmatprep.mubr.f32.mxu0 0.0
  %606 = vmatmul.mubr.f32.gmra.mrb[0].mxu0 %v88
  %v607 = vpop.f32.mrb[0].mxu0
  %v608 = vadd.f32 %v463, %v607
  %v609 = vpop.f32.mrb[0].mxu0
  %610 = vmatprep.mubr.f32.mxu0 0.0
  %611 = vmatmul.mubr.f32.gmra.mrb[0].mxu0 %v93
  %v612 = vpop.f32.mrb[0].mxu0
  %v613 = vadd.f32 %v468, %v612
  %v614 = vpop.f32.mrb[0].mxu0
  %615 = vdwg.mxu0
  %v616 = vmax.f32 %v538, 0.0
  %v617 = vmax.f32 %v543, 0.0
  %v618 = vmax.f32 %v548, 0.0
  %v619 = vmax.f32 %v553, 0.0
  %v620 = vmax.f32 %v558, 0.0
  %v621 = vmax.f32 %v563, 0.0
  %v622 = vmax.f32 %v568, 0.0
  %v623 = vmax.f32 %v573, 0.0
  %v624 = vmax.f32 %v578, 0.0
  %v625 = vmax.f32 %v583, 0.0
  %v626 = vmax.f32 %v588, 0.0
  %v627 = vmax.f32 %v593, 0.0
  %v628 = vmax.f32 %v598, 0.0
  %v629 = vmax.f32 %v603, 0.0
  %v630 = vmax.f32 %v608, 0.0
  %v631 = vmax.f32 %v613, 0.0
  %vm632 = vcmask 523264
  %633 = vst.msk [vmem:[%s3] sm:$0xff] %vm632, %v616
  %634 = vst.msk [vmem:[%s3 + $0x8] sm:$0xff] %vm632, %v617
  %635 = vst.msk [vmem:[%s3 + $0x10] sm:$0xff] %vm632, %v618
  %636 = vst.msk [vmem:[%s3 + $0x18] sm:$0xff] %vm632, %v619
  %637 = vst.msk [vmem:[%s3 + $0x20] sm:$0xff] %vm632, %v620
  %638 = vst.msk [vmem:[%s3 + $0x28] sm:$0xff] %vm632, %v621
  %639 = vst.msk [vmem:[%s3 + $0x30] sm:$0xff] %vm632, %v622
  %640 = vst.msk [vmem:[%s3 + $0x38] sm:$0xff] %vm632, %v623
  %641 = vst.msk [vmem:[%s3 + $0x40] sm:$0xff] %vm632, %v624
  %642 = vst.msk [vmem:[%s3 + $0x48] sm:$0xff] %vm632, %v625
  %643 = vst.msk [vmem:[%s3 + $0x50] sm:$0xff] %vm632, %v626
  %644 = vst.msk [vmem:[%s3 + $0x58] sm:$0xff] %vm632, %v627
  %645 = vst.msk [vmem:[%s3 + $0x60] sm:$0xff] %vm632, %v628
  %646 = vst.msk [vmem:[%s3 + $0x68] sm:$0xff] %vm632, %v629
  %647 = vst.msk [vmem:[%s3 + $0x70] sm:$0xff] %vm632, %v630
  %648 = vst.msk [vmem:[%s3 + $0x78] sm:$0xff] %vm632, %v631
  // Predicated region
  $region14: #{ipt_head_encoder.6} parent=0 // pred_check
    _
  $region15: #{ipt_head_encoder.6} parent=0 // pred_check_branch
    %650 = sbr.rel (0) target = $region17
  $region16: #{ipt_head_encoder.6} parent=0 // pred_region
    _
  $region17: #{ipt_head_encoder.6} parent=0 // pred_fallthru
    _
  // Predicated region
  $region18: #{ipt_head_encoder.6} parent=0 // pred_check
    _
  $region19: #{ipt_head_encoder.6} parent=0 // pred_check_branch
    %652 = sbr.rel (0) target = $region21
  $region20: #{ipt_head_encoder.6} parent=0 // pred_region
    _
  $region21: #{ipt_head_encoder.6} parent=0 // pred_fallthru
    _

// kernel: ipt_head_encoder.7
$region0: #{ipt_head_encoder.7}
  #allocation0 [shape = 'u32[]', space=smem, size = 0x4, offset = 0x4, fixed_abs, tag = 'smem constant byte address 0x4 - core index']
  #allocation1 [shape = 'u32[144,128]{1,0:T(1,128)}', space=vmem, size = 0x12000, scoped, tag = 'internal scratch']
  %s0 = inlined_call_operand.vmem [shape: f32[128,640], index: 0, kind: input, shape index: {}]
  %s1 = inlined_call_operand.vmem [shape: f32[640,64], index: 1, kind: input, shape index: {}]
  %s2 = inlined_call_operand.vmem [shape: f32[1,64], index: 2, kind: input, shape index: {}]
  %s3 = inlined_call_operand.vmem [shape: f32[128,64], index: 3, kind: input, shape index: {}]
  %s4 = inlined_call_operand.vmem [shape: f32[64,64], index: 4, kind: input, shape index: {}]
  %s5 = inlined_call_operand.vmem [shape: f32[1,64], index: 5, kind: input, shape index: {}]
  %s6 = inlined_call_operand.vmem [shape: f32[128,64], index: 6, kind: output, shape index: {}]
  %s7 = sld [smem:[#allocation0]]
  $region34: #{ipt_head_encoder.7} parent=0
    _
  %s9 = ssub.s32 1, %s7
  %s10 = scalar_select 0, %s9, %s7
  // Predicated region
  $region2: #{ipt_head_encoder.7} parent=0 // pred_check
    _
  $region3: #{ipt_head_encoder.7} parent=0 // pred_check_branch
    %12 = sbr.rel (0) target = $region5
  $region4: #{ipt_head_encoder.7} parent=0 // pred_region
    _
  $region5: #{ipt_head_encoder.7} parent=0 // pred_fallthru
    _
  // Predicated region
  $region6: #{ipt_head_encoder.7} parent=0 // pred_check
    _
  $region7: #{ipt_head_encoder.7} parent=0 // pred_check_branch
    %14 = sbr.rel (0) target = $region9
  $region8: #{ipt_head_encoder.7} parent=0 // pred_region
    _
  $region9: #{ipt_head_encoder.7} parent=0 // pred_fallthru
    _
  // Predicated region
  $region10: #{ipt_head_encoder.7} parent=0 // pred_check
    _
  $region11: #{ipt_head_encoder.7} parent=0 // pred_check_branch
    %16 = sbr.rel (0) target = $region13
  $region12: #{ipt_head_encoder.7} parent=0 // pred_region
    _
  $region13: #{ipt_head_encoder.7} parent=0 // pred_fallthru
    _
  // Predicated region
  $region14: #{ipt_head_encoder.7} parent=0 // pred_check
    _
  $region15: #{ipt_head_encoder.7} parent=0 // pred_check_branch
    %18 = sbr.rel (0) target = $region17
  $region16: #{ipt_head_encoder.7} parent=0 // pred_region
    _
  $region17: #{ipt_head_encoder.7} parent=0 // pred_fallthru
    _
  // Predicated region
  $region18: #{ipt_head_encoder.7} parent=0 // pred_check
    _
  $region19: #{ipt_head_encoder.7} parent=0 // pred_check_branch
    %20 = sbr.rel (0) target = $region21
  $region20: #{ipt_head_encoder.7} parent=0 // pred_region
    _
  $region21: #{ipt_head_encoder.7} parent=0 // pred_fallthru
    _
  // Predicated region
  $region22: #{ipt_head_encoder.7} parent=0 // pred_check
    _
  $region23: #{ipt_head_encoder.7} parent=0 // pred_check_branch
    %22 = sbr.rel (0) target = $region25
  $region24: #{ipt_head_encoder.7} parent=0 // pred_region
    _
  $region25: #{ipt_head_encoder.7} parent=0 // pred_fallthru
    _
  %v23 = vld [vmem:[%s0] sm:$0xff]
  %v24 = vld [vmem:[%s0 + $0x8] sm:$0xff]
  %v25 = vld [vmem:[%s0 + $0x10] sm:$0xff]
  %v26 = vld [vmem:[%s0 + $0x18] sm:$0xff]
  %v27 = vld [vmem:[%s0 + $0x20] sm:$0xff]
  %v28 = vld [vmem:[%s0 + $0x28] sm:$0xff]
  %v29 = vld [vmem:[%s0 + $0x30] sm:$0xff]
  %v30 = vld [vmem:[%s0 + $0x38] sm:$0xff]
  %v31 = vld [vmem:[%s0 + $0x40] sm:$0xff]
  %v32 = vld [vmem:[%s0 + $0x48] sm:$0xff]
  %v33 = vld [vmem:[%s0 + $0x50] sm:$0xff]
  %v34 = vld [vmem:[%s0 + $0x58] sm:$0xff]
  %v35 = vld [vmem:[%s0 + $0x60] sm:$0xff]
  %v36 = vld [vmem:[%s0 + $0x68] sm:$0xff]
  %v37 = vld [vmem:[%s0 + $0x70] sm:$0xff]
  %v38 = vld [vmem:[%s0 + $0x78] sm:$0xff]
  %v39 = vld [vmem:[%s0 + $0x80] sm:$0xff]
  %v40 = vld [vmem:[%s0 + $0x88] sm:$0xff]
  %v41 = vld [vmem:[%s0 + $0x90] sm:$0xff]
  %v42 = vld [vmem:[%s0 + $0x98] sm:$0xff]
  %v43 = vld [vmem:[%s0 + $0xa0] sm:$0xff]
  %v44 = vld [vmem:[%s0 + $0xa8] sm:$0xff]
  %v45 = vld [vmem:[%s0 + $0xb0] sm:$0xff]
  %v46 = vld [vmem:[%s0 + $0xb8] sm:$0xff]
  %v47 = vld [vmem:[%s0 + $0xc0] sm:$0xff]
  %v48 = vld [vmem:[%s0 + $0xc8] sm:$0xff]
  %v49 = vld [vmem:[%s0 + $0xd0] sm:$0xff]
  %v50 = vld [vmem:[%s0 + $0xd8] sm:$0xff]
  %v51 = vld [vmem:[%s0 + $0xe0] sm:$0xff]
  %v52 = vld [vmem:[%s0 + $0xe8] sm:$0xff]
  %v53 = vld [vmem:[%s0 + $0xf0] sm:$0xff]
  %v54 = vld [vmem:[%s0 + $0xf8] sm:$0xff]
  %v55 = vld [vmem:[%s0 + $0x100] sm:$0xff]
  %v56 = vld [vmem:[%s0 + $0x108] sm:$0xff]
  %v57 = vld [vmem:[%s0 + $0x110] sm:$0xff]
  %v58 = vld [vmem:[%s0 + $0x118] sm:$0xff]
  %v59 = vld [vmem:[%s0 + $0x120] sm:$0xff]
  %v60 = vld [vmem:[%s0 + $0x128] sm:$0xff]
  %v61 = vld [vmem:[%s0 + $0x130] sm:$0xff]
  %v62 = vld [vmem:[%s0 + $0x138] sm:$0xff]
  %v63 = vld [vmem:[%s0 + $0x140] sm:$0xff]
  %v64 = vld [vmem:[%s0 + $0x148] sm:$0xff]
  %v65 = vld [vmem:[%s0 + $0x150] sm:$0xff]
  %v66 = vld [vmem:[%s0 + $0x158] sm:$0xff]
  %v67 = vld [vmem:[%s0 + $0x160] sm:$0xff]
  %v68 = vld [vmem:[%s0 + $0x168] sm:$0xff]
  %v69 = vld [vmem:[%s0 + $0x170] sm:$0xff]
  %v70 = vld [vmem:[%s0 + $0x178] sm:$0xff]
  %v71 = vld [vmem:[%s0 + $0x180] sm:$0xff]
  %v72 = vld [vmem:[%s0 + $0x188] sm:$0xff]
  %v73 = vld [vmem:[%s0 + $0x190] sm:$0xff]
  %v74 = vld [vmem:[%s0 + $0x198] sm:$0xff]
  %v75 = vld [vmem:[%s0 + $0x1a0] sm:$0xff]
  %v76 = vld [vmem:[%s0 + $0x1a8] sm:$0xff]
  %v77 = vld [vmem:[%s0 + $0x1b0] sm:$0xff]
  %v78 = vld [vmem:[%s0 + $0x1b8] sm:$0xff]
  %v79 = vld [vmem:[%s0 + $0x1c0] sm:$0xff]
  %v80 = vld [vmem:[%s0 + $0x1c8] sm:$0xff]
  %v81 = vld [vmem:[%s0 + $0x1d0] sm:$0xff]
  %v82 = vld [vmem:[%s0 + $0x1d8] sm:$0xff]
  %v83 = vld [vmem:[%s0 + $0x1e0] sm:$0xff]
  %v84 = vld [vmem:[%s0 + $0x1e8] sm:$0xff]
  %v85 = vld [vmem:[%s0 + $0x1f0] sm:$0xff]
  %v86 = vld [vmem:[%s0 + $0x1f8] sm:$0xff]
  %v87 = vld [vmem:[%s0 + $0x200] sm:$0xff]
  %v88 = vld [vmem:[%s0 + $0x208] sm:$0xff]
  %v89 = vld [vmem:[%s0 + $0x210] sm:$0xff]
  %v90 = vld [vmem:[%s0 + $0x218] sm:$0xff]
  %v91 = vld [vmem:[%s0 + $0x220] sm:$0xff]
  %v92 = vld [vmem:[%s0 + $0x228] sm:$0xff]
  %v93 = vld [vmem:[%s0 + $0x230] sm:$0xff]
  %v94 = vld [vmem:[%s0 + $0x238] sm:$0xff]
  %v95 = vld [vmem:[%s0 + $0x240] sm:$0xff]
  %v96 = vld [vmem:[%s0 + $0x248] sm:$0xff]
  %v97 = vld [vmem:[%s0 + $0x250] sm:$0xff]
  %v98 = vld [vmem:[%s0 + $0x258] sm:$0xff]
  %v99 = vld [vmem:[%s0 + $0x260] sm:$0xff]
  %v100 = vld [vmem:[%s0 + $0x268] sm:$0xff]
  %v101 = vld [vmem:[%s0 + $0x270] sm:$0xff]
  %v102 = vld [vmem:[%s0 + $0x278] sm:$0xff]
  %v103 = vld [vmem:[%s1] sm:$0xff]
  %v104 = vld [vmem:[%s1 + $0x8] sm:$0xff]
  %v105 = vld [vmem:[%s1 + $0x10] sm:$0xff]
  %v106 = vld [vmem:[%s1 + $0x18] sm:$0xff]
  %v107 = vld [vmem:[%s1 + $0x20] sm:$0xff]
  %v108 = vld [vmem:[%s1 + $0x28] sm:$0xff]
  %v109 = vld [vmem:[%s1 + $0x30] sm:$0xff]
  %v110 = vld [vmem:[%s1 + $0x38] sm:$0xff]
  %v111 = vld [vmem:[%s1 + $0x40] sm:$0xff]
  %v112 = vld [vmem:[%s1 + $0x48] sm:$0xff]
  %v113 = vld [vmem:[%s1 + $0x50] sm:$0xff]
  %v114 = vld [vmem:[%s1 + $0x58] sm:$0xff]
  %v115 = vld [vmem:[%s1 + $0x60] sm:$0xff]
  %v116 = vld [vmem:[%s1 + $0x68] sm:$0xff]
  %v117 = vld [vmem:[%s1 + $0x70] sm:$0xff]
  %v118 = vld [vmem:[%s1 + $0x78] sm:$0xff]
  %v119 = vld [vmem:[%s1 + $0x80] sm:$0xff]
  %v120 = vld [vmem:[%s1 + $0x88] sm:$0xff]
  %v121 = vld [vmem:[%s1 + $0x90] sm:$0xff]
  %v122 = vld [vmem:[%s1 + $0x98] sm:$0xff]
  %v123 = vld [vmem:[%s1 + $0xa0] sm:$0xff]
  %v124 = vld [vmem:[%s1 + $0xa8] sm:$0xff]
  %v125 = vld [vmem:[%s1 + $0xb0] sm:$0xff]
  %v126 = vld [vmem:[%s1 + $0xb8] sm:$0xff]
  %v127 = vld [vmem:[%s1 + $0xc0] sm:$0xff]
  %v128 = vld [vmem:[%s1 + $0xc8] sm:$0xff]
  %v129 = vld [vmem:[%s1 + $0xd0] sm:$0xff]
  %v130 = vld [vmem:[%s1 + $0xd8] sm:$0xff]
  %v131 = vld [vmem:[%s1 + $0xe0] sm:$0xff]
  %v132 = vld [vmem:[%s1 + $0xe8] sm:$0xff]
  %v133 = vld [vmem:[%s1 + $0xf0] sm:$0xff]
  %v134 = vld [vmem:[%s1 + $0xf8] sm:$0xff]
  %v135 = vld [vmem:[%s1 + $0x100] sm:$0xff]
  %v136 = vld [vmem:[%s1 + $0x108] sm:$0xff]
  %v137 = vld [vmem:[%s1 + $0x110] sm:$0xff]
  %v138 = vld [vmem:[%s1 + $0x118] sm:$0xff]
  %v139 = vld [vmem:[%s1 + $0x120] sm:$0xff]
  %v140 = vld [vmem:[%s1 + $0x128] sm:$0xff]
  %v141 = vld [vmem:[%s1 + $0x130] sm:$0xff]
  %v142 = vld [vmem:[%s1 + $0x138] sm:$0xff]
  %v143 = vld [vmem:[%s1 + $0x140] sm:$0xff]
  %v144 = vld [vmem:[%s1 + $0x148] sm:$0xff]
  %v145 = vld [vmem:[%s1 + $0x150] sm:$0xff]
  %v146 = vld [vmem:[%s1 + $0x158] sm:$0xff]
  %v147 = vld [vmem:[%s1 + $0x160] sm:$0xff]
  %v148 = vld [vmem:[%s1 + $0x168] sm:$0xff]
  %v149 = vld [vmem:[%s1 + $0x170] sm:$0xff]
  %v150 = vld [vmem:[%s1 + $0x178] sm:$0xff]
  %v151 = vld [vmem:[%s1 + $0x180] sm:$0xff]
  %v152 = vld [vmem:[%s1 + $0x188] sm:$0xff]
  %v153 = vld [vmem:[%s1 + $0x190] sm:$0xff]
  %v154 = vld [vmem:[%s1 + $0x198] sm:$0xff]
  %v155 = vld [vmem:[%s1 + $0x1a0] sm:$0xff]
  %v156 = vld [vmem:[%s1 + $0x1a8] sm:$0xff]
  %v157 = vld [vmem:[%s1 + $0x1b0] sm:$0xff]
  %v158 = vld [vmem:[%s1 + $0x1b8] sm:$0xff]
  %v159 = vld [vmem:[%s1 + $0x1c0] sm:$0xff]
  %v160 = vld [vmem:[%s1 + $0x1c8] sm:$0xff]
  %v161 = vld [vmem:[%s1 + $0x1d0] sm:$0xff]
  %v162 = vld [vmem:[%s1 + $0x1d8] sm:$0xff]
  %v163 = vld [vmem:[%s1 + $0x1e0] sm:$0xff]
  %v164 = vld [vmem:[%s1 + $0x1e8] sm:$0xff]
  %v165 = vld [vmem:[%s1 + $0x1f0] sm:$0xff]
  %v166 = vld [vmem:[%s1 + $0x1f8] sm:$0xff]
  %v167 = vld [vmem:[%s1 + $0x200] sm:$0xff]
  %v168 = vld [vmem:[%s1 + $0x208] sm:$0xff]
  %v169 = vld [vmem:[%s1 + $0x210] sm:$0xff]
  %v170 = vld [vmem:[%s1 + $0x218] sm:$0xff]
  %v171 = vld [vmem:[%s1 + $0x220] sm:$0xff]
  %v172 = vld [vmem:[%s1 + $0x228] sm:$0xff]
  %v173 = vld [vmem:[%s1 + $0x230] sm:$0xff]
  %v174 = vld [vmem:[%s1 + $0x238] sm:$0xff]
  %v175 = vld [vmem:[%s1 + $0x240] sm:$0xff]
  %v176 = vld [vmem:[%s1 + $0x248] sm:$0xff]
  %v177 = vld [vmem:[%s1 + $0x250] sm:$0xff]
  %v178 = vld [vmem:[%s1 + $0x258] sm:$0xff]
  %v179 = vld [vmem:[%s1 + $0x260] sm:$0xff]
  %v180 = vld [vmem:[%s1 + $0x268] sm:$0xff]
  %v181 = vld [vmem:[%s1 + $0x270] sm:$0xff]
  %v182 = vld [vmem:[%s1 + $0x278] sm:$0xff]
  %v183 = vld [vmem:[%s2] sm:$0x1]
  %v185 = vlaneseq
  %v186 = vshrl.u32 %v185, 7
  %v187 = vsub.s32 0, %v186
  %v188 = vrot.slane %v183, %v187
  %190 = vmatprep.subr.mxu0 0.0
  %191 = vmatpush1.msra.mxu0 %v103
  %192 = vmatprep.subr.mxu0 0.0
  %193 = vmatpush1.msra.mxu0 %v104
  %194 = vmatprep.subr.mxu0 0.0
  %195 = vmatpush1.msra.mxu0 %v105
  %196 = vmatprep.subr.mxu0 0.0
  %197 = vmatpush1.msra.mxu0 %v106
  %198 = vmatprep.subr.mxu0 0.0
  %199 = vmatpush1.msra.mxu0 %v107
  %200 = vmatprep.subr.mxu0 0.0
  %201 = vmatpush1.msra.mxu0 %v108
  %202 = vmatprep.subr.mxu0 0.0
  %203 = vmatpush1.msra.mxu0 %v109
  %204 = vmatprep.subr.mxu0 0.0
  %205 = vmatpush1.msra.mxu0 %v110
  %206 = vmatprep.subr.mxu0 0.0
  %207 = vmatpush1.msra.mxu0 %v111
  %208 = vmatprep.subr.mxu0 0.0
  %209 = vmatpush1.msra.mxu0 %v112
  %210 = vmatprep.subr.mxu0 0.0
  %211 = vmatpush1.msra.mxu0 %v113
  %212 = vmatprep.subr.mxu0 0.0
  %213 = vmatpush1.msra.mxu0 %v114
  %214 = vmatprep.subr.mxu0 0.0
  %215 = vmatpush1.msra.mxu0 %v115
  %216 = vmatprep.subr.mxu0 0.0
  %217 = vmatpush1.msra.mxu0 %v116
  %218 = vmatprep.subr.mxu0 0.0
  %219 = vmatpush1.msra.mxu0 %v117
  %220 = vmatprep.subr.mxu0 0.0
  %221 = vmatpush1.msra.mxu0 %v118
  %222 = vmatprep.subr.mxu0 0.0
  %223 = vmatpush1.msra.mxu0 %v119
  %224 = vmatprep.subr.mxu0 0.0
  %225 = vmatpush1.msra.mxu0 %v120
  %226 = vmatprep.subr.mxu0 0.0
  %227 = vmatpush1.msra.mxu0 %v121
  %228 = vmatprep.subr.mxu0 0.0
  %229 = vmatpush1.msra.mxu0 %v122
  %230 = vmatprep.subr.mxu0 0.0
  %231 = vmatpush1.msra.mxu0 %v123
  %232 = vmatprep.subr.mxu0 0.0
  %233 = vmatpush1.msra.mxu0 %v124
  %234 = vmatprep.subr.mxu0 0.0
  %235 = vmatpush1.msra.mxu0 %v125
  %236 = vmatprep.subr.mxu0 0.0
  %237 = vmatpush1.msra.mxu0 %v126
  %238 = vmatprep.subr.mxu0 0.0
  %239 = vmatpush1.msra.mxu0 %v127
  %240 = vmatprep.subr.mxu0 0.0
  %241 = vmatpush1.msra.mxu0 %v128
  %242 = vmatprep.subr.mxu0 0.0
  %243 = vmatpush1.msra.mxu0 %v129
  %244 = vmatprep.subr.mxu0 0.0
  %245 = vmatpush1.msra.mxu0 %v130
  %246 = vmatprep.subr.mxu0 0.0
  %247 = vmatpush1.msra.mxu0 %v131
  %248 = vmatprep.subr.mxu0 0.0
  %249 = vmatpush1.msra.mxu0 %v132
  %250 = vmatprep.subr.mxu0 0.0
  %251 = vmatpush1.msra.mxu0 %v133
  %252 = vmatprep.subr.mxu0 0.0
  %253 = vmatpush1.msra.mxu0 %v134
  %254 = vmatprep.mubr.f32.mxu0 %v24
  %255 = vmatmul.mubr.f32.gmra.mrb[0].mxu0 %v23
  %v256 = vpop.f32.mrb[0].mxu0
  %v257 = vadd.f32 %v188, %v256
  %v258 = vpop.f32.mrb[0].mxu0
  %259 = vmatprep.mubr.f32.mxu0 %v29
  %260 = vmatmul.mubr.f32.gmra.mrb[0].mxu0 %v28
  %v261 = vpop.f32.mrb[0].mxu0
  %v262 = vadd.f32 %v188, %v261
  %v263 = vpop.f32.mrb[0].mxu0
  %264 = vmatprep.mubr.f32.mxu0 %v34
  %265 = vmatmul.mubr.f32.gmra.mrb[0].mxu0 %v33
  %v266 = vpop.f32.mrb[0].mxu0
  %v267 = vadd.f32 %v188, %v266
  %v268 = vpop.f32.mrb[0].mxu0
  %269 = vmatprep.mubr.f32.mxu0 %v39
  %270 = vmatmul.mubr.f32.gmra.mrb[0].mxu0 %v38
  %v271 = vpop.f32.mrb[0].mxu0
  %v272 = vadd.f32 %v188, %v271
  %v273 = vpop.f32.mrb[0].mxu0
  %274 = vmatprep.mubr.f32.mxu0 %v44
  %275 = vmatmul.mubr.f32.gmra.mrb[0].mxu0 %v43
  %v276 = vpop.f32.mrb[0].mxu0
  %v277 = vadd.f32 %v188, %v276
  %v278 = vpop.f32.mrb[0].mxu0
  %279 = vmatprep.mubr.f32.mxu0 %v49
  %280 = vmatmul.mubr.f32.gmra.mrb[0].mxu0 %v48
  %v281 = vpop.f32.mrb[0].mxu0
  %v282 = vadd.f32 %v188, %v281
  %v283 = vpop.f32.mrb[0].mxu0
  %284 = vmatprep.mubr.f32.mxu0 %v54
  %285 = vmatmul.mubr.f32.gmra.mrb[0].mxu0 %v53
  %v286 = vpop.f32.mrb[0].mxu0
  %v287 = vadd.f32 %v188, %v286
  %v288 = vpop.f32.mrb[0].mxu0
  %289 = vmatprep.mubr.f32.mxu0 %v59
  %290 = vmatmul.mubr.f32.gmra.mrb[0].mxu0 %v58
  %v291 = vpop.f32.mrb[0].mxu0
  %v292 = vadd.f32 %v188, %v291
  %v293 = vpop.f32.mrb[0].mxu0
  %294 = vmatprep.mubr.f32.mxu0 %v64
  %295 = vmatmul.mubr.f32.gmra.mrb[0].mxu0 %v63
  %v296 = vpop.f32.mrb[0].mxu0
  %v297 = vadd.f32 %v188, %v296
  %v298 = vpop.f32.mrb[0].mxu0
  %299 = vmatprep.mubr.f32.mxu0 %v69
  %300 = vmatmul.mubr.f32.gmra.mrb[0].mxu0 %v68
  %v301 = vpop.f32.mrb[0].mxu0
  %v302 = vadd.f32 %v188, %v301
  %v303 = vpop.f32.mrb[0].mxu0
  %304 = vmatprep.mubr.f32.mxu0 %v74
  %305 = vmatmul.mubr.f32.gmra.mrb[0].mxu0 %v73
  %v306 = vpop.f32.mrb[0].mxu0
  %v307 = vadd.f32 %v188, %v306
  %v308 = vpop.f32.mrb[0].mxu0
  %309 = vmatprep.mubr.f32.mxu0 %v79
  %310 = vmatmul.mubr.f32.gmra.mrb[0].mxu0 %v78
  %v311 = vpop.f32.mrb[0].mxu0
  %v312 = vadd.f32 %v188, %v311
  %v313 = vpop.f32.mrb[0].mxu0
  %314 = vmatprep.mubr.f32.mxu0 %v84
  %315 = vmatmul.mubr.f32.gmra.mrb[0].mxu0 %v83
  %v316 = vpop.f32.mrb[0].mxu0
  %v317 = vadd.f32 %v188, %v316
  %v318 = vpop.f32.mrb[0].mxu0
  %319 = vmatprep.mubr.f32.mxu0 %v89
  %320 = vmatmul.mubr.f32.gmra.mrb[0].mxu0 %v88
  %v321 = vpop.f32.mrb[0].mxu0
  %v322 = vadd.f32 %v188, %v321
  %v323 = vpop.f32.mrb[0].mxu0
  %324 = vmatprep.mubr.f32.mxu0 %v94
  %325 = vmatmul.mubr.f32.gmra.mrb[0].mxu0 %v93
  %v326 = vpop.f32.mrb[0].mxu0
  %v327 = vadd.f32 %v188, %v326
  %v328 = vpop.f32.mrb[0].mxu0
  %329 = vmatprep.mubr.f32.mxu0 %v99
  %330 = vmatmul.mubr.f32.gmra.mrb[0].mxu0 %v98
  %v331 = vpop.f32.mrb[0].mxu0
  %v332 = vadd.f32 %v188, %v331
  %v333 = vpop.f32.mrb[0].mxu0
  %334 = vdwg.mxu0
  %335 = vmatprep.subr.mxu0 0.0
  %336 = vmatpush1.msra.mxu0 %v135
  %337 = vmatprep.subr.mxu0 0.0
  %338 = vmatpush1.msra.mxu0 %v136
  %339 = vmatprep.subr.mxu0 0.0
  %340 = vmatpush1.msra.mxu0 %v137
  %341 = vmatprep.subr.mxu0 0.0
  %342 = vmatpush1.msra.mxu0 %v138
  %343 = vmatprep.subr.mxu0 0.0
  %344 = vmatpush1.msra.mxu0 %v139
  %345 = vmatprep.subr.mxu0 0.0
  %346 = vmatpush1.msra.mxu0 %v140
  %347 = vmatprep.subr.mxu0 0.0
  %348 = vmatpush1.msra.mxu0 %v141
  %349 = vmatprep.subr.mxu0 0.0
  %350 = vmatpush1.msra.mxu0 %v142
  %351 = vmatprep.subr.mxu0 0.0
  %352 = vmatpush1.msra.mxu0 %v143
  %353 = vmatprep.subr.mxu0 0.0
  %354 = vmatpush1.msra.mxu0 %v144
  %355 = vmatprep.subr.mxu0 0.0
  %356 = vmatpush1.msra.mxu0 %v145
  %357 = vmatprep.subr.mxu0 0.0
  %358 = vmatpush1.msra.mxu0 %v146
  %359 = vmatprep.subr.mxu0 0.0
  %360 = vmatpush1.msra.mxu0 %v147
  %361 = vmatprep.subr.mxu0 0.0
  %362 = vmatpush1.msra.mxu0 %v148
  %363 = vmatprep.subr.mxu0 0.0
  %364 = vmatpush1.msra.mxu0 %v149
  %365 = vmatprep.subr.mxu0 0.0
  %366 = vmatpush1.msra.mxu0 %v150
  %367 = vmatprep.subr.mxu0 0.0
  %368 = vmatpush1.msra.mxu0 %v151
  %369 = vmatprep.subr.mxu0 0.0
  %370 = vmatpush1.msra.mxu0 %v152
  %371 = vmatprep.subr.mxu0 0.0
  %372 = vmatpush1.msra.mxu0 %v153
  %373 = vmatprep.subr.mxu0 0.0
  %374 = vmatpush1.msra.mxu0 %v154
  %375 = vmatprep.subr.mxu0 0.0
  %376 = vmatpush1.msra.mxu0 %v155
  %377 = vmatprep.subr.mxu0 0.0
  %378 = vmatpush1.msra.mxu0 %v156
  %379 = vmatprep.subr.mxu0 0.0
  %380 = vmatpush1.msra.mxu0 %v157
  %381 = vmatprep.subr.mxu0 0.0
  %382 = vmatpush1.msra.mxu0 %v158
  %383 = vmatprep.subr.mxu0 0.0
  %384 = vmatpush1.msra.mxu0 %v159
  %385 = vmatprep.subr.mxu0 0.0
  %386 = vmatpush1.msra.mxu0 %v160
  %387 = vmatprep.subr.mxu0 0.0
  %388 = vmatpush1.msra.mxu0 %v161
  %389 = vmatprep.subr.mxu0 0.0
  %390 = vmatpush1.msra.mxu0 %v162
  %391 = vmatprep.subr.mxu0 0.0
  %392 = vmatpush1.msra.mxu0 %v163
  %393 = vmatprep.subr.mxu0 0.0
  %394 = vmatpush1.msra.mxu0 %v164
  %395 = vmatprep.subr.mxu0 0.0
  %396 = vmatpush1.msra.mxu0 %v165
  %397 = vmatprep.subr.mxu0 0.0
  %398 = vmatpush1.msra.mxu0 %v166
  %399 = vmatprep.mubr.f32.mxu0 %v26
  %400 = vmatmul.mubr.f32.gmra.mrb[0].mxu0 %v25
  %v401 = vpop.f32.mrb[0].mxu0
  %v402 = vadd.f32 %v257, %v401
  %v403 = vpop.f32.mrb[0].mxu0
  %404 = vmatprep.mubr.f32.mxu0 %v31
  %405 = vmatmul.mubr.f32.gmra.mrb[0].mxu0 %v30
  %v406 = vpop.f32.mrb[0].mxu0
  %v407 = vadd.f32 %v262, %v406
  %v408 = vpop.f32.mrb[0].mxu0
  %409 = vmatprep.mubr.f32.mxu0 %v36
  %410 = vmatmul.mubr.f32.gmra.mrb[0].mxu0 %v35
  %v411 = vpop.f32.mrb[0].mxu0
  %v412 = vadd.f32 %v267, %v411
  %v413 = vpop.f32.mrb[0].mxu0
  %414 = vmatprep.mubr.f32.mxu0 %v41
  %415 = vmatmul.mubr.f32.gmra.mrb[0].mxu0 %v40
  %v416 = vpop.f32.mrb[0].mxu0
  %v417 = vadd.f32 %v272, %v416
  %v418 = vpop.f32.mrb[0].mxu0
  %419 = vmatprep.mubr.f32.mxu0 %v46
  %420 = vmatmul.mubr.f32.gmra.mrb[0].mxu0 %v45
  %v421 = vpop.f32.mrb[0].mxu0
  %v422 = vadd.f32 %v277, %v421
  %v423 = vpop.f32.mrb[0].mxu0
  %424 = vmatprep.mubr.f32.mxu0 %v51
  %425 = vmatmul.mubr.f32.gmra.mrb[0].mxu0 %v50
  %v426 = vpop.f32.mrb[0].mxu0
  %v427 = vadd.f32 %v282, %v426
  %v428 = vpop.f32.mrb[0].mxu0
  %429 = vmatprep.mubr.f32.mxu0 %v56
  %430 = vmatmul.mubr.f32.gmra.mrb[0].mxu0 %v55
  %v431 = vpop.f32.mrb[0].mxu0
  %v432 = vadd.f32 %v287, %v431
  %v433 = vpop.f32.mrb[0].mxu0
  %434 = vmatprep.mubr.f32.mxu0 %v61
  %435 = vmatmul.mubr.f32.gmra.mrb[0].mxu0 %v60
  %v436 = vpop.f32.mrb[0].mxu0
  %v437 = vadd.f32 %v292, %v436
  %v438 = vpop.f32.mrb[0].mxu0
  %439 = vmatprep.mubr.f32.mxu0 %v66
  %440 = vmatmul.mubr.f32.gmra.mrb[0].mxu0 %v65
  %v441 = vpop.f32.mrb[0].mxu0
  %v442 = vadd.f32 %v297, %v441
  %v443 = vpop.f32.mrb[0].mxu0
  %444 = vmatprep.mubr.f32.mxu0 %v71
  %445 = vmatmul.mubr.f32.gmra.mrb[0].mxu0 %v70
  %v446 = vpop.f32.mrb[0].mxu0
  %v447 = vadd.f32 %v302, %v446
  %v448 = vpop.f32.mrb[0].mxu0
  %449 = vmatprep.mubr.f32.mxu0 %v76
  %450 = vmatmul.mubr.f32.gmra.mrb[0].mxu0 %v75
  %v451 = vpop.f32.mrb[0].mxu0
  %v452 = vadd.f32 %v307, %v451
  %v453 = vpop.f32.mrb[0].mxu0
  %454 = vmatprep.mubr.f32.mxu0 %v81
  %455 = vmatmul.mubr.f32.gmra.mrb[0].mxu0 %v80
  %v456 = vpop.f32.mrb[0].mxu0
  %v457 = vadd.f32 %v312, %v456
  %v458 = vpop.f32.mrb[0].mxu0
  %459 = vmatprep.mubr.f32.mxu0 %v86
  %460 = vmatmul.mubr.f32.gmra.mrb[0].mxu0 %v85
  %v461 = vpop.f32.mrb[0].mxu0
  %v462 = vadd.f32 %v317, %v461
  %v463 = vpop.f32.mrb[0].mxu0
  %464 = vmatprep.mubr.f32.mxu0 %v91
  %465 = vmatmul.mubr.f32.gmra.mrb[0].mxu0 %v90
  %v466 = vpop.f32.mrb[0].mxu0
  %v467 = vadd.f32 %v322, %v466
  %v468 = vpop.f32.mrb[0].mxu0
  %469 = vmatprep.mubr.f32.mxu0 %v96
  %470 = vmatmul.mubr.f32.gmra.mrb[0].mxu0 %v95
  %v471 = vpop.f32.mrb[0].mxu0
  %v472 = vadd.f32 %v327, %v471
  %v473 = vpop.f32.mrb[0].mxu0
  %474 = vmatprep.mubr.f32.mxu0 %v101
  %475 = vmatmul.mubr.f32.gmra.mrb[0].mxu0 %v100
  %v476 = vpop.f32.mrb[0].mxu0
  %v477 = vadd.f32 %v332, %v476
  %v478 = vpop.f32.mrb[0].mxu0
  %479 = vdwg.mxu0
  %480 = vmatprep.subr.mxu0 0.0
  %481 = vmatpush1.msra.mxu0 %v167
  %482 = vmatprep.subr.mxu0 0.0
  %483 = vmatpush1.msra.mxu0 %v168
  %484 = vmatprep.subr.mxu0 0.0
  %485 = vmatpush1.msra.mxu0 %v169
  %486 = vmatprep.subr.mxu0 0.0
  %487 = vmatpush1.msra.mxu0 %v170
  %488 = vmatprep.subr.mxu0 0.0
  %489 = vmatpush1.msra.mxu0 %v171
  %490 = vmatprep.subr.mxu0 0.0
  %491 = vmatpush1.msra.mxu0 %v172
  %492 = vmatprep.subr.mxu0 0.0
  %493 = vmatpush1.msra.mxu0 %v173
  %494 = vmatprep.subr.mxu0 0.0
  %495 = vmatpush1.msra.mxu0 %v174
  %496 = vmatprep.subr.mxu0 0.0
  %497 = vmatpush1.msra.mxu0 %v175
  %498 = vmatprep.subr.mxu0 0.0
  %499 = vmatpush1.msra.mxu0 %v176
  %500 = vmatprep.subr.mxu0 0.0
  %501 = vmatpush1.msra.mxu0 %v177
  %502 = vmatprep.subr.mxu0 0.0
  %503 = vmatpush1.msra.mxu0 %v178
  %504 = vmatprep.subr.mxu0 0.0
  %505 = vmatpush1.msra.mxu0 %v179
  %506 = vmatprep.subr.mxu0 0.0
  %507 = vmatpush1.msra.mxu0 %v180
  %508 = vmatprep.subr.mxu0 0.0
  %509 = vmatpush1.msra.mxu0 %v181
  %510 = vmatprep.subr.mxu0 0.0
  %511 = vmatpush1.msra.mxu0 %v182
  %512 = vmatprep.subr.mxu0 0.0
  %513 = vmatpush1.msra.mxu0 0.0
  %514 = vmatprep.subr.mxu0 0.0
  %515 = vmatpush1.msra.mxu0 0.0
  %516 = vmatprep.subr.mxu0 0.0
  %517 = vmatpush1.msra.mxu0 0.0
  %518 = vmatprep.subr.mxu0 0.0
  %519 = vmatpush1.msra.mxu0 0.0
  %520 = vmatprep.subr.mxu0 0.0
  %521 = vmatpush1.msra.mxu0 0.0
  %522 = vmatprep.subr.mxu0 0.0
  %523 = vmatpush1.msra.mxu0 0.0
  %524 = vmatprep.subr.mxu0 0.0
  %525 = vmatpush1.msra.mxu0 0.0
  %526 = vmatprep.subr.mxu0 0.0
  %527 = vmatpush1.msra.mxu0 0.0
  %528 = vmatprep.subr.mxu0 0.0
  %529 = vmatpush1.msra.mxu0 0.0
  %530 = vmatprep.subr.mxu0 0.0
  %531 = vmatpush1.msra.mxu0 0.0
  %532 = vmatprep.subr.mxu0 0.0
  %533 = vmatpush1.msra.mxu0 0.0
  %534 = vmatprep.subr.mxu0 0.0
  %535 = vmatpush1.msra.mxu0 0.0
  %536 = vmatprep.subr.mxu0 0.0
  %537 = vmatpush1.msra.mxu0 0.0
  %538 = vmatprep.subr.mxu0 0.0
  %539 = vmatpush1.msra.mxu0 0.0
  %540 = vmatprep.subr.mxu0 0.0
  %541 = vmatpush1.msra.mxu0 0.0
  %542 = vmatprep.subr.mxu0 0.0
  %543 = vmatpush1.msra.mxu0 0.0
  %544 = vmatprep.mubr.f32.mxu0 0.0
  %545 = vmatmul.mubr.f32.gmra.mrb[0].mxu0 %v27
  %v546 = vpop.f32.mrb[0].mxu0
  %v547 = vadd.f32 %v402, %v546
  %v548 = vpop.f32.mrb[0].mxu0
  %549 = vmatprep.mubr.f32.mxu0 0.0
  %550 = vmatmul.mubr.f32.gmra.mrb[0].mxu0 %v32
  %v551 = vpop.f32.mrb[0].mxu0
  %v552 = vadd.f32 %v407, %v551
  %v553 = vpop.f32.mrb[0].mxu0
  %554 = vmatprep.mubr.f32.mxu0 0.0
  %555 = vmatmul.mubr.f32.gmra.mrb[0].mxu0 %v37
  %v556 = vpop.f32.mrb[0].mxu0
  %v557 = vadd.f32 %v412, %v556
  %v558 = vpop.f32.mrb[0].mxu0
  %559 = vmatprep.mubr.f32.mxu0 0.0
  %560 = vmatmul.mubr.f32.gmra.mrb[0].mxu0 %v42
  %v561 = vpop.f32.mrb[0].mxu0
  %v562 = vadd.f32 %v417, %v561
  %v563 = vpop.f32.mrb[0].mxu0
  %564 = vmatprep.mubr.f32.mxu0 0.0
  %565 = vmatmul.mubr.f32.gmra.mrb[0].mxu0 %v47
  %v566 = vpop.f32.mrb[0].mxu0
  %v567 = vadd.f32 %v422, %v566
  %v568 = vpop.f32.mrb[0].mxu0
  %569 = vmatprep.mubr.f32.mxu0 0.0
  %570 = vmatmul.mubr.f32.gmra.mrb[0].mxu0 %v52
  %v571 = vpop.f32.mrb[0].mxu0
  %v572 = vadd.f32 %v427, %v571
  %v573 = vpop.f32.mrb[0].mxu0
  %574 = vmatprep.mubr.f32.mxu0 0.0
  %575 = vmatmul.mubr.f32.gmra.mrb[0].mxu0 %v57
  %v576 = vpop.f32.mrb[0].mxu0
  %v577 = vadd.f32 %v432, %v576
  %v578 = vpop.f32.mrb[0].mxu0
  %579 = vmatprep.mubr.f32.mxu0 0.0
  %580 = vmatmul.mubr.f32.gmra.mrb[0].mxu0 %v62
  %v581 = vpop.f32.mrb[0].mxu0
  %v582 = vadd.f32 %v437, %v581
  %v583 = vpop.f32.mrb[0].mxu0
  %584 = vmatprep.mubr.f32.mxu0 0.0
  %585 = vmatmul.mubr.f32.gmra.mrb[0].mxu0 %v67
  %v586 = vpop.f32.mrb[0].mxu0
  %v587 = vadd.f32 %v442, %v586
  %v588 = vpop.f32.mrb[0].mxu0
  %589 = vmatprep.mubr.f32.mxu0 0.0
  %590 = vmatmul.mubr.f32.gmra.mrb[0].mxu0 %v72
  %v591 = vpop.f32.mrb[0].mxu0
  %v592 = vadd.f32 %v447, %v591
  %v593 = vpop.f32.mrb[0].mxu0
  %594 = vmatprep.mubr.f32.mxu0 0.0
  %595 = vmatmul.mubr.f32.gmra.mrb[0].mxu0 %v77
  %v596 = vpop.f32.mrb[0].mxu0
  %v597 = vadd.f32 %v452, %v596
  %v598 = vpop.f32.mrb[0].mxu0
  %599 = vmatprep.mubr.f32.mxu0 0.0
  %600 = vmatmul.mubr.f32.gmra.mrb[0].mxu0 %v82
  %v601 = vpop.f32.mrb[0].mxu0
  %v602 = vadd.f32 %v457, %v601
  %v603 = vpop.f32.mrb[0].mxu0
  %604 = vmatprep.mubr.f32.mxu0 0.0
  %605 = vmatmul.mubr.f32.gmra.mrb[0].mxu0 %v87
  %v606 = vpop.f32.mrb[0].mxu0
  %v607 = vadd.f32 %v462, %v606
  %v608 = vpop.f32.mrb[0].mxu0
  %609 = vmatprep.mubr.f32.mxu0 0.0
  %610 = vmatmul.mubr.f32.gmra.mrb[0].mxu0 %v92
  %v611 = vpop.f32.mrb[0].mxu0
  %v612 = vadd.f32 %v467, %v611
  %v613 = vpop.f32.mrb[0].mxu0
  %614 = vmatprep.mubr.f32.mxu0 0.0
  %615 = vmatmul.mubr.f32.gmra.mrb[0].mxu0 %v97
  %v616 = vpop.f32.mrb[0].mxu0
  %v617 = vadd.f32 %v472, %v616
  %v618 = vpop.f32.mrb[0].mxu0
  %619 = vmatprep.mubr.f32.mxu0 0.0
  %620 = vmatmul.mubr.f32.gmra.mrb[0].mxu0 %v102
  %v621 = vpop.f32.mrb[0].mxu0
  %v622 = vadd.f32 %v477, %v621
  %v623 = vpop.f32.mrb[0].mxu0
  %624 = vdwg.mxu0
  %v625 = vmax.f32 %v547, 0.0
  %v626 = vmax.f32 %v552, 0.0
  %v627 = vmax.f32 %v557, 0.0
  %v628 = vmax.f32 %v562, 0.0
  %v629 = vmax.f32 %v567, 0.0
  %v630 = vmax.f32 %v572, 0.0
  %v631 = vmax.f32 %v577, 0.0
  %v632 = vmax.f32 %v582, 0.0
  %v633 = vmax.f32 %v587, 0.0
  %v634 = vmax.f32 %v592, 0.0
  %v635 = vmax.f32 %v597, 0.0
  %v636 = vmax.f32 %v602, 0.0
  %v637 = vmax.f32 %v607, 0.0
  %v638 = vmax.f32 %v612, 0.0
  %v639 = vmax.f32 %v617, 0.0
  %v640 = vmax.f32 %v622, 0.0
  %v641 = vld [vmem:[%s3] sm:$0xff]
  %v642 = vld [vmem:[%s3 + $0x8] sm:$0xff]
  %v643 = vld [vmem:[%s3 + $0x10] sm:$0xff]
  %v644 = vld [vmem:[%s3 + $0x18] sm:$0xff]
  %v645 = vld [vmem:[%s3 + $0x20] sm:$0xff]
  %v646 = vld [vmem:[%s3 + $0x28] sm:$0xff]
  %v647 = vld [vmem:[%s3 + $0x30] sm:$0xff]
  %v648 = vld [vmem:[%s3 + $0x38] sm:$0xff]
  %v649 = vld [vmem:[%s3 + $0x40] sm:$0xff]
  %v650 = vld [vmem:[%s3 + $0x48] sm:$0xff]
  %v651 = vld [vmem:[%s3 + $0x50] sm:$0xff]
  %v652 = vld [vmem:[%s3 + $0x58] sm:$0xff]
  %v653 = vld [vmem:[%s3 + $0x60] sm:$0xff]
  %v654 = vld [vmem:[%s3 + $0x68] sm:$0xff]
  %v655 = vld [vmem:[%s3 + $0x70] sm:$0xff]
  %v656 = vld [vmem:[%s3 + $0x78] sm:$0xff]
  %v657 = vld [vmem:[%s4] sm:$0xff]
  %v658 = vld [vmem:[%s4 + $0x8] sm:$0xff]
  %v659 = vld [vmem:[%s4 + $0x10] sm:$0xff]
  %v660 = vld [vmem:[%s4 + $0x18] sm:$0xff]
  %v661 = vld [vmem:[%s4 + $0x20] sm:$0xff]
  %v662 = vld [vmem:[%s4 + $0x28] sm:$0xff]
  %v663 = vld [vmem:[%s4 + $0x30] sm:$0xff]
  %v664 = vld [vmem:[%s4 + $0x38] sm:$0xff]
  %v665 = vld [vmem:[%s5] sm:$0x1]
  %v667 = vlaneseq
  %v668 = vshrl.u32 %v667, 7
  %v669 = vsub.s32 0, %v668
  %v670 = vrot.slane %v665, %v669
  %vm672 = vcmask 523264
  %v674 = vsel %vm672, %v641, 0
  %v677 = vsel %vm672, %v642, 0
  %v680 = vsel %vm672, %v643, 0
  %v683 = vsel %vm672, %v644, 0
  %v686 = vsel %vm672, %v645, 0
  %v689 = vsel %vm672, %v646, 0
  %v692 = vsel %vm672, %v647, 0
  %v695 = vsel %vm672, %v648, 0
  %v698 = vsel %vm672, %v649, 0
  %v701 = vsel %vm672, %v650, 0
  %v704 = vsel %vm672, %v651, 0
  %v707 = vsel %vm672, %v652, 0
  %v710 = vsel %vm672, %v653, 0
  %v713 = vsel %vm672, %v654, 0
  %v716 = vsel %vm672, %v655, 0
  %v719 = vsel %vm672, %v656, 0
  %721 = vmatprep.subr.mxu0 0.0
  %722 = vmatpush1.msra.mxu0 %v657
  %723 = vmatprep.subr.mxu0 0.0
  %724 = vmatpush1.msra.mxu0 %v658
  %725 = vmatprep.subr.mxu0 0.0
  %726 = vmatpush1.msra.mxu0 %v659
  %727 = vmatprep.subr.mxu0 0.0
  %728 = vmatpush1.msra.mxu0 %v660
  %729 = vmatprep.subr.mxu0 0.0
  %730 = vmatpush1.msra.mxu0 %v661
  %731 = vmatprep.subr.mxu0 0.0
  %732 = vmatpush1.msra.mxu0 %v662
  %733 = vmatprep.subr.mxu0 0.0
  %734 = vmatpush1.msra.mxu0 %v663
  %735 = vmatprep.subr.mxu0 0.0
  %736 = vmatpush1.msra.mxu0 %v664
  %737 = vmatprep.subr.mxu0 0.0
  %738 = vmatpush1.msra.mxu0 0.0
  %739 = vmatprep.subr.mxu0 0.0
  %740 = vmatpush1.msra.mxu0 0.0
  %741 = vmatprep.subr.mxu0 0.0
  %742 = vmatpush1.msra.mxu0 0.0
  %743 = vmatprep.subr.mxu0 0.0
  %744 = vmatpush1.msra.mxu0 0.0
  %745 = vmatprep.subr.mxu0 0.0
  %746 = vmatpush1.msra.mxu0 0.0
  %747 = vmatprep.subr.mxu0 0.0
  %748 = vmatpush1.msra.mxu0 0.0
  %749 = vmatprep.subr.mxu0 0.0
  %750 = vmatpush1.msra.mxu0 0.0
  %751 = vmatprep.subr.mxu0 0.0
  %752 = vmatpush1.msra.mxu0 0.0
  %753 = vmatprep.subr.mxu0 0.0
  %754 = vmatpush1.msra.mxu0 0.0
  %755 = vmatprep.subr.mxu0 0.0
  %756 = vmatpush1.msra.mxu0 0.0
  %757 = vmatprep.subr.mxu0 0.0
  %758 = vmatpush1.msra.mxu0 0.0
  %759 = vmatprep.subr.mxu0 0.0
  %760 = vmatpush1.msra.mxu0 0.0
  %761 = vmatprep.subr.mxu0 0.0
  %762 = vmatpush1.msra.mxu0 0.0
  %763 = vmatprep.subr.mxu0 0.0
  %764 = vmatpush1.msra.mxu0 0.0
  %765 = vmatprep.subr.mxu0 0.0
  %766 = vmatpush1.msra.mxu0 0.0
  %767 = vmatprep.subr.mxu0 0.0
  %768 = vmatpush1.msra.mxu0 0.0
  %769 = vmatprep.subr.mxu0 0.0
  %770 = vmatpush1.msra.mxu0 0.0
  %771 = vmatprep.subr.mxu0 0.0
  %772 = vmatpush1.msra.mxu0 0.0
  %773 = vmatprep.subr.mxu0 0.0
  %774 = vmatpush1.msra.mxu0 0.0
  %775 = vmatprep.subr.mxu0 0.0
  %776 = vmatpush1.msra.mxu0 0.0
  %777 = vmatprep.subr.mxu0 0.0
  %778 = vmatpush1.msra.mxu0 0.0
  %779 = vmatprep.subr.mxu0 0.0
  %780 = vmatpush1.msra.mxu0 0.0
  %781 = vmatprep.subr.mxu0 0.0
  %782 = vmatpush1.msra.mxu0 0.0
  %783 = vmatprep.subr.mxu0 0.0
  %784 = vmatpush1.msra.mxu0 0.0
  %785 = vmatprep.mubr.f32.mxu0 0.0
  %786 = vmatmul.mubr.f32.gmra.mrb[0].mxu0 %v674
  %v787 = vpop.f32.mrb[0].mxu0
  %v788 = vadd.f32 %v670, %v787
  %v789 = vpop.f32.mrb[0].mxu0
  %790 = vmatprep.mubr.f32.mxu0 0.0
  %791 = vmatmul.mubr.f32.gmra.mrb[0].mxu0 %v677
  %v792 = vpop.f32.mrb[0].mxu0
  %v793 = vadd.f32 %v670, %v792
  %v794 = vpop.f32.mrb[0].mxu0
  %795 = vmatprep.mubr.f32.mxu0 0.0
  %796 = vmatmul.mubr.f32.gmra.mrb[0].mxu0 %v680
  %v797 = vpop.f32.mrb[0].mxu0
  %v798 = vadd.f32 %v670, %v797
  %v799 = vpop.f32.mrb[0].mxu0
  %800 = vmatprep.mubr.f32.mxu0 0.0
  %801 = vmatmul.mubr.f32.gmra.mrb[0].mxu0 %v683
  %v802 = vpop.f32.mrb[0].mxu0
  %v803 = vadd.f32 %v670, %v802
  %v804 = vpop.f32.mrb[0].mxu0
  %805 = vmatprep.mubr.f32.mxu0 0.0
  %806 = vmatmul.mubr.f32.gmra.mrb[0].mxu0 %v686
  %v807 = vpop.f32.mrb[0].mxu0
  %v808 = vadd.f32 %v670, %v807
  %v809 = vpop.f32.mrb[0].mxu0
  %810 = vmatprep.mubr.f32.mxu0 0.0
  %811 = vmatmul.mubr.f32.gmra.mrb[0].mxu0 %v689
  %v812 = vpop.f32.mrb[0].mxu0
  %v813 = vadd.f32 %v670, %v812
  %v814 = vpop.f32.mrb[0].mxu0
  %815 = vmatprep.mubr.f32.mxu0 0.0
  %816 = vmatmul.mubr.f32.gmra.mrb[0].mxu0 %v692
  %v817 = vpop.f32.mrb[0].mxu0
  %v818 = vadd.f32 %v670, %v817
  %v819 = vpop.f32.mrb[0].mxu0
  %820 = vmatprep.mubr.f32.mxu0 0.0
  %821 = vmatmul.mubr.f32.gmra.mrb[0].mxu0 %v695
  %v822 = vpop.f32.mrb[0].mxu0
  %v823 = vadd.f32 %v670, %v822
  %v824 = vpop.f32.mrb[0].mxu0
  %825 = vmatprep.mubr.f32.mxu0 0.0
  %826 = vmatmul.mubr.f32.gmra.mrb[0].mxu0 %v698
  %v827 = vpop.f32.mrb[0].mxu0
  %v828 = vadd.f32 %v670, %v827
  %v829 = vpop.f32.mrb[0].mxu0
  %830 = vmatprep.mubr.f32.mxu0 0.0
  %831 = vmatmul.mubr.f32.gmra.mrb[0].mxu0 %v701
  %v832 = vpop.f32.mrb[0].mxu0
  %v833 = vadd.f32 %v670, %v832
  %v834 = vpop.f32.mrb[0].mxu0
  %835 = vmatprep.mubr.f32.mxu0 0.0
  %836 = vmatmul.mubr.f32.gmra.mrb[0].mxu0 %v704
  %v837 = vpop.f32.mrb[0].mxu0
  %v838 = vadd.f32 %v670, %v837
  %v839 = vpop.f32.mrb[0].mxu0
  %840 = vmatprep.mubr.f32.mxu0 0.0
  %841 = vmatmul.mubr.f32.gmra.mrb[0].mxu0 %v707
  %v842 = vpop.f32.mrb[0].mxu0
  %v843 = vadd.f32 %v670, %v842
  %v844 = vpop.f32.mrb[0].mxu0
  %845 = vmatprep.mubr.f32.mxu0 0.0
  %846 = vmatmul.mubr.f32.gmra.mrb[0].mxu0 %v710
  %v847 = vpop.f32.mrb[0].mxu0
  %v848 = vadd.f32 %v670, %v847
  %v849 = vpop.f32.mrb[0].mxu0
  %850 = vmatprep.mubr.f32.mxu0 0.0
  %851 = vmatmul.mubr.f32.gmra.mrb[0].mxu0 %v713
  %v852 = vpop.f32.mrb[0].mxu0
  %v853 = vadd.f32 %v670, %v852
  %v854 = vpop.f32.mrb[0].mxu0
  %855 = vmatprep.mubr.f32.mxu0 0.0
  %856 = vmatmul.mubr.f32.gmra.mrb[0].mxu0 %v716
  %v857 = vpop.f32.mrb[0].mxu0
  %v858 = vadd.f32 %v670, %v857
  %v859 = vpop.f32.mrb[0].mxu0
  %860 = vmatprep.mubr.f32.mxu0 0.0
  %861 = vmatmul.mubr.f32.gmra.mrb[0].mxu0 %v719
  %v862 = vpop.f32.mrb[0].mxu0
  %v863 = vadd.f32 %v670, %v862
  %v864 = vpop.f32.mrb[0].mxu0
  %865 = vdwg.mxu0
  %v866 = vadd.f32 %v625, %v788
  %v867 = vadd.f32 %v626, %v793
  %v868 = vadd.f32 %v627, %v798
  %v869 = vadd.f32 %v628, %v803
  %v870 = vadd.f32 %v629, %v808
  %v871 = vadd.f32 %v630, %v813
  %v872 = vadd.f32 %v631, %v818
  %v873 = vadd.f32 %v632, %v823
  %v874 = vadd.f32 %v633, %v828
  %v875 = vadd.f32 %v634, %v833
  %v876 = vadd.f32 %v635, %v838
  %v877 = vadd.f32 %v636, %v843
  %v878 = vadd.f32 %v637, %v848
  %v879 = vadd.f32 %v638, %v853
  %v880 = vadd.f32 %v639, %v858
  %v881 = vadd.f32 %v640, %v863
  %v882 = vmax.f32 %v866, 0.0
  %v883 = vmax.f32 %v867, 0.0
  %v884 = vmax.f32 %v868, 0.0
  %v885 = vmax.f32 %v869, 0.0
  %v886 = vmax.f32 %v870, 0.0
  %v887 = vmax.f32 %v871, 0.0
  %v888 = vmax.f32 %v872, 0.0
  %v889 = vmax.f32 %v873, 0.0
  %v890 = vmax.f32 %v874, 0.0
  %v891 = vmax.f32 %v875, 0.0
  %v892 = vmax.f32 %v876, 0.0
  %v893 = vmax.f32 %v877, 0.0
  %v894 = vmax.f32 %v878, 0.0
  %v895 = vmax.f32 %v879, 0.0
  %v896 = vmax.f32 %v880, 0.0
  %v897 = vmax.f32 %v881, 0.0
  %898 = vst.msk [vmem:[%s6] sm:$0xff] %vm672, %v882
  %899 = vst.msk [vmem:[%s6 + $0x8] sm:$0xff] %vm672, %v883
  %900 = vst.msk [vmem:[%s6 + $0x10] sm:$0xff] %vm672, %v884
  %901 = vst.msk [vmem:[%s6 + $0x18] sm:$0xff] %vm672, %v885
  %902 = vst.msk [vmem:[%s6 + $0x20] sm:$0xff] %vm672, %v886
  %903 = vst.msk [vmem:[%s6 + $0x28] sm:$0xff] %vm672, %v887
  %904 = vst.msk [vmem:[%s6 + $0x30] sm:$0xff] %vm672, %v888
  %905 = vst.msk [vmem:[%s6 + $0x38] sm:$0xff] %vm672, %v889
  %906 = vst.msk [vmem:[%s6 + $0x40] sm:$0xff] %vm672, %v890
  %907 = vst.msk [vmem:[%s6 + $0x48] sm:$0xff] %vm672, %v891
  %908 = vst.msk [vmem:[%s6 + $0x50] sm:$0xff] %vm672, %v892
  %909 = vst.msk [vmem:[%s6 + $0x58] sm:$0xff] %vm672, %v893
  %910 = vst.msk [vmem:[%s6 + $0x60] sm:$0xff] %vm672, %v894
  %911 = vst.msk [vmem:[%s6 + $0x68] sm:$0xff] %vm672, %v895
  %912 = vst.msk [vmem:[%s6 + $0x70] sm:$0xff] %vm672, %v896
  %913 = vst.msk [vmem:[%s6 + $0x78] sm:$0xff] %vm672, %v897
  // Predicated region
  $region26: #{ipt_head_encoder.7} parent=0 // pred_check
    _
  $region27: #{ipt_head_encoder.7} parent=0 // pred_check_branch
    %915 = sbr.rel (0) target = $region29
  $region28: #{ipt_head_encoder.7} parent=0 // pred_region
    _
  $region29: #{ipt_head_encoder.7} parent=0 // pred_fallthru
    _
  // Predicated region
  $region30: #{ipt_head_encoder.7} parent=0 // pred_check
    _
  $region31: #{ipt_head_encoder.7} parent=0 // pred_check_branch
    %917 = sbr.rel (0) target = $region33
  $region32: #{ipt_head_encoder.7} parent=0 // pred_region
    _
  $region33: #{ipt_head_encoder.7} parent=0 // pred_fallthru
    _

// kernel: ipt_head_encoder.8
$region0: #{ipt_head_encoder.8}
  #allocation0 [shape = 'u32[]', space=smem, size = 0x4, offset = 0x4, fixed_abs, tag = 'smem constant byte address 0x4 - core index']
  #allocation1 [shape = 'u32[144,128]{1,0:T(1,128)}', space=vmem, size = 0x12000, scoped, tag = 'internal scratch']
  %s0 = inlined_call_operand.vmem [shape: f32[32,640], index: 0, kind: input, shape index: {}]
  %s1 = inlined_call_operand.vmem [shape: f32[640,128], index: 1, kind: input, shape index: {}]
  %s2 = inlined_call_operand.vmem [shape: f32[1,128], index: 2, kind: input, shape index: {}]
  %s3 = inlined_call_operand.vmem [shape: f32[32,128], index: 3, kind: output, shape index: {}]
  %s4 = sld [smem:[#allocation0]]
  $region22: #{ipt_head_encoder.8} parent=0
    _
  %s6 = ssub.s32 1, %s4
  %s7 = scalar_select 0, %s6, %s4
  // Predicated region
  $region2: #{ipt_head_encoder.8} parent=0 // pred_check
    _
  $region3: #{ipt_head_encoder.8} parent=0 // pred_check_branch
    %9 = sbr.rel (0) target = $region5
  $region4: #{ipt_head_encoder.8} parent=0 // pred_region
    _
  $region5: #{ipt_head_encoder.8} parent=0 // pred_fallthru
    _
  // Predicated region
  $region6: #{ipt_head_encoder.8} parent=0 // pred_check
    _
  $region7: #{ipt_head_encoder.8} parent=0 // pred_check_branch
    %11 = sbr.rel (0) target = $region9
  $region8: #{ipt_head_encoder.8} parent=0 // pred_region
    _
  $region9: #{ipt_head_encoder.8} parent=0 // pred_fallthru
    _
  // Predicated region
  $region10: #{ipt_head_encoder.8} parent=0 // pred_check
    _
  $region11: #{ipt_head_encoder.8} parent=0 // pred_check_branch
    %13 = sbr.rel (0) target = $region13
  $region12: #{ipt_head_encoder.8} parent=0 // pred_region
    _
  $region13: #{ipt_head_encoder.8} parent=0 // pred_fallthru
    _
  %v14 = vld [vmem:[%s0] sm:$0xff]
  %v15 = vld [vmem:[%s0 + $0x8] sm:$0xff]
  %v16 = vld [vmem:[%s0 + $0x10] sm:$0xff]
  %v17 = vld [vmem:[%s0 + $0x18] sm:$0xff]
  %v18 = vld [vmem:[%s0 + $0x20] sm:$0xff]
  %v19 = vld [vmem:[%s0 + $0x28] sm:$0xff]
  %v20 = vld [vmem:[%s0 + $0x30] sm:$0xff]
  %v21 = vld [vmem:[%s0 + $0x38] sm:$0xff]
  %v22 = vld [vmem:[%s0 + $0x40] sm:$0xff]
  %v23 = vld [vmem:[%s0 + $0x48] sm:$0xff]
  %v24 = vld [vmem:[%s0 + $0x50] sm:$0xff]
  %v25 = vld [vmem:[%s0 + $0x58] sm:$0xff]
  %v26 = vld [vmem:[%s0 + $0x60] sm:$0xff]
  %v27 = vld [vmem:[%s0 + $0x68] sm:$0xff]
  %v28 = vld [vmem:[%s0 + $0x70] sm:$0xff]
  %v29 = vld [vmem:[%s0 + $0x78] sm:$0xff]
  %v30 = vld [vmem:[%s0 + $0x80] sm:$0xff]
  %v31 = vld [vmem:[%s0 + $0x88] sm:$0xff]
  %v32 = vld [vmem:[%s0 + $0x90] sm:$0xff]
  %v33 = vld [vmem:[%s0 + $0x98] sm:$0xff]
  %v34 = vld [vmem:[%s1] sm:$0xff]
  %v35 = vld [vmem:[%s1 + $0x8] sm:$0xff]
  %v36 = vld [vmem:[%s1 + $0x10] sm:$0xff]
  %v37 = vld [vmem:[%s1 + $0x18] sm:$0xff]
  %v38 = vld [vmem:[%s1 + $0x20] sm:$0xff]
  %v39 = vld [vmem:[%s1 + $0x28] sm:$0xff]
  %v40 = vld [vmem:[%s1 + $0x30] sm:$0xff]
  %v41 = vld [vmem:[%s1 + $0x38] sm:$0xff]
  %v42 = vld [vmem:[%s1 + $0x40] sm:$0xff]
  %v43 = vld [vmem:[%s1 + $0x48] sm:$0xff]
  %v44 = vld [vmem:[%s1 + $0x50] sm:$0xff]
  %v45 = vld [vmem:[%s1 + $0x58] sm:$0xff]
  %v46 = vld [vmem:[%s1 + $0x60] sm:$0xff]
  %v47 = vld [vmem:[%s1 + $0x68] sm:$0xff]
  %v48 = vld [vmem:[%s1 + $0x70] sm:$0xff]
  %v49 = vld [vmem:[%s1 + $0x78] sm:$0xff]
  %v50 = vld [vmem:[%s1 + $0x80] sm:$0xff]
  %v51 = vld [vmem:[%s1 + $0x88] sm:$0xff]
  %v52 = vld [vmem:[%s1 + $0x90] sm:$0xff]
  %v53 = vld [vmem:[%s1 + $0x98] sm:$0xff]
  %v54 = vld [vmem:[%s1 + $0xa0] sm:$0xff]
  %v55 = vld [vmem:[%s1 + $0xa8] sm:$0xff]
  %v56 = vld [vmem:[%s1 + $0xb0] sm:$0xff]
  %v57 = vld [vmem:[%s1 + $0xb8] sm:$0xff]
  %v58 = vld [vmem:[%s1 + $0xc0] sm:$0xff]
  %v59 = vld [vmem:[%s1 + $0xc8] sm:$0xff]
  %v60 = vld [vmem:[%s1 + $0xd0] sm:$0xff]
  %v61 = vld [vmem:[%s1 + $0xd8] sm:$0xff]
  %v62 = vld [vmem:[%s1 + $0xe0] sm:$0xff]
  %v63 = vld [vmem:[%s1 + $0xe8] sm:$0xff]
  %v64 = vld [vmem:[%s1 + $0xf0] sm:$0xff]
  %v65 = vld [vmem:[%s1 + $0xf8] sm:$0xff]
  %v66 = vld [vmem:[%s1 + $0x100] sm:$0xff]
  %v67 = vld [vmem:[%s1 + $0x108] sm:$0xff]
  %v68 = vld [vmem:[%s1 + $0x110] sm:$0xff]
  %v69 = vld [vmem:[%s1 + $0x118] sm:$0xff]
  %v70 = vld [vmem:[%s1 + $0x120] sm:$0xff]
  %v71 = vld [vmem:[%s1 + $0x128] sm:$0xff]
  %v72 = vld [vmem:[%s1 + $0x130] sm:$0xff]
  %v73 = vld [vmem:[%s1 + $0x138] sm:$0xff]
  %v74 = vld [vmem:[%s1 + $0x140] sm:$0xff]
  %v75 = vld [vmem:[%s1 + $0x148] sm:$0xff]
  %v76 = vld [vmem:[%s1 + $0x150] sm:$0xff]
  %v77 = vld [vmem:[%s1 + $0x158] sm:$0xff]
  %v78 = vld [vmem:[%s1 + $0x160] sm:$0xff]
  %v79 = vld [vmem:[%s1 + $0x168] sm:$0xff]
  %v80 = vld [vmem:[%s1 + $0x170] sm:$0xff]
  %v81 = vld [vmem:[%s1 + $0x178] sm:$0xff]
  %v82 = vld [vmem:[%s1 + $0x180] sm:$0xff]
  %v83 = vld [vmem:[%s1 + $0x188] sm:$0xff]
  %v84 = vld [vmem:[%s1 + $0x190] sm:$0xff]
  %v85 = vld [vmem:[%s1 + $0x198] sm:$0xff]
  %v86 = vld [vmem:[%s1 + $0x1a0] sm:$0xff]
  %v87 = vld [vmem:[%s1 + $0x1a8] sm:$0xff]
  %v88 = vld [vmem:[%s1 + $0x1b0] sm:$0xff]
  %v89 = vld [vmem:[%s1 + $0x1b8] sm:$0xff]
  %v90 = vld [vmem:[%s1 + $0x1c0] sm:$0xff]
  %v91 = vld [vmem:[%s1 + $0x1c8] sm:$0xff]
  %v92 = vld [vmem:[%s1 + $0x1d0] sm:$0xff]
  %v93 = vld [vmem:[%s1 + $0x1d8] sm:$0xff]
  %v94 = vld [vmem:[%s1 + $0x1e0] sm:$0xff]
  %v95 = vld [vmem:[%s1 + $0x1e8] sm:$0xff]
  %v96 = vld [vmem:[%s1 + $0x1f0] sm:$0xff]
  %v97 = vld [vmem:[%s1 + $0x1f8] sm:$0xff]
  %v98 = vld [vmem:[%s1 + $0x200] sm:$0xff]
  %v99 = vld [vmem:[%s1 + $0x208] sm:$0xff]
  %v100 = vld [vmem:[%s1 + $0x210] sm:$0xff]
  %v101 = vld [vmem:[%s1 + $0x218] sm:$0xff]
  %v102 = vld [vmem:[%s1 + $0x220] sm:$0xff]
  %v103 = vld [vmem:[%s1 + $0x228] sm:$0xff]
  %v104 = vld [vmem:[%s1 + $0x230] sm:$0xff]
  %v105 = vld [vmem:[%s1 + $0x238] sm:$0xff]
  %v106 = vld [vmem:[%s1 + $0x240] sm:$0xff]
  %v107 = vld [vmem:[%s1 + $0x248] sm:$0xff]
  %v108 = vld [vmem:[%s1 + $0x250] sm:$0xff]
  %v109 = vld [vmem:[%s1 + $0x258] sm:$0xff]
  %v110 = vld [vmem:[%s1 + $0x260] sm:$0xff]
  %v111 = vld [vmem:[%s1 + $0x268] sm:$0xff]
  %v112 = vld [vmem:[%s1 + $0x270] sm:$0xff]
  %v113 = vld [vmem:[%s1 + $0x278] sm:$0xff]
  %v114 = vld [vmem:[%s2] sm:$0x1]
  %v116 = vlaneseq
  %v117 = vshrl.u32 %v116, 7
  %v118 = vsub.s32 0, %v117
  %v119 = vrot.slane %v114, %v118
  %121 = vmatprep.subr.mxu0 0.0
  %122 = vmatpush1.msra.mxu0 %v34
  %123 = vmatprep.subr.mxu0 0.0
  %124 = vmatpush1.msra.mxu0 %v35
  %125 = vmatprep.subr.mxu0 0.0
  %126 = vmatpush1.msra.mxu0 %v36
  %127 = vmatprep.subr.mxu0 0.0
  %128 = vmatpush1.msra.mxu0 %v37
  %129 = vmatprep.subr.mxu0 0.0
  %130 = vmatpush1.msra.mxu0 %v38
  %131 = vmatprep.subr.mxu0 0.0
  %132 = vmatpush1.msra.mxu0 %v39
  %133 = vmatprep.subr.mxu0 0.0
  %134 = vmatpush1.msra.mxu0 %v40
  %135 = vmatprep.subr.mxu0 0.0
  %136 = vmatpush1.msra.mxu0 %v41
  %137 = vmatprep.subr.mxu0 0.0
  %138 = vmatpush1.msra.mxu0 %v42
  %139 = vmatprep.subr.mxu0 0.0
  %140 = vmatpush1.msra.mxu0 %v43
  %141 = vmatprep.subr.mxu0 0.0
  %142 = vmatpush1.msra.mxu0 %v44
  %143 = vmatprep.subr.mxu0 0.0
  %144 = vmatpush1.msra.mxu0 %v45
  %145 = vmatprep.subr.mxu0 0.0
  %146 = vmatpush1.msra.mxu0 %v46
  %147 = vmatprep.subr.mxu0 0.0
  %148 = vmatpush1.msra.mxu0 %v47
  %149 = vmatprep.subr.mxu0 0.0
  %150 = vmatpush1.msra.mxu0 %v48
  %151 = vmatprep.subr.mxu0 0.0
  %152 = vmatpush1.msra.mxu0 %v49
  %153 = vmatprep.subr.mxu0 0.0
  %154 = vmatpush1.msra.mxu0 %v50
  %155 = vmatprep.subr.mxu0 0.0
  %156 = vmatpush1.msra.mxu0 %v51
  %157 = vmatprep.subr.mxu0 0.0
  %158 = vmatpush1.msra.mxu0 %v52
  %159 = vmatprep.subr.mxu0 0.0
  %160 = vmatpush1.msra.mxu0 %v53
  %161 = vmatprep.subr.mxu0 0.0
  %162 = vmatpush1.msra.mxu0 %v54
  %163 = vmatprep.subr.mxu0 0.0
  %164 = vmatpush1.msra.mxu0 %v55
  %165 = vmatprep.subr.mxu0 0.0
  %166 = vmatpush1.msra.mxu0 %v56
  %167 = vmatprep.subr.mxu0 0.0
  %168 = vmatpush1.msra.mxu0 %v57
  %169 = vmatprep.subr.mxu0 0.0
  %170 = vmatpush1.msra.mxu0 %v58
  %171 = vmatprep.subr.mxu0 0.0
  %172 = vmatpush1.msra.mxu0 %v59
  %173 = vmatprep.subr.mxu0 0.0
  %174 = vmatpush1.msra.mxu0 %v60
  %175 = vmatprep.subr.mxu0 0.0
  %176 = vmatpush1.msra.mxu0 %v61
  %177 = vmatprep.subr.mxu0 0.0
  %178 = vmatpush1.msra.mxu0 %v62
  %179 = vmatprep.subr.mxu0 0.0
  %180 = vmatpush1.msra.mxu0 %v63
  %181 = vmatprep.subr.mxu0 0.0
  %182 = vmatpush1.msra.mxu0 %v64
  %183 = vmatprep.subr.mxu0 0.0
  %184 = vmatpush1.msra.mxu0 %v65
  %185 = vmatprep.mubr.f32.mxu0 %v15
  %186 = vmatmul.mubr.f32.gmra.mrb[0].mxu0 %v14
  %v187 = vpop.f32.mrb[0].mxu0
  %v188 = vadd.f32 %v119, %v187
  %v189 = vpop.f32.mrb[0].mxu0
  %190 = vmatprep.mubr.f32.mxu0 %v20
  %191 = vmatmul.mubr.f32.gmra.mrb[0].mxu0 %v19
  %v192 = vpop.f32.mrb[0].mxu0
  %v193 = vadd.f32 %v119, %v192
  %v194 = vpop.f32.mrb[0].mxu0
  %195 = vmatprep.mubr.f32.mxu0 %v25
  %196 = vmatmul.mubr.f32.gmra.mrb[0].mxu0 %v24
  %v197 = vpop.f32.mrb[0].mxu0
  %v198 = vadd.f32 %v119, %v197
  %v199 = vpop.f32.mrb[0].mxu0
  %200 = vmatprep.mubr.f32.mxu0 %v30
  %201 = vmatmul.mubr.f32.gmra.mrb[0].mxu0 %v29
  %v202 = vpop.f32.mrb[0].mxu0
  %v203 = vadd.f32 %v119, %v202
  %v204 = vpop.f32.mrb[0].mxu0
  %205 = vdwg.mxu0
  %206 = vmatprep.subr.mxu0 0.0
  %207 = vmatpush1.msra.mxu0 %v66
  %208 = vmatprep.subr.mxu0 0.0
  %209 = vmatpush1.msra.mxu0 %v67
  %210 = vmatprep.subr.mxu0 0.0
  %211 = vmatpush1.msra.mxu0 %v68
  %212 = vmatprep.subr.mxu0 0.0
  %213 = vmatpush1.msra.mxu0 %v69
  %214 = vmatprep.subr.mxu0 0.0
  %215 = vmatpush1.msra.mxu0 %v70
  %216 = vmatprep.subr.mxu0 0.0
  %217 = vmatpush1.msra.mxu0 %v71
  %218 = vmatprep.subr.mxu0 0.0
  %219 = vmatpush1.msra.mxu0 %v72
  %220 = vmatprep.subr.mxu0 0.0
  %221 = vmatpush1.msra.mxu0 %v73
  %222 = vmatprep.subr.mxu0 0.0
  %223 = vmatpush1.msra.mxu0 %v74
  %224 = vmatprep.subr.mxu0 0.0
  %225 = vmatpush1.msra.mxu0 %v75
  %226 = vmatprep.subr.mxu0 0.0
  %227 = vmatpush1.msra.mxu0 %v76
  %228 = vmatprep.subr.mxu0 0.0
  %229 = vmatpush1.msra.mxu0 %v77
  %230 = vmatprep.subr.mxu0 0.0
  %231 = vmatpush1.msra.mxu0 %v78
  %232 = vmatprep.subr.mxu0 0.0
  %233 = vmatpush1.msra.mxu0 %v79
  %234 = vmatprep.subr.mxu0 0.0
  %235 = vmatpush1.msra.mxu0 %v80
  %236 = vmatprep.subr.mxu0 0.0
  %237 = vmatpush1.msra.mxu0 %v81
  %238 = vmatprep.subr.mxu0 0.0
  %239 = vmatpush1.msra.mxu0 %v82
  %240 = vmatprep.subr.mxu0 0.0
  %241 = vmatpush1.msra.mxu0 %v83
  %242 = vmatprep.subr.mxu0 0.0
  %243 = vmatpush1.msra.mxu0 %v84
  %244 = vmatprep.subr.mxu0 0.0
  %245 = vmatpush1.msra.mxu0 %v85
  %246 = vmatprep.subr.mxu0 0.0
  %247 = vmatpush1.msra.mxu0 %v86
  %248 = vmatprep.subr.mxu0 0.0
  %249 = vmatpush1.msra.mxu0 %v87
  %250 = vmatprep.subr.mxu0 0.0
  %251 = vmatpush1.msra.mxu0 %v88
  %252 = vmatprep.subr.mxu0 0.0
  %253 = vmatpush1.msra.mxu0 %v89
  %254 = vmatprep.subr.mxu0 0.0
  %255 = vmatpush1.msra.mxu0 %v90
  %256 = vmatprep.subr.mxu0 0.0
  %257 = vmatpush1.msra.mxu0 %v91
  %258 = vmatprep.subr.mxu0 0.0
  %259 = vmatpush1.msra.mxu0 %v92
  %260 = vmatprep.subr.mxu0 0.0
  %261 = vmatpush1.msra.mxu0 %v93
  %262 = vmatprep.subr.mxu0 0.0
  %263 = vmatpush1.msra.mxu0 %v94
  %264 = vmatprep.subr.mxu0 0.0
  %265 = vmatpush1.msra.mxu0 %v95
  %266 = vmatprep.subr.mxu0 0.0
  %267 = vmatpush1.msra.mxu0 %v96
  %268 = vmatprep.subr.mxu0 0.0
  %269 = vmatpush1.msra.mxu0 %v97
  %270 = vmatprep.mubr.f32.mxu0 %v17
  %271 = vmatmul.mubr.f32.gmra.mrb[0].mxu0 %v16
  %v272 = vpop.f32.mrb[0].mxu0
  %v273 = vadd.f32 %v188, %v272
  %v274 = vpop.f32.mrb[0].mxu0
  %275 = vmatprep.mubr.f32.mxu0 %v22
  %276 = vmatmul.mubr.f32.gmra.mrb[0].mxu0 %v21
  %v277 = vpop.f32.mrb[0].mxu0
  %v278 = vadd.f32 %v193, %v277
  %v279 = vpop.f32.mrb[0].mxu0
  %280 = vmatprep.mubr.f32.mxu0 %v27
  %281 = vmatmul.mubr.f32.gmra.mrb[0].mxu0 %v26
  %v282 = vpop.f32.mrb[0].mxu0
  %v283 = vadd.f32 %v198, %v282
  %v284 = vpop.f32.mrb[0].mxu0
  %285 = vmatprep.mubr.f32.mxu0 %v32
  %286 = vmatmul.mubr.f32.gmra.mrb[0].mxu0 %v31
  %v287 = vpop.f32.mrb[0].mxu0
  %v288 = vadd.f32 %v203, %v287
  %v289 = vpop.f32.mrb[0].mxu0
  %290 = vdwg.mxu0
  %291 = vmatprep.subr.mxu0 0.0
  %292 = vmatpush1.msra.mxu0 %v98
  %293 = vmatprep.subr.mxu0 0.0
  %294 = vmatpush1.msra.mxu0 %v99
  %295 = vmatprep.subr.mxu0 0.0
  %296 = vmatpush1.msra.mxu0 %v100
  %297 = vmatprep.subr.mxu0 0.0
  %298 = vmatpush1.msra.mxu0 %v101
  %299 = vmatprep.subr.mxu0 0.0
  %300 = vmatpush1.msra.mxu0 %v102
  %301 = vmatprep.subr.mxu0 0.0
  %302 = vmatpush1.msra.mxu0 %v103
  %303 = vmatprep.subr.mxu0 0.0
  %304 = vmatpush1.msra.mxu0 %v104
  %305 = vmatprep.subr.mxu0 0.0
  %306 = vmatpush1.msra.mxu0 %v105
  %307 = vmatprep.subr.mxu0 0.0
  %308 = vmatpush1.msra.mxu0 %v106
  %309 = vmatprep.subr.mxu0 0.0
  %310 = vmatpush1.msra.mxu0 %v107
  %311 = vmatprep.subr.mxu0 0.0
  %312 = vmatpush1.msra.mxu0 %v108
  %313 = vmatprep.subr.mxu0 0.0
  %314 = vmatpush1.msra.mxu0 %v109
  %315 = vmatprep.subr.mxu0 0.0
  %316 = vmatpush1.msra.mxu0 %v110
  %317 = vmatprep.subr.mxu0 0.0
  %318 = vmatpush1.msra.mxu0 %v111
  %319 = vmatprep.subr.mxu0 0.0
  %320 = vmatpush1.msra.mxu0 %v112
  %321 = vmatprep.subr.mxu0 0.0
  %322 = vmatpush1.msra.mxu0 %v113
  %323 = vmatprep.subr.mxu0 0.0
  %324 = vmatpush1.msra.mxu0 0.0
  %325 = vmatprep.subr.mxu0 0.0
  %326 = vmatpush1.msra.mxu0 0.0
  %327 = vmatprep.subr.mxu0 0.0
  %328 = vmatpush1.msra.mxu0 0.0
  %329 = vmatprep.subr.mxu0 0.0
  %330 = vmatpush1.msra.mxu0 0.0
  %331 = vmatprep.subr.mxu0 0.0
  %332 = vmatpush1.msra.mxu0 0.0
  %333 = vmatprep.subr.mxu0 0.0
  %334 = vmatpush1.msra.mxu0 0.0
  %335 = vmatprep.subr.mxu0 0.0
  %336 = vmatpush1.msra.mxu0 0.0
  %337 = vmatprep.subr.mxu0 0.0
  %338 = vmatpush1.msra.mxu0 0.0
  %339 = vmatprep.subr.mxu0 0.0
  %340 = vmatpush1.msra.mxu0 0.0
  %341 = vmatprep.subr.mxu0 0.0
  %342 = vmatpush1.msra.mxu0 0.0
  %343 = vmatprep.subr.mxu0 0.0
  %344 = vmatpush1.msra.mxu0 0.0
  %345 = vmatprep.subr.mxu0 0.0
  %346 = vmatpush1.msra.mxu0 0.0
  %347 = vmatprep.subr.mxu0 0.0
  %348 = vmatpush1.msra.mxu0 0.0
  %349 = vmatprep.subr.mxu0 0.0
  %350 = vmatpush1.msra.mxu0 0.0
  %351 = vmatprep.subr.mxu0 0.0
  %352 = vmatpush1.msra.mxu0 0.0
  %353 = vmatprep.subr.mxu0 0.0
  %354 = vmatpush1.msra.mxu0 0.0
  %355 = vmatprep.mubr.f32.mxu0 0.0
  %356 = vmatmul.mubr.f32.gmra.mrb[0].mxu0 %v18
  %v357 = vpop.f32.mrb[0].mxu0
  %v358 = vadd.f32 %v273, %v357
  %v359 = vpop.f32.mrb[0].mxu0
  %360 = vmatprep.mubr.f32.mxu0 0.0
  %361 = vmatmul.mubr.f32.gmra.mrb[0].mxu0 %v23
  %v362 = vpop.f32.mrb[0].mxu0
  %v363 = vadd.f32 %v278, %v362
  %v364 = vpop.f32.mrb[0].mxu0
  %365 = vmatprep.mubr.f32.mxu0 0.0
  %366 = vmatmul.mubr.f32.gmra.mrb[0].mxu0 %v28
  %v367 = vpop.f32.mrb[0].mxu0
  %v368 = vadd.f32 %v283, %v367
  %v369 = vpop.f32.mrb[0].mxu0
  %370 = vmatprep.mubr.f32.mxu0 0.0
  %371 = vmatmul.mubr.f32.gmra.mrb[0].mxu0 %v33
  %v372 = vpop.f32.mrb[0].mxu0
  %v373 = vadd.f32 %v288, %v372
  %v374 = vpop.f32.mrb[0].mxu0
  %375 = vdwg.mxu0
  %v376 = vmax.f32 %v358, 0.0
  %v377 = vmax.f32 %v363, 0.0
  %v378 = vmax.f32 %v368, 0.0
  %v379 = vmax.f32 %v373, 0.0
  %380 = vst [vmem:[%s3] sm:$0xff] %v376
  %381 = vst [vmem:[%s3 + $0x8] sm:$0xff] %v377
  %382 = vst [vmem:[%s3 + $0x10] sm:$0xff] %v378
  %383 = vst [vmem:[%s3 + $0x18] sm:$0xff] %v379
  // Predicated region
  $region14: #{ipt_head_encoder.8} parent=0 // pred_check
    _
  $region15: #{ipt_head_encoder.8} parent=0 // pred_check_branch
    %385 = sbr.rel (0) target = $region17
  $region16: #{ipt_head_encoder.8} parent=0 // pred_region
    _
  $region17: #{ipt_head_encoder.8} parent=0 // pred_fallthru
    _
  // Predicated region
  $region18: #{ipt_head_encoder.8} parent=0 // pred_check
    _
  $region19: #{ipt_head_encoder.8} parent=0 // pred_check_branch
    %387 = sbr.rel (0) target = $region21
  $region20: #{ipt_head_encoder.8} parent=0 // pred_region
    _
  $region21: #{ipt_head_encoder.8} parent=0 // pred_fallthru
    _

// kernel: ipt_head_encoder.9
$region0: #{ipt_head_encoder.9}
  #allocation0 [shape = 'u32[]', space=smem, size = 0x4, offset = 0x4, fixed_abs, tag = 'smem constant byte address 0x4 - core index']
  #allocation1 [shape = 'u32[144,128]{1,0:T(1,128)}', space=vmem, size = 0x12000, scoped, tag = 'internal scratch']
  %s0 = inlined_call_operand.vmem [shape: f32[32,1152], index: 0, kind: input, shape index: {}]
  %s1 = inlined_call_operand.vmem [shape: f32[1152,128], index: 1, kind: input, shape index: {}]
  %s2 = inlined_call_operand.vmem [shape: f32[1,128], index: 2, kind: input, shape index: {}]
  %s3 = inlined_call_operand.vmem [shape: f32[32,64], index: 3, kind: input, shape index: {}]
  %s4 = inlined_call_operand.vmem [shape: f32[64,128], index: 4, kind: input, shape index: {}]
  %s5 = inlined_call_operand.vmem [shape: f32[1,128], index: 5, kind: input, shape index: {}]
  %s6 = inlined_call_operand.hbm [shape: f32[32,128], index: 6, kind: output, shape index: {}]
  %s7 = sld [smem:[#allocation0]]
  $region34: #{ipt_head_encoder.9} parent=0
    _
  %s9 = ssub.s32 1, %s7
  %s10 = scalar_select 0, %s9, %s7
  $region1: #{ipt_head_encoder.9} parent=0
    #allocation2 [shape = 'u8[16384]{0}', space=vmem, size = 0x4000, scoped, tag = 'output window, operand 0, single buffered']
    #allocation3 [shape = 's32[1]{0}', space=sflag, size = 0x4, scoped, tag = 'scoped memory for ipt_head_encoder.9']
    %11 = vsyncpa [#allocation3], 0
    // Predicated region
    $region2: #{ipt_head_encoder.9} parent=1 // pred_check
      _
    $region3: #{ipt_head_encoder.9} parent=1 // pred_check_branch
      %13 = sbr.rel (0) target = $region5
    $region4: #{ipt_head_encoder.9} parent=1 // pred_region
      _
    $region5: #{ipt_head_encoder.9} parent=1 // pred_fallthru
      _
    // Predicated region
    $region6: #{ipt_head_encoder.9} parent=1 // pred_check
      _
    $region7: #{ipt_head_encoder.9} parent=1 // pred_check_branch
      %15 = sbr.rel (0) target = $region9
    $region8: #{ipt_head_encoder.9} parent=1 // pred_region
      _
    $region9: #{ipt_head_encoder.9} parent=1 // pred_fallthru
      _
    // Predicated region
    $region10: #{ipt_head_encoder.9} parent=1 // pred_check
      _
    $region11: #{ipt_head_encoder.9} parent=1 // pred_check_branch
      %17 = sbr.rel (0) target = $region13
    $region12: #{ipt_head_encoder.9} parent=1 // pred_region
      _
    $region13: #{ipt_head_encoder.9} parent=1 // pred_fallthru
      _
    // Predicated region
    $region14: #{ipt_head_encoder.9} parent=1 // pred_check
      _
    $region15: #{ipt_head_encoder.9} parent=1 // pred_check_branch
      %19 = sbr.rel (0) target = $region17
    $region16: #{ipt_head_encoder.9} parent=1 // pred_region
      _
    $region17: #{ipt_head_encoder.9} parent=1 // pred_fallthru
      _
    // Predicated region
    $region18: #{ipt_head_encoder.9} parent=1 // pred_check
      _
    $region19: #{ipt_head_encoder.9} parent=1 // pred_check_branch
      %21 = sbr.rel (0) target = $region21
    $region20: #{ipt_head_encoder.9} parent=1 // pred_region
      _
    $region21: #{ipt_head_encoder.9} parent=1 // pred_fallthru
      _
    // Predicated region
    $region22: #{ipt_head_encoder.9} parent=1 // pred_check
      _
    $region23: #{ipt_head_encoder.9} parent=1 // pred_check_branch
      %23 = sbr.rel (0) target = $region25
    $region24: #{ipt_head_encoder.9} parent=1 // pred_region
      _
    $region25: #{ipt_head_encoder.9} parent=1 // pred_fallthru
      _
    %v24 = vld [vmem:[%s0] sm:$0xff]
    %v25 = vld [vmem:[%s0 + $0x8] sm:$0xff]
    %v26 = vld [vmem:[%s0 + $0x10] sm:$0xff]
    %v27 = vld [vmem:[%s0 + $0x18] sm:$0xff]
    %v28 = vld [vmem:[%s0 + $0x20] sm:$0xff]
    %v29 = vld [vmem:[%s0 + $0x28] sm:$0xff]
    %v30 = vld [vmem:[%s0 + $0x30] sm:$0xff]
    %v31 = vld [vmem:[%s0 + $0x38] sm:$0xff]
    %v32 = vld [vmem:[%s0 + $0x40] sm:$0xff]
    %v33 = vld [vmem:[%s0 + $0x48] sm:$0xff]
    %v34 = vld [vmem:[%s0 + $0x50] sm:$0xff]
    %v35 = vld [vmem:[%s0 + $0x58] sm:$0xff]
    %v36 = vld [vmem:[%s0 + $0x60] sm:$0xff]
    %v37 = vld [vmem:[%s0 + $0x68] sm:$0xff]
    %v38 = vld [vmem:[%s0 + $0x70] sm:$0xff]
    %v39 = vld [vmem:[%s0 + $0x78] sm:$0xff]
    %v40 = vld [vmem:[%s0 + $0x80] sm:$0xff]
    %v41 = vld [vmem:[%s0 + $0x88] sm:$0xff]
    %v42 = vld [vmem:[%s0 + $0x90] sm:$0xff]
    %v43 = vld [vmem:[%s0 + $0x98] sm:$0xff]
    %v44 = vld [vmem:[%s0 + $0xa0] sm:$0xff]
    %v45 = vld [vmem:[%s0 + $0xa8] sm:$0xff]
    %v46 = vld [vmem:[%s0 + $0xb0] sm:$0xff]
    %v47 = vld [vmem:[%s0 + $0xb8] sm:$0xff]
    %v48 = vld [vmem:[%s0 + $0xc0] sm:$0xff]
    %v49 = vld [vmem:[%s0 + $0xc8] sm:$0xff]
    %v50 = vld [vmem:[%s0 + $0xd0] sm:$0xff]
    %v51 = vld [vmem:[%s0 + $0xd8] sm:$0xff]
    %v52 = vld [vmem:[%s0 + $0xe0] sm:$0xff]
    %v53 = vld [vmem:[%s0 + $0xe8] sm:$0xff]
    %v54 = vld [vmem:[%s0 + $0xf0] sm:$0xff]
    %v55 = vld [vmem:[%s0 + $0xf8] sm:$0xff]
    %v56 = vld [vmem:[%s0 + $0x100] sm:$0xff]
    %v57 = vld [vmem:[%s0 + $0x108] sm:$0xff]
    %v58 = vld [vmem:[%s0 + $0x110] sm:$0xff]
    %v59 = vld [vmem:[%s0 + $0x118] sm:$0xff]
    %v60 = vld [vmem:[%s1] sm:$0xff]
    %v61 = vld [vmem:[%s1 + $0x8] sm:$0xff]
    %v62 = vld [vmem:[%s1 + $0x10] sm:$0xff]
    %v63 = vld [vmem:[%s1 + $0x18] sm:$0xff]
    %v64 = vld [vmem:[%s1 + $0x20] sm:$0xff]
    %v65 = vld [vmem:[%s1 + $0x28] sm:$0xff]
    %v66 = vld [vmem:[%s1 + $0x30] sm:$0xff]
    %v67 = vld [vmem:[%s1 + $0x38] sm:$0xff]
    %v68 = vld [vmem:[%s1 + $0x40] sm:$0xff]
    %v69 = vld [vmem:[%s1 + $0x48] sm:$0xff]
    %v70 = vld [vmem:[%s1 + $0x50] sm:$0xff]
    %v71 = vld [vmem:[%s1 + $0x58] sm:$0xff]
    %v72 = vld [vmem:[%s1 + $0x60] sm:$0xff]
    %v73 = vld [vmem:[%s1 + $0x68] sm:$0xff]
    %v74 = vld [vmem:[%s1 + $0x70] sm:$0xff]
    %v75 = vld [vmem:[%s1 + $0x78] sm:$0xff]
    %v76 = vld [vmem:[%s1 + $0x80] sm:$0xff]
    %v77 = vld [vmem:[%s1 + $0x88] sm:$0xff]
    %v78 = vld [vmem:[%s1 + $0x90] sm:$0xff]
    %v79 = vld [vmem:[%s1 + $0x98] sm:$0xff]
    %v80 = vld [vmem:[%s1 + $0xa0] sm:$0xff]
    %v81 = vld [vmem:[%s1 + $0xa8] sm:$0xff]
    %v82 = vld [vmem:[%s1 + $0xb0] sm:$0xff]
    %v83 = vld [vmem:[%s1 + $0xb8] sm:$0xff]
    %v84 = vld [vmem:[%s1 + $0xc0] sm:$0xff]
    %v85 = vld [vmem:[%s1 + $0xc8] sm:$0xff]
    %v86 = vld [vmem:[%s1 + $0xd0] sm:$0xff]
    %v87 = vld [vmem:[%s1 + $0xd8] sm:$0xff]
    %v88 = vld [vmem:[%s1 + $0xe0] sm:$0xff]
    %v89 = vld [vmem:[%s1 + $0xe8] sm:$0xff]
    %v90 = vld [vmem:[%s1 + $0xf0] sm:$0xff]
    %v91 = vld [vmem:[%s1 + $0xf8] sm:$0xff]
    %v92 = vld [vmem:[%s1 + $0x100] sm:$0xff]
    %v93 = vld [vmem:[%s1 + $0x108] sm:$0xff]
    %v94 = vld [vmem:[%s1 + $0x110] sm:$0xff]
    %v95 = vld [vmem:[%s1 + $0x118] sm:$0xff]
    %v96 = vld [vmem:[%s1 + $0x120] sm:$0xff]
    %v97 = vld [vmem:[%s1 + $0x128] sm:$0xff]
    %v98 = vld [vmem:[%s1 + $0x130] sm:$0xff]
    %v99 = vld [vmem:[%s1 + $0x138] sm:$0xff]
    %v100 = vld [vmem:[%s1 + $0x140] sm:$0xff]
    %v101 = vld [vmem:[%s1 + $0x148] sm:$0xff]
    %v102 = vld [vmem:[%s1 + $0x150] sm:$0xff]
    %v103 = vld [vmem:[%s1 + $0x158] sm:$0xff]
    %v104 = vld [vmem:[%s1 + $0x160] sm:$0xff]
    %v105 = vld [vmem:[%s1 + $0x168] sm:$0xff]
    %v106 = vld [vmem:[%s1 + $0x170] sm:$0xff]
    %v107 = vld [vmem:[%s1 + $0x178] sm:$0xff]
    %v108 = vld [vmem:[%s1 + $0x180] sm:$0xff]
    %v109 = vld [vmem:[%s1 + $0x188] sm:$0xff]
    %v110 = vld [vmem:[%s1 + $0x190] sm:$0xff]
    %v111 = vld [vmem:[%s1 + $0x198] sm:$0xff]
    %v112 = vld [vmem:[%s1 + $0x1a0] sm:$0xff]
    %v113 = vld [vmem:[%s1 + $0x1a8] sm:$0xff]
    %v114 = vld [vmem:[%s1 + $0x1b0] sm:$0xff]
    %v115 = vld [vmem:[%s1 + $0x1b8] sm:$0xff]
    %v116 = vld [vmem:[%s1 + $0x1c0] sm:$0xff]
    %v117 = vld [vmem:[%s1 + $0x1c8] sm:$0xff]
    %v118 = vld [vmem:[%s1 + $0x1d0] sm:$0xff]
    %v119 = vld [vmem:[%s1 + $0x1d8] sm:$0xff]
    %v120 = vld [vmem:[%s1 + $0x1e0] sm:$0xff]
    %v121 = vld [vmem:[%s1 + $0x1e8] sm:$0xff]
    %v122 = vld [vmem:[%s1 + $0x1f0] sm:$0xff]
    %v123 = vld [vmem:[%s1 + $0x1f8] sm:$0xff]
    %v124 = vld [vmem:[%s1 + $0x200] sm:$0xff]
    %v125 = vld [vmem:[%s1 + $0x208] sm:$0xff]
    %v126 = vld [vmem:[%s1 + $0x210] sm:$0xff]
    %v127 = vld [vmem:[%s1 + $0x218] sm:$0xff]
    %v128 = vld [vmem:[%s1 + $0x220] sm:$0xff]
    %v129 = vld [vmem:[%s1 + $0x228] sm:$0xff]
    %v130 = vld [vmem:[%s1 + $0x230] sm:$0xff]
    %v131 = vld [vmem:[%s1 + $0x238] sm:$0xff]
    %v132 = vld [vmem:[%s1 + $0x240] sm:$0xff]
    %v133 = vld [vmem:[%s1 + $0x248] sm:$0xff]
    %v134 = vld [vmem:[%s1 + $0x250] sm:$0xff]
    %v135 = vld [vmem:[%s1 + $0x258] sm:$0xff]
    %v136 = vld [vmem:[%s1 + $0x260] sm:$0xff]
    %v137 = vld [vmem:[%s1 + $0x268] sm:$0xff]
    %v138 = vld [vmem:[%s1 + $0x270] sm:$0xff]
    %v139 = vld [vmem:[%s1 + $0x278] sm:$0xff]
    %v140 = vld [vmem:[%s1 + $0x280] sm:$0xff]
    %v141 = vld [vmem:[%s1 + $0x288] sm:$0xff]
    %v142 = vld [vmem:[%s1 + $0x290] sm:$0xff]
    %v143 = vld [vmem:[%s1 + $0x298] sm:$0xff]
    %v144 = vld [vmem:[%s1 + $0x2a0] sm:$0xff]
    %v145 = vld [vmem:[%s1 + $0x2a8] sm:$0xff]
    %v146 = vld [vmem:[%s1 + $0x2b0] sm:$0xff]
    %v147 = vld [vmem:[%s1 + $0x2b8] sm:$0xff]
    %v148 = vld [vmem:[%s1 + $0x2c0] sm:$0xff]
    %v149 = vld [vmem:[%s1 + $0x2c8] sm:$0xff]
    %v150 = vld [vmem:[%s1 + $0x2d0] sm:$0xff]
    %v151 = vld [vmem:[%s1 + $0x2d8] sm:$0xff]
    %v152 = vld [vmem:[%s1 + $0x2e0] sm:$0xff]
    %v153 = vld [vmem:[%s1 + $0x2e8] sm:$0xff]
    %v154 = vld [vmem:[%s1 + $0x2f0] sm:$0xff]
    %v155 = vld [vmem:[%s1 + $0x2f8] sm:$0xff]
    %v156 = vld [vmem:[%s1 + $0x300] sm:$0xff]
    %v157 = vld [vmem:[%s1 + $0x308] sm:$0xff]
    %v158 = vld [vmem:[%s1 + $0x310] sm:$0xff]
    %v159 = vld [vmem:[%s1 + $0x318] sm:$0xff]
    %v160 = vld [vmem:[%s1 + $0x320] sm:$0xff]
    %v161 = vld [vmem:[%s1 + $0x328] sm:$0xff]
    %v162 = vld [vmem:[%s1 + $0x330] sm:$0xff]
    %v163 = vld [vmem:[%s1 + $0x338] sm:$0xff]
    %v164 = vld [vmem:[%s1 + $0x340] sm:$0xff]
    %v165 = vld [vmem:[%s1 + $0x348] sm:$0xff]
    %v166 = vld [vmem:[%s1 + $0x350] sm:$0xff]
    %v167 = vld [vmem:[%s1 + $0x358] sm:$0xff]
    %v168 = vld [vmem:[%s1 + $0x360] sm:$0xff]
    %v169 = vld [vmem:[%s1 + $0x368] sm:$0xff]
    %v170 = vld [vmem:[%s1 + $0x370] sm:$0xff]
    %v171 = vld [vmem:[%s1 + $0x378] sm:$0xff]
    %v172 = vld [vmem:[%s1 + $0x380] sm:$0xff]
    %v173 = vld [vmem:[%s1 + $0x388] sm:$0xff]
    %v174 = vld [vmem:[%s1 + $0x390] sm:$0xff]
    %v175 = vld [vmem:[%s1 + $0x398] sm:$0xff]
    %v176 = vld [vmem:[%s1 + $0x3a0] sm:$0xff]
    %v177 = vld [vmem:[%s1 + $0x3a8] sm:$0xff]
    %v178 = vld [vmem:[%s1 + $0x3b0] sm:$0xff]
    %v179 = vld [vmem:[%s1 + $0x3b8] sm:$0xff]
    %v180 = vld [vmem:[%s1 + $0x3c0] sm:$0xff]
    %v181 = vld [vmem:[%s1 + $0x3c8] sm:$0xff]
    %v182 = vld [vmem:[%s1 + $0x3d0] sm:$0xff]
    %v183 = vld [vmem:[%s1 + $0x3d8] sm:$0xff]
    %v184 = vld [vmem:[%s1 + $0x3e0] sm:$0xff]
    %v185 = vld [vmem:[%s1 + $0x3e8] sm:$0xff]
    %v186 = vld [vmem:[%s1 + $0x3f0] sm:$0xff]
    %v187 = vld [vmem:[%s1 + $0x3f8] sm:$0xff]
    %v188 = vld [vmem:[%s1 + $0x400] sm:$0xff]
    %v189 = vld [vmem:[%s1 + $0x408] sm:$0xff]
    %v190 = vld [vmem:[%s1 + $0x410] sm:$0xff]
    %v191 = vld [vmem:[%s1 + $0x418] sm:$0xff]
    %v192 = vld [vmem:[%s1 + $0x420] sm:$0xff]
    %v193 = vld [vmem:[%s1 + $0x428] sm:$0xff]
    %v194 = vld [vmem:[%s1 + $0x430] sm:$0xff]
    %v195 = vld [vmem:[%s1 + $0x438] sm:$0xff]
    %v196 = vld [vmem:[%s1 + $0x440] sm:$0xff]
    %v197 = vld [vmem:[%s1 + $0x448] sm:$0xff]
    %v198 = vld [vmem:[%s1 + $0x450] sm:$0xff]
    %v199 = vld [vmem:[%s1 + $0x458] sm:$0xff]
    %v200 = vld [vmem:[%s1 + $0x460] sm:$0xff]
    %v201 = vld [vmem:[%s1 + $0x468] sm:$0xff]
    %v202 = vld [vmem:[%s1 + $0x470] sm:$0xff]
    %v203 = vld [vmem:[%s1 + $0x478] sm:$0xff]
    %v204 = vld [vmem:[%s2] sm:$0x1]
    %v206 = vlaneseq
    %v207 = vshrl.u32 %v206, 7
    %v208 = vsub.s32 0, %v207
    %v209 = vrot.slane %v204, %v208
    %211 = vmatprep.subr.mxu0 0.0
    %212 = vmatpush1.msra.mxu0 %v60
    %213 = vmatprep.subr.mxu0 0.0
    %214 = vmatpush1.msra.mxu0 %v61
    %215 = vmatprep.subr.mxu0 0.0
    %216 = vmatpush1.msra.mxu0 %v62
    %217 = vmatprep.subr.mxu0 0.0
    %218 = vmatpush1.msra.mxu0 %v63
    %219 = vmatprep.subr.mxu0 0.0
    %220 = vmatpush1.msra.mxu0 %v64
    %221 = vmatprep.subr.mxu0 0.0
    %222 = vmatpush1.msra.mxu0 %v65
    %223 = vmatprep.subr.mxu0 0.0
    %224 = vmatpush1.msra.mxu0 %v66
    %225 = vmatprep.subr.mxu0 0.0
    %226 = vmatpush1.msra.mxu0 %v67
    %227 = vmatprep.subr.mxu0 0.0
    %228 = vmatpush1.msra.mxu0 %v68
    %229 = vmatprep.subr.mxu0 0.0
    %230 = vmatpush1.msra.mxu0 %v69
    %231 = vmatprep.subr.mxu0 0.0
    %232 = vmatpush1.msra.mxu0 %v70
    %233 = vmatprep.subr.mxu0 0.0
    %234 = vmatpush1.msra.mxu0 %v71
    %235 = vmatprep.subr.mxu0 0.0
    %236 = vmatpush1.msra.mxu0 %v72
    %237 = vmatprep.subr.mxu0 0.0
    %238 = vmatpush1.msra.mxu0 %v73
    %239 = vmatprep.subr.mxu0 0.0
    %240 = vmatpush1.msra.mxu0 %v74
    %241 = vmatprep.subr.mxu0 0.0
    %242 = vmatpush1.msra.mxu0 %v75
    %243 = vmatprep.subr.mxu0 0.0
    %244 = vmatpush1.msra.mxu0 %v76
    %245 = vmatprep.subr.mxu0 0.0
    %246 = vmatpush1.msra.mxu0 %v77
    %247 = vmatprep.subr.mxu0 0.0
    %248 = vmatpush1.msra.mxu0 %v78
    %249 = vmatprep.subr.mxu0 0.0
    %250 = vmatpush1.msra.mxu0 %v79
    %251 = vmatprep.subr.mxu0 0.0
    %252 = vmatpush1.msra.mxu0 %v80
    %253 = vmatprep.subr.mxu0 0.0
    %254 = vmatpush1.msra.mxu0 %v81
    %255 = vmatprep.subr.mxu0 0.0
    %256 = vmatpush1.msra.mxu0 %v82
    %257 = vmatprep.subr.mxu0 0.0
    %258 = vmatpush1.msra.mxu0 %v83
    %259 = vmatprep.subr.mxu0 0.0
    %260 = vmatpush1.msra.mxu0 %v84
    %261 = vmatprep.subr.mxu0 0.0
    %262 = vmatpush1.msra.mxu0 %v85
    %263 = vmatprep.subr.mxu0 0.0
    %264 = vmatpush1.msra.mxu0 %v86
    %265 = vmatprep.subr.mxu0 0.0
    %266 = vmatpush1.msra.mxu0 %v87
    %267 = vmatprep.subr.mxu0 0.0
    %268 = vmatpush1.msra.mxu0 %v88
    %269 = vmatprep.subr.mxu0 0.0
    %270 = vmatpush1.msra.mxu0 %v89
    %271 = vmatprep.subr.mxu0 0.0
    %272 = vmatpush1.msra.mxu0 %v90
    %273 = vmatprep.subr.mxu0 0.0
    %274 = vmatpush1.msra.mxu0 %v91
    %275 = vmatprep.mubr.f32.mxu0 %v25
    %276 = vmatmul.mubr.f32.gmra.mrb[0].mxu0 %v24
    %v277 = vpop.f32.mrb[0].mxu0
    %v278 = vadd.f32 %v209, %v277
    %v279 = vpop.f32.mrb[0].mxu0
    %280 = vmatprep.mubr.f32.mxu0 %v34
    %281 = vmatmul.mubr.f32.gmra.mrb[0].mxu0 %v33
    %v282 = vpop.f32.mrb[0].mxu0
    %v283 = vadd.f32 %v209, %v282
    %v284 = vpop.f32.mrb[0].mxu0
    %285 = vmatprep.mubr.f32.mxu0 %v43
    %286 = vmatmul.mubr.f32.gmra.mrb[0].mxu0 %v42
    %v287 = vpop.f32.mrb[0].mxu0
    %v288 = vadd.f32 %v209, %v287
    %v289 = vpop.f32.mrb[0].mxu0
    %290 = vmatprep.mubr.f32.mxu0 %v52
    %291 = vmatmul.mubr.f32.gmra.mrb[0].mxu0 %v51
    %v292 = vpop.f32.mrb[0].mxu0
    %v293 = vadd.f32 %v209, %v292
    %v294 = vpop.f32.mrb[0].mxu0
    %295 = vdwg.mxu0
    %296 = vmatprep.subr.mxu0 0.0
    %297 = vmatpush1.msra.mxu0 %v92
    %298 = vmatprep.subr.mxu0 0.0
    %299 = vmatpush1.msra.mxu0 %v93
    %300 = vmatprep.subr.mxu0 0.0
    %301 = vmatpush1.msra.mxu0 %v94
    %302 = vmatprep.subr.mxu0 0.0
    %303 = vmatpush1.msra.mxu0 %v95
    %304 = vmatprep.subr.mxu0 0.0
    %305 = vmatpush1.msra.mxu0 %v96
    %306 = vmatprep.subr.mxu0 0.0
    %307 = vmatpush1.msra.mxu0 %v97
    %308 = vmatprep.subr.mxu0 0.0
    %309 = vmatpush1.msra.mxu0 %v98
    %310 = vmatprep.subr.mxu0 0.0
    %311 = vmatpush1.msra.mxu0 %v99
    %312 = vmatprep.subr.mxu0 0.0
    %313 = vmatpush1.msra.mxu0 %v100
    %314 = vmatprep.subr.mxu0 0.0
    %315 = vmatpush1.msra.mxu0 %v101
    %316 = vmatprep.subr.mxu0 0.0
    %317 = vmatpush1.msra.mxu0 %v102
    %318 = vmatprep.subr.mxu0 0.0
    %319 = vmatpush1.msra.mxu0 %v103
    %320 = vmatprep.subr.mxu0 0.0
    %321 = vmatpush1.msra.mxu0 %v104
    %322 = vmatprep.subr.mxu0 0.0
    %323 = vmatpush1.msra.mxu0 %v105
    %324 = vmatprep.subr.mxu0 0.0
    %325 = vmatpush1.msra.mxu0 %v106
    %326 = vmatprep.subr.mxu0 0.0
    %327 = vmatpush1.msra.mxu0 %v107
    %328 = vmatprep.subr.mxu0 0.0
    %329 = vmatpush1.msra.mxu0 %v108
    %330 = vmatprep.subr.mxu0 0.0
    %331 = vmatpush1.msra.mxu0 %v109
    %332 = vmatprep.subr.mxu0 0.0
    %333 = vmatpush1.msra.mxu0 %v110
    %334 = vmatprep.subr.mxu0 0.0
    %335 = vmatpush1.msra.mxu0 %v111
    %336 = vmatprep.subr.mxu0 0.0
    %337 = vmatpush1.msra.mxu0 %v112
    %338 = vmatprep.subr.mxu0 0.0
    %339 = vmatpush1.msra.mxu0 %v113
    %340 = vmatprep.subr.mxu0 0.0
    %341 = vmatpush1.msra.mxu0 %v114
    %342 = vmatprep.subr.mxu0 0.0
    %343 = vmatpush1.msra.mxu0 %v115
    %344 = vmatprep.subr.mxu0 0.0
    %345 = vmatpush1.msra.mxu0 %v116
    %346 = vmatprep.subr.mxu0 0.0
    %347 = vmatpush1.msra.mxu0 %v117
    %348 = vmatprep.subr.mxu0 0.0
    %349 = vmatpush1.msra.mxu0 %v118
    %350 = vmatprep.subr.mxu0 0.0
    %351 = vmatpush1.msra.mxu0 %v119
    %352 = vmatprep.subr.mxu0 0.0
    %353 = vmatpush1.msra.mxu0 %v120
    %354 = vmatprep.subr.mxu0 0.0
    %355 = vmatpush1.msra.mxu0 %v121
    %356 = vmatprep.subr.mxu0 0.0
    %357 = vmatpush1.msra.mxu0 %v122
    %358 = vmatprep.subr.mxu0 0.0
    %359 = vmatpush1.msra.mxu0 %v123
    %360 = vmatprep.mubr.f32.mxu0 %v27
    %361 = vmatmul.mubr.f32.gmra.mrb[0].mxu0 %v26
    %v362 = vpop.f32.mrb[0].mxu0
    %v363 = vadd.f32 %v278, %v362
    %v364 = vpop.f32.mrb[0].mxu0
    %365 = vmatprep.mubr.f32.mxu0 %v36
    %366 = vmatmul.mubr.f32.gmra.mrb[0].mxu0 %v35
    %v367 = vpop.f32.mrb[0].mxu0
    %v368 = vadd.f32 %v283, %v367
    %v369 = vpop.f32.mrb[0].mxu0
    %370 = vmatprep.mubr.f32.mxu0 %v45
    %371 = vmatmul.mubr.f32.gmra.mrb[0].mxu0 %v44
    %v372 = vpop.f32.mrb[0].mxu0
    %v373 = vadd.f32 %v288, %v372
    %v374 = vpop.f32.mrb[0].mxu0
    %375 = vmatprep.mubr.f32.mxu0 %v54
    %376 = vmatmul.mubr.f32.gmra.mrb[0].mxu0 %v53
    %v377 = vpop.f32.mrb[0].mxu0
    %v378 = vadd.f32 %v293, %v377
    %v379 = vpop.f32.mrb[0].mxu0
    %380 = vdwg.mxu0
    %381 = vmatprep.subr.mxu0 0.0
    %382 = vmatpush1.msra.mxu0 %v124
    %383 = vmatprep.subr.mxu0 0.0
    %384 = vmatpush1.msra.mxu0 %v125
    %385 = vmatprep.subr.mxu0 0.0
    %386 = vmatpush1.msra.mxu0 %v126
    %387 = vmatprep.subr.mxu0 0.0
    %388 = vmatpush1.msra.mxu0 %v127
    %389 = vmatprep.subr.mxu0 0.0
    %390 = vmatpush1.msra.mxu0 %v128
    %391 = vmatprep.subr.mxu0 0.0
    %392 = vmatpush1.msra.mxu0 %v129
    %393 = vmatprep.subr.mxu0 0.0
    %394 = vmatpush1.msra.mxu0 %v130
    %395 = vmatprep.subr.mxu0 0.0
    %396 = vmatpush1.msra.mxu0 %v131
    %397 = vmatprep.subr.mxu0 0.0
    %398 = vmatpush1.msra.mxu0 %v132
    %399 = vmatprep.subr.mxu0 0.0
    %400 = vmatpush1.msra.mxu0 %v133
    %401 = vmatprep.subr.mxu0 0.0
    %402 = vmatpush1.msra.mxu0 %v134
    %403 = vmatprep.subr.mxu0 0.0
    %404 = vmatpush1.msra.mxu0 %v135
    %405 = vmatprep.subr.mxu0 0.0
    %406 = vmatpush1.msra.mxu0 %v136
    %407 = vmatprep.subr.mxu0 0.0
    %408 = vmatpush1.msra.mxu0 %v137
    %409 = vmatprep.subr.mxu0 0.0
    %410 = vmatpush1.msra.mxu0 %v138
    %411 = vmatprep.subr.mxu0 0.0
    %412 = vmatpush1.msra.mxu0 %v139
    %413 = vmatprep.subr.mxu0 0.0
    %414 = vmatpush1.msra.mxu0 %v140
    %415 = vmatprep.subr.mxu0 0.0
    %416 = vmatpush1.msra.mxu0 %v141
    %417 = vmatprep.subr.mxu0 0.0
    %418 = vmatpush1.msra.mxu0 %v142
    %419 = vmatprep.subr.mxu0 0.0
    %420 = vmatpush1.msra.mxu0 %v143
    %421 = vmatprep.subr.mxu0 0.0
    %422 = vmatpush1.msra.mxu0 %v144
    %423 = vmatprep.subr.mxu0 0.0
    %424 = vmatpush1.msra.mxu0 %v145
    %425 = vmatprep.subr.mxu0 0.0
    %426 = vmatpush1.msra.mxu0 %v146
    %427 = vmatprep.subr.mxu0 0.0
    %428 = vmatpush1.msra.mxu0 %v147
    %429 = vmatprep.subr.mxu0 0.0
    %430 = vmatpush1.msra.mxu0 %v148
    %431 = vmatprep.subr.mxu0 0.0
    %432 = vmatpush1.msra.mxu0 %v149
    %433 = vmatprep.subr.mxu0 0.0
    %434 = vmatpush1.msra.mxu0 %v150
    %435 = vmatprep.subr.mxu0 0.0
    %436 = vmatpush1.msra.mxu0 %v151
    %437 = vmatprep.subr.mxu0 0.0
    %438 = vmatpush1.msra.mxu0 %v152
    %439 = vmatprep.subr.mxu0 0.0
    %440 = vmatpush1.msra.mxu0 %v153
    %441 = vmatprep.subr.mxu0 0.0
    %442 = vmatpush1.msra.mxu0 %v154
    %443 = vmatprep.subr.mxu0 0.0
    %444 = vmatpush1.msra.mxu0 %v155
    %445 = vmatprep.mubr.f32.mxu0 %v29
    %446 = vmatmul.mubr.f32.gmra.mrb[0].mxu0 %v28
    %v447 = vpop.f32.mrb[0].mxu0
    %v448 = vadd.f32 %v363, %v447
    %v449 = vpop.f32.mrb[0].mxu0
    %450 = vmatprep.mubr.f32.mxu0 %v38
    %451 = vmatmul.mubr.f32.gmra.mrb[0].mxu0 %v37
    %v452 = vpop.f32.mrb[0].mxu0
    %v453 = vadd.f32 %v368, %v452
    %v454 = vpop.f32.mrb[0].mxu0
    %455 = vmatprep.mubr.f32.mxu0 %v47
    %456 = vmatmul.mubr.f32.gmra.mrb[0].mxu0 %v46
    %v457 = vpop.f32.mrb[0].mxu0
    %v458 = vadd.f32 %v373, %v457
    %v459 = vpop.f32.mrb[0].mxu0
    %460 = vmatprep.mubr.f32.mxu0 %v56
    %461 = vmatmul.mubr.f32.gmra.mrb[0].mxu0 %v55
    %v462 = vpop.f32.mrb[0].mxu0
    %v463 = vadd.f32 %v378, %v462
    %v464 = vpop.f32.mrb[0].mxu0
    %465 = vdwg.mxu0
    %466 = vmatprep.subr.mxu0 0.0
    %467 = vmatpush1.msra.mxu0 %v156
    %468 = vmatprep.subr.mxu0 0.0
    %469 = vmatpush1.msra.mxu0 %v157
    %470 = vmatprep.subr.mxu0 0.0
    %471 = vmatpush1.msra.mxu0 %v158
    %472 = vmatprep.subr.mxu0 0.0
    %473 = vmatpush1.msra.mxu0 %v159
    %474 = vmatprep.subr.mxu0 0.0
    %475 = vmatpush1.msra.mxu0 %v160
    %476 = vmatprep.subr.mxu0 0.0
    %477 = vmatpush1.msra.mxu0 %v161
    %478 = vmatprep.subr.mxu0 0.0
    %479 = vmatpush1.msra.mxu0 %v162
    %480 = vmatprep.subr.mxu0 0.0
    %481 = vmatpush1.msra.mxu0 %v163
    %482 = vmatprep.subr.mxu0 0.0
    %483 = vmatpush1.msra.mxu0 %v164
    %484 = vmatprep.subr.mxu0 0.0
    %485 = vmatpush1.msra.mxu0 %v165
    %486 = vmatprep.subr.mxu0 0.0
    %487 = vmatpush1.msra.mxu0 %v166
    %488 = vmatprep.subr.mxu0 0.0
    %489 = vmatpush1.msra.mxu0 %v167
    %490 = vmatprep.subr.mxu0 0.0
    %491 = vmatpush1.msra.mxu0 %v168
    %492 = vmatprep.subr.mxu0 0.0
    %493 = vmatpush1.msra.mxu0 %v169
    %494 = vmatprep.subr.mxu0 0.0
    %495 = vmatpush1.msra.mxu0 %v170
    %496 = vmatprep.subr.mxu0 0.0
    %497 = vmatpush1.msra.mxu0 %v171
    %498 = vmatprep.subr.mxu0 0.0
    %499 = vmatpush1.msra.mxu0 %v172
    %500 = vmatprep.subr.mxu0 0.0
    %501 = vmatpush1.msra.mxu0 %v173
    %502 = vmatprep.subr.mxu0 0.0
    %503 = vmatpush1.msra.mxu0 %v174
    %504 = vmatprep.subr.mxu0 0.0
    %505 = vmatpush1.msra.mxu0 %v175
    %506 = vmatprep.subr.mxu0 0.0
    %507 = vmatpush1.msra.mxu0 %v176
    %508 = vmatprep.subr.mxu0 0.0
    %509 = vmatpush1.msra.mxu0 %v177
    %510 = vmatprep.subr.mxu0 0.0
    %511 = vmatpush1.msra.mxu0 %v178
    %512 = vmatprep.subr.mxu0 0.0
    %513 = vmatpush1.msra.mxu0 %v179
    %514 = vmatprep.subr.mxu0 0.0
    %515 = vmatpush1.msra.mxu0 %v180
    %516 = vmatprep.subr.mxu0 0.0
    %517 = vmatpush1.msra.mxu0 %v181
    %518 = vmatprep.subr.mxu0 0.0
    %519 = vmatpush1.msra.mxu0 %v182
    %520 = vmatprep.subr.mxu0 0.0
    %521 = vmatpush1.msra.mxu0 %v183
    %522 = vmatprep.subr.mxu0 0.0
    %523 = vmatpush1.msra.mxu0 %v184
    %524 = vmatprep.subr.mxu0 0.0
    %525 = vmatpush1.msra.mxu0 %v185
    %526 = vmatprep.subr.mxu0 0.0
    %527 = vmatpush1.msra.mxu0 %v186
    %528 = vmatprep.subr.mxu0 0.0
    %529 = vmatpush1.msra.mxu0 %v187
    %530 = vmatprep.mubr.f32.mxu0 %v31
    %531 = vmatmul.mubr.f32.gmra.mrb[0].mxu0 %v30
    %v532 = vpop.f32.mrb[0].mxu0
    %v533 = vadd.f32 %v448, %v532
    %v534 = vpop.f32.mrb[0].mxu0
    %535 = vmatprep.mubr.f32.mxu0 %v40
    %536 = vmatmul.mubr.f32.gmra.mrb[0].mxu0 %v39
    %v537 = vpop.f32.mrb[0].mxu0
    %v538 = vadd.f32 %v453, %v537
    %v539 = vpop.f32.mrb[0].mxu0
    %540 = vmatprep.mubr.f32.mxu0 %v49
    %541 = vmatmul.mubr.f32.gmra.mrb[0].mxu0 %v48
    %v542 = vpop.f32.mrb[0].mxu0
    %v543 = vadd.f32 %v458, %v542
    %v544 = vpop.f32.mrb[0].mxu0
    %545 = vmatprep.mubr.f32.mxu0 %v58
    %546 = vmatmul.mubr.f32.gmra.mrb[0].mxu0 %v57
    %v547 = vpop.f32.mrb[0].mxu0
    %v548 = vadd.f32 %v463, %v547
    %v549 = vpop.f32.mrb[0].mxu0
    %550 = vdwg.mxu0
    %551 = vmatprep.subr.mxu0 0.0
    %552 = vmatpush1.msra.mxu0 %v188
    %553 = vmatprep.subr.mxu0 0.0
    %554 = vmatpush1.msra.mxu0 %v189
    %555 = vmatprep.subr.mxu0 0.0
    %556 = vmatpush1.msra.mxu0 %v190
    %557 = vmatprep.subr.mxu0 0.0
    %558 = vmatpush1.msra.mxu0 %v191
    %559 = vmatprep.subr.mxu0 0.0
    %560 = vmatpush1.msra.mxu0 %v192
    %561 = vmatprep.subr.mxu0 0.0
    %562 = vmatpush1.msra.mxu0 %v193
    %563 = vmatprep.subr.mxu0 0.0
    %564 = vmatpush1.msra.mxu0 %v194
    %565 = vmatprep.subr.mxu0 0.0
    %566 = vmatpush1.msra.mxu0 %v195
    %567 = vmatprep.subr.mxu0 0.0
    %568 = vmatpush1.msra.mxu0 %v196
    %569 = vmatprep.subr.mxu0 0.0
    %570 = vmatpush1.msra.mxu0 %v197
    %571 = vmatprep.subr.mxu0 0.0
    %572 = vmatpush1.msra.mxu0 %v198
    %573 = vmatprep.subr.mxu0 0.0
    %574 = vmatpush1.msra.mxu0 %v199
    %575 = vmatprep.subr.mxu0 0.0
    %576 = vmatpush1.msra.mxu0 %v200
    %577 = vmatprep.subr.mxu0 0.0
    %578 = vmatpush1.msra.mxu0 %v201
    %579 = vmatprep.subr.mxu0 0.0
    %580 = vmatpush1.msra.mxu0 %v202
    %581 = vmatprep.subr.mxu0 0.0
    %582 = vmatpush1.msra.mxu0 %v203
    %583 = vmatprep.subr.mxu0 0.0
    %584 = vmatpush1.msra.mxu0 0.0
    %585 = vmatprep.subr.mxu0 0.0
    %586 = vmatpush1.msra.mxu0 0.0
    %587 = vmatprep.subr.mxu0 0.0
    %588 = vmatpush1.msra.mxu0 0.0
    %589 = vmatprep.subr.mxu0 0.0
    %590 = vmatpush1.msra.mxu0 0.0
    %591 = vmatprep.subr.mxu0 0.0
    %592 = vmatpush1.msra.mxu0 0.0
    %593 = vmatprep.subr.mxu0 0.0
    %594 = vmatpush1.msra.mxu0 0.0
    %595 = vmatprep.subr.mxu0 0.0
    %596 = vmatpush1.msra.mxu0 0.0
    %597 = vmatprep.subr.mxu0 0.0
    %598 = vmatpush1.msra.mxu0 0.0
    %599 = vmatprep.subr.mxu0 0.0
    %600 = vmatpush1.msra.mxu0 0.0
    %601 = vmatprep.subr.mxu0 0.0
    %602 = vmatpush1.msra.mxu0 0.0
    %603 = vmatprep.subr.mxu0 0.0
    %604 = vmatpush1.msra.mxu0 0.0
    %605 = vmatprep.subr.mxu0 0.0
    %606 = vmatpush1.msra.mxu0 0.0
    %607 = vmatprep.subr.mxu0 0.0
    %608 = vmatpush1.msra.mxu0 0.0
    %609 = vmatprep.subr.mxu0 0.0
    %610 = vmatpush1.msra.mxu0 0.0
    %611 = vmatprep.subr.mxu0 0.0
    %612 = vmatpush1.msra.mxu0 0.0
    %613 = vmatprep.subr.mxu0 0.0
    %614 = vmatpush1.msra.mxu0 0.0
    %615 = vmatprep.mubr.f32.mxu0 0.0
    %616 = vmatmul.mubr.f32.gmra.mrb[0].mxu0 %v32
    %v617 = vpop.f32.mrb[0].mxu0
    %v618 = vadd.f32 %v533, %v617
    %v619 = vpop.f32.mrb[0].mxu0
    %620 = vmatprep.mubr.f32.mxu0 0.0
    %621 = vmatmul.mubr.f32.gmra.mrb[0].mxu0 %v41
    %v622 = vpop.f32.mrb[0].mxu0
    %v623 = vadd.f32 %v538, %v622
    %v624 = vpop.f32.mrb[0].mxu0
    %625 = vmatprep.mubr.f32.mxu0 0.0
    %626 = vmatmul.mubr.f32.gmra.mrb[0].mxu0 %v50
    %v627 = vpop.f32.mrb[0].mxu0
    %v628 = vadd.f32 %v543, %v627
    %v629 = vpop.f32.mrb[0].mxu0
    %630 = vmatprep.mubr.f32.mxu0 0.0
    %631 = vmatmul.mubr.f32.gmra.mrb[0].mxu0 %v59
    %v632 = vpop.f32.mrb[0].mxu0
    %v633 = vadd.f32 %v548, %v632
    %v634 = vpop.f32.mrb[0].mxu0
    %635 = vdwg.mxu0
    %v636 = vmax.f32 %v618, 0.0
    %v637 = vmax.f32 %v623, 0.0
    %v638 = vmax.f32 %v628, 0.0
    %v639 = vmax.f32 %v633, 0.0
    %v640 = vld [vmem:[%s3] sm:$0xff]
    %v641 = vld [vmem:[%s3 + $0x8] sm:$0xff]
    %v642 = vld [vmem:[%s3 + $0x10] sm:$0xff]
    %v643 = vld [vmem:[%s3 + $0x18] sm:$0xff]
    %v644 = vld [vmem:[%s4] sm:$0xff]
    %v645 = vld [vmem:[%s4 + $0x8] sm:$0xff]
    %v646 = vld [vmem:[%s4 + $0x10] sm:$0xff]
    %v647 = vld [vmem:[%s4 + $0x18] sm:$0xff]
    %v648 = vld [vmem:[%s4 + $0x20] sm:$0xff]
    %v649 = vld [vmem:[%s4 + $0x28] sm:$0xff]
    %v650 = vld [vmem:[%s4 + $0x30] sm:$0xff]
    %v651 = vld [vmem:[%s4 + $0x38] sm:$0xff]
    %v652 = vld [vmem:[%s5] sm:$0x1]
    %v654 = vlaneseq
    %v655 = vshrl.u32 %v654, 7
    %v656 = vsub.s32 0, %v655
    %v657 = vrot.slane %v652, %v656
    %vm659 = vcmask 523264
    %v661 = vsel %vm659, %v640, 0
    %v664 = vsel %vm659, %v641, 0
    %v667 = vsel %vm659, %v642, 0
    %v670 = vsel %vm659, %v643, 0
    %672 = vmatprep.subr.mxu0 0.0
    %673 = vmatpush1.msra.mxu0 %v644
    %674 = vmatprep.subr.mxu0 0.0
    %675 = vmatpush1.msra.mxu0 %v645
    %676 = vmatprep.subr.mxu0 0.0
    %677 = vmatpush1.msra.mxu0 %v646
    %678 = vmatprep.subr.mxu0 0.0
    %679 = vmatpush1.msra.mxu0 %v647
    %680 = vmatprep.subr.mxu0 0.0
    %681 = vmatpush1.msra.mxu0 %v648
    %682 = vmatprep.subr.mxu0 0.0
    %683 = vmatpush1.msra.mxu0 %v649
    %684 = vmatprep.subr.mxu0 0.0
    %685 = vmatpush1.msra.mxu0 %v650
    %686 = vmatprep.subr.mxu0 0.0
    %687 = vmatpush1.msra.mxu0 %v651
    %688 = vmatprep.subr.mxu0 0.0
    %689 = vmatpush1.msra.mxu0 0.0
    %690 = vmatprep.subr.mxu0 0.0
    %691 = vmatpush1.msra.mxu0 0.0
    %692 = vmatprep.subr.mxu0 0.0
    %693 = vmatpush1.msra.mxu0 0.0
    %694 = vmatprep.subr.mxu0 0.0
    %695 = vmatpush1.msra.mxu0 0.0
    %696 = vmatprep.subr.mxu0 0.0
    %697 = vmatpush1.msra.mxu0 0.0
    %698 = vmatprep.subr.mxu0 0.0
    %699 = vmatpush1.msra.mxu0 0.0
    %700 = vmatprep.subr.mxu0 0.0
    %701 = vmatpush1.msra.mxu0 0.0
    %702 = vmatprep.subr.mxu0 0.0
    %703 = vmatpush1.msra.mxu0 0.0
    %704 = vmatprep.subr.mxu0 0.0
    %705 = vmatpush1.msra.mxu0 0.0
    %706 = vmatprep.subr.mxu0 0.0
    %707 = vmatpush1.msra.mxu0 0.0
    %708 = vmatprep.subr.mxu0 0.0
    %709 = vmatpush1.msra.mxu0 0.0
    %710 = vmatprep.subr.mxu0 0.0
    %711 = vmatpush1.msra.mxu0 0.0
    %712 = vmatprep.subr.mxu0 0.0
    %713 = vmatpush1.msra.mxu0 0.0
    %714 = vmatprep.subr.mxu0 0.0
    %715 = vmatpush1.msra.mxu0 0.0
    %716 = vmatprep.subr.mxu0 0.0
    %717 = vmatpush1.msra.mxu0 0.0
    %718 = vmatprep.subr.mxu0 0.0
    %719 = vmatpush1.msra.mxu0 0.0
    %720 = vmatprep.subr.mxu0 0.0
    %721 = vmatpush1.msra.mxu0 0.0
    %722 = vmatprep.subr.mxu0 0.0
    %723 = vmatpush1.msra.mxu0 0.0
    %724 = vmatprep.subr.mxu0 0.0
    %725 = vmatpush1.msra.mxu0 0.0
    %726 = vmatprep.subr.mxu0 0.0
    %727 = vmatpush1.msra.mxu0 0.0
    %728 = vmatprep.subr.mxu0 0.0
    %729 = vmatpush1.msra.mxu0 0.0
    %730 = vmatprep.subr.mxu0 0.0
    %731 = vmatpush1.msra.mxu0 0.0
    %732 = vmatprep.subr.mxu0 0.0
    %733 = vmatpush1.msra.mxu0 0.0
    %734 = vmatprep.subr.mxu0 0.0
    %735 = vmatpush1.msra.mxu0 0.0
    %736 = vmatprep.mubr.f32.mxu0 0.0
    %737 = vmatmul.mubr.f32.gmra.mrb[0].mxu0 %v661
    %v738 = vpop.f32.mrb[0].mxu0
    %v739 = vadd.f32 %v657, %v738
    %v740 = vpop.f32.mrb[0].mxu0
    %741 = vmatprep.mubr.f32.mxu0 0.0
    %742 = vmatmul.mubr.f32.gmra.mrb[0].mxu0 %v664
    %v743 = vpop.f32.mrb[0].mxu0
    %v744 = vadd.f32 %v657, %v743
    %v745 = vpop.f32.mrb[0].mxu0
    %746 = vmatprep.mubr.f32.mxu0 0.0
    %747 = vmatmul.mubr.f32.gmra.mrb[0].mxu0 %v667
    %v748 = vpop.f32.mrb[0].mxu0
    %v749 = vadd.f32 %v657, %v748
    %v750 = vpop.f32.mrb[0].mxu0
    %751 = vmatprep.mubr.f32.mxu0 0.0
    %752 = vmatmul.mubr.f32.gmra.mrb[0].mxu0 %v670
    %v753 = vpop.f32.mrb[0].mxu0
    %v754 = vadd.f32 %v657, %v753
    %v755 = vpop.f32.mrb[0].mxu0
    %756 = vdwg.mxu0
    %v757 = vadd.f32 %v636, %v739
    %v758 = vadd.f32 %v637, %v744
    %v759 = vadd.f32 %v638, %v749
    %v760 = vadd.f32 %v639, %v754
    %v761 = vmax.f32 %v757, 0.0
    %v762 = vmax.f32 %v758, 0.0
    %v763 = vmax.f32 %v759, 0.0
    %v764 = vmax.f32 %v760, 0.0
    %765 = vst [vmem:[#allocation2] sm:$0xff] %v761
    %766 = vst [vmem:[#allocation2 + $0x8] sm:$0xff] %v762
    %767 = vst [vmem:[#allocation2 + $0x10] sm:$0xff] %v763
    %768 = vst [vmem:[#allocation2 + $0x18] sm:$0xff] %v764
    // Predicated region
    $region26: #{ipt_head_encoder.9} parent=1 // pred_check
      _
    $region27: #{ipt_head_encoder.9} parent=1 // pred_check_branch
      %770 = sbr.rel (0) target = $region29
    $region28: #{ipt_head_encoder.9} parent=1 // pred_region
      %s772 = ssub.s32 512, 512
      %773 = vsyncadd [#allocation3], %s772
      %s774 = sshll.u32 [#allocation2], 4
      %s775 = int_to_ptr.vmem [resolvable:$true] %s774
      %780 = dma.vmem_to_hbm [thread:$0]  %s775, 512, %s6, [#allocation3], 128, 128, 8
    $region29: #{ipt_head_encoder.9} parent=1 // pred_fallthru
      _
    // Predicated region
    $region30: #{ipt_head_encoder.9} parent=1 // pred_check
      _
    $region31: #{ipt_head_encoder.9} parent=1 // pred_check_branch
      %782 = sbr.rel (0) target = $region33
    $region32: #{ipt_head_encoder.9} parent=1 // pred_region
      %783 = dma.done [#allocation3], 512
    $region33: #{ipt_head_encoder.9} parent=1 // pred_fallthru
      _
    %784 = vsyncpa [#allocation3], 1

</llo_original>
